<compile_context>
chip_gen: v7x
topology: tpu7x:2x2x1
jax: 0.10.0
libtpu: 0.0.40
codegen_flags: <defaults>
</compile_context>

<pallas_src>
import functools
import math

import jax
import jax.numpy as jnp
import numpy as np
from jax.experimental import pallas as pl
from jax.experimental.pallas import tpu as pltpu

# ---- problem sizes (small, consistent with the module's forward) ----
BATCH = 2
SEQ = 8
INPUT_DIM = 32        # embed_dim
NUM_HEADS = 4
HEAD_DIM = INPUT_DIM // NUM_HEADS   # nn.MultiheadAttention derives head_dim = D // H
FFN_UNITS = 64
NUM_BLOCKS = 2        # num_transformer_blocks
LN_EPS = 1e-5
VEC_WIDTH = 128       # lane width used for the packed small-vector slab
VEC_PER_BLOCK = 8     # bqkv, bo, g1, be1, bf1, bf2, g2, be2
# NOTE: `key_dim` in the PyTorch __init__ is unused by nn.MultiheadAttention (head_dim is
# derived from embed_dim // num_heads), so it does not appear here.


def _layer_norm(z, gamma, beta):
    mu = jnp.mean(z, axis=-1, keepdims=True)
    var = jnp.mean((z - mu) ** 2, axis=-1, keepdims=True)
    return (z - mu) * jax.lax.rsqrt(var + LN_EPS) * gamma + beta


def diffusion_kernel(x_ref, vec_ref, wout_ref, *rest, num_blocks, num_heads):
    """Fused DiffusionModel forward for one batch block.

    x_ref    : (bb, S, D) activations
    vec_ref  : (3 + 8*num_blocks, 128) packed small vectors
               row 0: initial_norm gamma, row 1: initial_norm beta, row 2: output bias
               per block (base = 3 + 8*blk):
                 +0 bqkv (3D, q-part pre-scaled), +1 bo, +2 g1, +3 be1,
                 +4 bf1 (F), +5 bf2, +6 g2, +7 be2
    wout_ref : (D, D) output-layer weight (x @ W layout)
    rest     : per-block matrices [wqkv (D,3D), wo (D,D), w1 (D,F), w2 (F,D)] * num_blocks,
               followed by the output ref (bb, S, D)
    """
    block_mats = rest[:-1]
    o_ref = rest[-1]
    assert len(block_mats) == 4 * num_blocks

    bb, S, D = x_ref.shape
    H = num_heads
    hd = D // H
    rows = bb * S

    # All row-wise ops (projections, LN, FFN) are fused over batch*seq rows.
    x = x_ref[...].reshape(rows, D)

    # ---- initial LayerNorm ----
    h = _layer_norm(x, vec_ref[0:1, :D], vec_ref[1:2, :D])

    for blk in range(num_blocks):
        wqkv = block_mats[4 * blk + 0][...]   # (D, 3D); q columns pre-scaled by 1/sqrt(hd)
        wo = block_mats[4 * blk + 1][...]     # (D, D)
        w1 = block_mats[4 * blk + 2][...]     # (D, F)
        w2 = block_mats[4 * blk + 3][...]     # (F, D)
        F_ = w1.shape[1]
        base = 3 + blk * VEC_PER_BLOCK
        bqkv = vec_ref[base + 0:base + 1, :3 * D]
        bo = vec_ref[base + 1:base + 2, :D]
        g1 = vec_ref[base + 2:base + 3, :D]
        be1 = vec_ref[base + 3:base + 4, :D]
        bf1 = vec_ref[base + 4:base + 5, :F_]
        bf2 = vec_ref[base + 5:base + 6, :D]
        g2 = vec_ref[base + 6:base + 7, :D]
        be2 = vec_ref[base + 7:base + 8, :D]

        # ---- fused QKV projection (single matmul, K=D contraction) ----
        qkv = jnp.dot(h, wqkv, preferred_element_type=jnp.float32) + bqkv  # (rows, 3D)
        q = qkv[:, 0:D]            # softmax scale already folded in
        k = qkv[:, D:2 * D]
        v = qkv[:, 2 * D:3 * D]

        # ---- attention: per-batch / per-head scores (tiny, statically unrolled),
        #      heads concatenated so the output projection is ONE full-K matmul ----
        ctx_rows = []
        for b in range(bb):
            r0 = b * S
            qb = q[r0:r0 + S, :]
            kb = k[r0:r0 + S, :]
            vb = v[r0:r0 + S, :]
            per_head = []
            for hh in range(H):
                lo = hh * hd
                qh = qb[:, lo:lo + hd]
                kh = kb[:, lo:lo + hd]
                vh = vb[:, lo:lo + hd]
                s = jnp.dot(qh, kh.T, preferred_element_type=jnp.float32)  # (S, S)
                s = s - jnp.max(s, axis=-1, keepdims=True)
                p = jnp.exp(s)
                p = p * pl.reciprocal(jnp.sum(p, axis=-1, keepdims=True), approx=False)
                per_head.append(jnp.dot(p, vh, preferred_element_type=jnp.float32))
            ctx_rows.append(jnp.concatenate(per_head, axis=-1))  # (S, D)
        ctx = jnp.concatenate(ctx_rows, axis=0)                   # (rows, D)
        attn_out = jnp.dot(ctx, wo, preferred_element_type=jnp.float32) + bo

        # ---- residual + LayerNorm 1 ----
        h1 = _layer_norm(h + attn_out, g1, be1)

        # ---- FFN: Linear -> ReLU -> Linear ----
        f = jnp.dot(h1, w1, preferred_element_type=jnp.float32) + bf1
        f = jnp.maximum(f, 0.0)
        f = jnp.dot(f, w2, preferred_element_type=jnp.float32) + bf2

        # ---- residual + LayerNorm 2 ----
        h = _layer_norm(h1 + f, g2, be2)

    # ---- output Linear ----
    y = jnp.dot(h, wout_ref[...], preferred_element_type=jnp.float32) + vec_ref[2:3, :D]
    o_ref[...] = y.reshape(bb, S, D).astype(o_ref.dtype)


def pack_params(params, num_heads):
    """One-time transform of canonical params into kernel operands:
    fused+scaled Wqkv, matrix list, and a single (3 + 8*nb, 128) slab of small vectors."""
    D = params["out_w"].shape[0]
    blocks = params["blocks"]
    F = blocks[0]["w1"].shape[1]
    hd = D // num_heads
    scale = 1.0 / math.sqrt(hd)
    assert 3 * D <= VEC_WIDTH and F <= VEC_WIDTH and D <= VEC_WIDTH

    def row(vec):
        vec = jnp.asarray(vec, jnp.float32).reshape(-1)
        return jnp.pad(vec, (0, VEC_WIDTH - vec.shape[0]))

    rows = [row(params["ln0_w"]), row(params["ln0_b"]), row(params["out_b"])]
    mats = []
    for bp in blocks:
        wqkv = jnp.concatenate([bp["wq"] * scale, bp["wk"], bp["wv"]], axis=1)  # (D, 3D)
        bqkv = jnp.concatenate([bp["bq"] * scale, bp["bk"], bp["bv"]])          # (3D,)
        rows += [row(bqkv), row(bp["bo"]), row(bp["ln1_w"]), row(bp["ln1_b"]),
                 row(bp["b1"]), row(bp["b2"]), row(bp["ln2_w"]), row(bp["ln2_b"])]
        mats += [wqkv, bp["wo"], bp["w1"], bp["w2"]]
    vec_slab = jnp.stack(rows, axis=0)  # (3 + 8*nb, 128) float32
    return vec_slab, jnp.asarray(params["out_w"], jnp.float32), mats


def diffusion_forward(x, params, *, num_heads=NUM_HEADS, batch_block=None):
    """x: (B, S, D) float32.  batch_block=None collapses the batch into one grid step
    (best on single-TC v5e/v6e); pass batch_block=1 on v7x to split the batch across the
    two TensorCores via the "parallel" grid axis."""
    B, S, D = x.shape
    if batch_block is None:
        batch_block = B
    assert B % batch_block == 0
    num_blocks = len(params["blocks"])

    vec_slab, wout, block_mats = pack_params(params, num_heads)

    def full_spec(arr):
        return pl.BlockSpec(arr.shape, lambda i: (0, 0))

    in_specs = [pl.BlockSpec((batch_block, S, D), lambda i: (i, 0, 0)),
                full_spec(vec_slab),
                full_spec(wout)]
    in_specs += [full_spec(m) for m in block_mats]
    out_specs = pl.BlockSpec((batch_block, S, D), lambda i: (i, 0, 0))

    kernel = functools.partial(diffusion_kernel, num_blocks=num_blocks, num_heads=num_heads)
    return pl.pallas_call(
        kernel,
        out_shape=jax.ShapeDtypeStruct((B, S, D), x.dtype),
        grid_spec=pltpu.PrefetchScalarGridSpec(
            num_scalar_prefetch=0,
            grid=(B // batch_block,),
            in_specs=in_specs,
            out_specs=out_specs,
        ),
        compiler_params=pltpu.CompilerParams(dimension_semantics=("parallel",)),
    )(x, vec_slab, wout, *block_mats)


def init_params(key, input_dim, num_heads, ffn_units, num_blocks):
    """Canonical (unscaled, x@W layout) parameters mirroring the PyTorch module."""
    D, F = input_dim, ffn_units

    def dense(k, shape, scale):
        return jax.random.normal(k, shape, jnp.float32) * scale

    keys = jax.random.split(key, num_blocks + 2)
    params = {
        "ln0_w": 1.0 + 0.05 * jax.random.normal(keys[0], (D,), jnp.float32),
        "ln0_b": 0.05 * jax.random.normal(jax.random.fold_in(keys[0], 1), (D,), jnp.float32),
        "out_w": dense(keys[1], (D, D), 1.0 / math.sqrt(D)),
        "out_b": jnp.full((D,), 0.01, jnp.float32),
        "blocks": [],
    }
    s_d = 1.0 / math.sqrt(D)
    s_f = 1.0 / math.sqrt(F)
    for i in range(num_blocks):
        k = keys[2 + i]
        ks = jax.random.split(k, 12)
        params["blocks"].append({
            "wq": dense(ks[0], (D, D), s_d), "bq": 0.02 * jax.random.normal(ks[1], (D,), jnp.float32),
            "wk": dense(ks[2], (D, D), s_d), "bk": 0.02 * jax.random.normal(ks[3], (D,), jnp.float32),
            "wv": dense(ks[4], (D, D), s_d), "bv": 0.02 * jax.random.normal(ks[5], (D,), jnp.float32),
            "wo": dense(ks[6], (D, D), s_d), "bo": 0.02 * jax.random.normal(ks[7], (D,), jnp.float32),
            "ln1_w": 1.0 + 0.05 * jax.random.normal(ks[8], (D,), jnp.float32),
            "ln1_b": 0.05 * jax.random.normal(ks[9], (D,), jnp.float32),
            "w1": dense(ks[10], (D, F), s_d), "b1": jnp.full((F,), 0.01, jnp.float32),
            "w2": dense(ks[11], (F, D), s_f), "b2": jnp.full((D,), 0.01, jnp.float32),
            "ln2_w": 1.0 + 0.05 * jax.random.normal(jax.random.fold_in(k, 100), (D,), jnp.float32),
            "ln2_b": 0.05 * jax.random.normal(jax.random.fold_in(k, 101), (D,), jnp.float32),
        })
    return params


def diffusion_ref(x, params, num_heads=NUM_HEADS):
    """Pure-JAX reference mirroring torch.nn semantics (batch_first MHA, biased-var LN)."""
    B, S, D = x.shape
    hd = D // num_heads

    def ln(z, g, b):
        mu = jnp.mean(z, -1, keepdims=True)
        var = jnp.mean((z - mu) ** 2, -1, keepdims=True)
        return (z - mu) / jnp.sqrt(var + LN_EPS) * g + b

    h = ln(x, params["ln0_w"], params["ln0_b"])
    for bp in params["blocks"]:
        q = h @ bp["wq"] + bp["bq"]
        k = h @ bp["wk"] + bp["bk"]
        v = h @ bp["wv"] + bp["bv"]

        def split(t):  # (B, S, D) -> (B, H, S, hd)
            return t.reshape(B, S, num_heads, hd).transpose(0, 2, 1, 3)

        qh, kh, vh = split(q), split(k), split(v)
        s = jnp.einsum("bhqd,bhkd->bhqk", qh, kh) / math.sqrt(hd)
        p = jax.nn.softmax(s, axis=-1)
        ctx = jnp.einsum("bhqk,bhkd->bhqd", p, vh).transpose(0, 2, 1, 3).reshape(B, S, D)
        attn = ctx @ bp["wo"] + bp["bo"]
        h1 = ln(h + attn, bp["ln1_w"], bp["ln1_b"])
        f = jnp.maximum(h1 @ bp["w1"] + bp["b1"], 0.0) @ bp["w2"] + bp["b2"]
        h = ln(h1 + f, bp["ln2_w"], bp["ln2_b"])
    return h @ params["out_w"] + params["out_b"]


if __name__ == "__main__":
    key = jax.random.PRNGKey(0)
    k_x, k_p = jax.random.split(key)
    x = jax.random.normal(k_x, (BATCH, SEQ, INPUT_DIM), jnp.float32)
    params = init_params(k_p, INPUT_DIM, NUM_HEADS, FFN_UNITS, NUM_BLOCKS)

    # Default: batch collapsed into a single grid step (v5e/v6e-friendly).
    # On v7x, use diffusion_forward(x, params, batch_block=1) to split batch over both TCs.
    out = diffusion_forward(x, params)
    out = jax.block_until_ready(out)

    ref = diffusion_ref(x, params)
    np.testing.assert_allclose(np.asarray(out), np.asarray(ref), rtol=1e-4, atol=1e-4)

    print("KERNEL_OK")
</pallas_src>

<mosaic_0001>
module attributes {stable_mosaic.version = 11 : i64} {
  func.func @diffusion_kernel(%arg0: i32, %arg1: memref<2x8x32xf32, #tpu.memory_space<vmem>>, %arg2: memref<19x128xf32, #tpu.memory_space<vmem>>, %arg3: memref<32x32xf32, #tpu.memory_space<vmem>>, %arg4: memref<32x96xf32, #tpu.memory_space<vmem>>, %arg5: memref<32x32xf32, #tpu.memory_space<vmem>>, %arg6: memref<32x64xf32, #tpu.memory_space<vmem>>, %arg7: memref<64x32xf32, #tpu.memory_space<vmem>>, %arg8: memref<32x96xf32, #tpu.memory_space<vmem>>, %arg9: memref<32x32xf32, #tpu.memory_space<vmem>>, %arg10: memref<32x64xf32, #tpu.memory_space<vmem>>, %arg11: memref<64x32xf32, #tpu.memory_space<vmem>>, %arg12: memref<2x8x32xf32, #tpu.memory_space<vmem>>) attributes {dimension_semantics = [#tpu.dimension_semantics<parallel>], iteration_bounds = array<i64: 1>, scalar_prefetch = 0 : i64, scratch_operands = 0 : i64, tpu.core_type = #tpu.core_type<tc>, window_params = [{transform_indices = @transform_0, window_bounds = array<i64: 2, 8, 32>}, {pipeline_mode = #tpu.pipeline_mode<synchronous>, transform_indices = @transform_1, window_bounds = array<i64: 19, 128>}, {pipeline_mode = #tpu.pipeline_mode<synchronous>, transform_indices = @transform_2, window_bounds = array<i64: 32, 32>}, {pipeline_mode = #tpu.pipeline_mode<synchronous>, transform_indices = @transform_3, window_bounds = array<i64: 32, 96>}, {pipeline_mode = #tpu.pipeline_mode<synchronous>, transform_indices = @transform_4, window_bounds = array<i64: 32, 32>}, {pipeline_mode = #tpu.pipeline_mode<synchronous>, transform_indices = @transform_5, window_bounds = array<i64: 32, 64>}, {pipeline_mode = #tpu.pipeline_mode<synchronous>, transform_indices = @transform_6, window_bounds = array<i64: 64, 32>}, {pipeline_mode = #tpu.pipeline_mode<synchronous>, transform_indices = @transform_7, window_bounds = array<i64: 32, 96>}, {pipeline_mode = #tpu.pipeline_mode<synchronous>, transform_indices = @transform_8, window_bounds = array<i64: 32, 32>}, {pipeline_mode = #tpu.pipeline_mode<synchronous>, transform_indices = @transform_9, window_bounds = array<i64: 32, 64>}, {pipeline_mode = #tpu.pipeline_mode<synchronous>, transform_indices = @transform_10, window_bounds = array<i64: 64, 32>}, {transform_indices = @transform_11, window_bounds = array<i64: 2, 8, 32>}]} {
    %c0 = arith.constant 0 : index
    %c0_0 = arith.constant 0 : index
    %c0_1 = arith.constant 0 : index
    %0 = vector.load %arg1[%c0, %c0_0, %c0_1] : memref<2x8x32xf32, #tpu.memory_space<vmem>>, vector<2x8x32xf32>
    %1 = vector.shape_cast %0 : vector<2x8x32xf32> to vector<16x32xf32>
    %c0_2 = arith.constant 0 : index
    %c0_3 = arith.constant 0 : index
    %2 = vector.load %arg2[%c0_2, %c0_3] : memref<19x128xf32, #tpu.memory_space<vmem>>, vector<1x32xf32>
    %c1 = arith.constant 1 : index
    %c0_4 = arith.constant 0 : index
    %3 = vector.load %arg2[%c1, %c0_4] : memref<19x128xf32, #tpu.memory_space<vmem>>, vector<1x32xf32>
    %cst = arith.constant dense<0.000000e+00> : vector<16xf32>
    %4 = vector.multi_reduction <add>, %1, %cst [1] : vector<16x32xf32> to vector<16xf32>
    %5 = vector.shape_cast %4 : vector<16xf32> to vector<16x1xf32>
    %cst_5 = arith.constant 3.200000e+01 : f32
    %6 = vector.broadcast %cst_5 : f32 to vector<16x1xf32>
    %7 = arith.divf %5, %6 : vector<16x1xf32>
    %8 = vector.broadcast %7 : vector<16x1xf32> to vector<16x32xf32>
    %9 = arith.subf %1, %8 : vector<16x32xf32>
    %10 = arith.mulf %9, %9 : vector<16x32xf32>
    %cst_6 = arith.constant dense<0.000000e+00> : vector<16xf32>
    %11 = vector.multi_reduction <add>, %10, %cst_6 [1] : vector<16x32xf32> to vector<16xf32>
    %12 = vector.shape_cast %11 : vector<16xf32> to vector<16x1xf32>
    %cst_7 = arith.constant 3.200000e+01 : f32
    %13 = vector.broadcast %cst_7 : f32 to vector<16x1xf32>
    %14 = arith.divf %12, %13 : vector<16x1xf32>
    %15 = vector.broadcast %7 : vector<16x1xf32> to vector<16x32xf32>
    %16 = arith.subf %1, %15 : vector<16x32xf32>
    %cst_8 = arith.constant 9.99999974E-6 : f32
    %17 = vector.broadcast %cst_8 : f32 to vector<16x1xf32>
    %18 = arith.addf %14, %17 : vector<16x1xf32>
    %19 = math.rsqrt %18 : vector<16x1xf32>
    %20 = vector.broadcast %19 : vector<16x1xf32> to vector<16x32xf32>
    %21 = arith.mulf %16, %20 : vector<16x32xf32>
    %22 = vector.broadcast %2 : vector<1x32xf32> to vector<16x32xf32>
    %23 = arith.mulf %21, %22 : vector<16x32xf32>
    %24 = vector.broadcast %3 : vector<1x32xf32> to vector<16x32xf32>
    %25 = arith.addf %23, %24 : vector<16x32xf32>
    %c0_9 = arith.constant 0 : index
    %c0_10 = arith.constant 0 : index
    %26 = vector.load %arg4[%c0_9, %c0_10] : memref<32x96xf32, #tpu.memory_space<vmem>>, vector<32x96xf32>
    %c0_11 = arith.constant 0 : index
    %c0_12 = arith.constant 0 : index
    %27 = vector.load %arg5[%c0_11, %c0_12] : memref<32x32xf32, #tpu.memory_space<vmem>>, vector<32x32xf32>
    %c0_13 = arith.constant 0 : index
    %c0_14 = arith.constant 0 : index
    %28 = vector.load %arg6[%c0_13, %c0_14] : memref<32x64xf32, #tpu.memory_space<vmem>>, vector<32x64xf32>
    %c0_15 = arith.constant 0 : index
    %c0_16 = arith.constant 0 : index
    %29 = vector.load %arg7[%c0_15, %c0_16] : memref<64x32xf32, #tpu.memory_space<vmem>>, vector<64x32xf32>
    %c3 = arith.constant 3 : index
    %c0_17 = arith.constant 0 : index
    %30 = vector.load %arg2[%c3, %c0_17] : memref<19x128xf32, #tpu.memory_space<vmem>>, vector<1x96xf32>
    %c4 = arith.constant 4 : index
    %c0_18 = arith.constant 0 : index
    %31 = vector.load %arg2[%c4, %c0_18] : memref<19x128xf32, #tpu.memory_space<vmem>>, vector<1x32xf32>
    %c5 = arith.constant 5 : index
    %c0_19 = arith.constant 0 : index
    %32 = vector.load %arg2[%c5, %c0_19] : memref<19x128xf32, #tpu.memory_space<vmem>>, vector<1x32xf32>
    %c6 = arith.constant 6 : index
    %c0_20 = arith.constant 0 : index
    %33 = vector.load %arg2[%c6, %c0_20] : memref<19x128xf32, #tpu.memory_space<vmem>>, vector<1x32xf32>
    %c7 = arith.constant 7 : index
    %c0_21 = arith.constant 0 : index
    %34 = vector.load %arg2[%c7, %c0_21] : memref<19x128xf32, #tpu.memory_space<vmem>>, vector<1x64xf32>
    %c8 = arith.constant 8 : index
    %c0_22 = arith.constant 0 : index
    %35 = vector.load %arg2[%c8, %c0_22] : memref<19x128xf32, #tpu.memory_space<vmem>>, vector<1x32xf32>
    %c9 = arith.constant 9 : index
    %c0_23 = arith.constant 0 : index
    %36 = vector.load %arg2[%c9, %c0_23] : memref<19x128xf32, #tpu.memory_space<vmem>>, vector<1x32xf32>
    %c10 = arith.constant 10 : index
    %c0_24 = arith.constant 0 : index
    %37 = vector.load %arg2[%c10, %c0_24] : memref<19x128xf32, #tpu.memory_space<vmem>>, vector<1x32xf32>
    %cst_25 = arith.constant dense<0.000000e+00> : vector<16x96xf32>
    %38 = tpu.matmul %25, %26, %cst_25 {dimension_numbers = #tpu.dot_dimension_numbers<[1], [0], [0], [1], [0, 0, 1, 1], [], []>} : vector<16x32xf32>, vector<32x96xf32>, vector<16x96xf32> -> vector<16x96xf32>
    %39 = vector.broadcast %30 : vector<1x96xf32> to vector<16x96xf32>
    %40 = arith.addf %38, %39 : vector<16x96xf32>
    %41 = vector.extract_strided_slice %40 {offsets = [0, 0], sizes = [16, 32], strides = [1, 1]} : vector<16x96xf32> to vector<16x32xf32>
    %42 = vector.extract_strided_slice %40 {offsets = [0, 32], sizes = [16, 32], strides = [1, 1]} : vector<16x96xf32> to vector<16x32xf32>
    %43 = vector.extract_strided_slice %40 {offsets = [0, 64], sizes = [16, 32], strides = [1, 1]} : vector<16x96xf32> to vector<16x32xf32>
    %44 = vector.extract_strided_slice %41 {offsets = [0, 0], sizes = [8, 32], strides = [1, 1]} : vector<16x32xf32> to vector<8x32xf32>
    %45 = vector.extract_strided_slice %42 {offsets = [0, 0], sizes = [8, 32], strides = [1, 1]} : vector<16x32xf32> to vector<8x32xf32>
    %46 = vector.extract_strided_slice %43 {offsets = [0, 0], sizes = [8, 32], strides = [1, 1]} : vector<16x32xf32> to vector<8x32xf32>
    %47 = vector.extract_strided_slice %44 {offsets = [0, 0], sizes = [8, 8], strides = [1, 1]} : vector<8x32xf32> to vector<8x8xf32>
    %48 = vector.extract_strided_slice %45 {offsets = [0, 0], sizes = [8, 8], strides = [1, 1]} : vector<8x32xf32> to vector<8x8xf32>
    %49 = vector.extract_strided_slice %46 {offsets = [0, 0], sizes = [8, 8], strides = [1, 1]} : vector<8x32xf32> to vector<8x8xf32>
    %50 = tpu.transpose %48, [1, 0] : vector<8x8xf32> -> vector<8x8xf32>
    %cst_26 = arith.constant dense<0.000000e+00> : vector<8x8xf32>
    %51 = tpu.matmul %47, %50, %cst_26 {dimension_numbers = #tpu.dot_dimension_numbers<[1], [0], [0], [1], [0, 0, 1, 1], [], []>} : vector<8x8xf32>, vector<8x8xf32>, vector<8x8xf32> -> vector<8x8xf32>
    %cst_27 = arith.constant dense<0xFF800000> : vector<8xf32>
    %52 = vector.multi_reduction <maximumf>, %51, %cst_27 [1] : vector<8x8xf32> to vector<8xf32>
    %53 = vector.shape_cast %52 : vector<8xf32> to vector<8x1xf32>
    %54 = vector.broadcast %53 : vector<8x1xf32> to vector<8x8xf32>
    %55 = arith.subf %51, %54 : vector<8x8xf32>
    %56 = math.exp %55 : vector<8x8xf32>
    %cst_28 = arith.constant dense<0.000000e+00> : vector<8xf32>
    %57 = vector.multi_reduction <add>, %56, %cst_28 [1] : vector<8x8xf32> to vector<8xf32>
    %58 = vector.shape_cast %57 : vector<8xf32> to vector<8x1xf32>
    %59 = tpu.reciprocal %58 : vector<8x1xf32> -> vector<8x1xf32>
    %60 = vector.broadcast %59 : vector<8x1xf32> to vector<8x8xf32>
    %61 = arith.mulf %56, %60 : vector<8x8xf32>
    %cst_29 = arith.constant dense<0.000000e+00> : vector<8x8xf32>
    %62 = tpu.matmul %61, %49, %cst_29 {dimension_numbers = #tpu.dot_dimension_numbers<[1], [0], [0], [1], [0, 0, 1, 1], [], []>} : vector<8x8xf32>, vector<8x8xf32>, vector<8x8xf32> -> vector<8x8xf32>
    %63 = vector.extract_strided_slice %44 {offsets = [0, 8], sizes = [8, 8], strides = [1, 1]} : vector<8x32xf32> to vector<8x8xf32>
    %64 = vector.extract_strided_slice %45 {offsets = [0, 8], sizes = [8, 8], strides = [1, 1]} : vector<8x32xf32> to vector<8x8xf32>
    %65 = vector.extract_strided_slice %46 {offsets = [0, 8], sizes = [8, 8], strides = [1, 1]} : vector<8x32xf32> to vector<8x8xf32>
    %66 = tpu.transpose %64, [1, 0] : vector<8x8xf32> -> vector<8x8xf32>
    %cst_30 = arith.constant dense<0.000000e+00> : vector<8x8xf32>
    %67 = tpu.matmul %63, %66, %cst_30 {dimension_numbers = #tpu.dot_dimension_numbers<[1], [0], [0], [1], [0, 0, 1, 1], [], []>} : vector<8x8xf32>, vector<8x8xf32>, vector<8x8xf32> -> vector<8x8xf32>
    %cst_31 = arith.constant dense<0xFF800000> : vector<8xf32>
    %68 = vector.multi_reduction <maximumf>, %67, %cst_31 [1] : vector<8x8xf32> to vector<8xf32>
    %69 = vector.shape_cast %68 : vector<8xf32> to vector<8x1xf32>
    %70 = vector.broadcast %69 : vector<8x1xf32> to vector<8x8xf32>
    %71 = arith.subf %67, %70 : vector<8x8xf32>
    %72 = math.exp %71 : vector<8x8xf32>
    %cst_32 = arith.constant dense<0.000000e+00> : vector<8xf32>
    %73 = vector.multi_reduction <add>, %72, %cst_32 [1] : vector<8x8xf32> to vector<8xf32>
    %74 = vector.shape_cast %73 : vector<8xf32> to vector<8x1xf32>
    %75 = tpu.reciprocal %74 : vector<8x1xf32> -> vector<8x1xf32>
    %76 = vector.broadcast %75 : vector<8x1xf32> to vector<8x8xf32>
    %77 = arith.mulf %72, %76 : vector<8x8xf32>
    %cst_33 = arith.constant dense<0.000000e+00> : vector<8x8xf32>
    %78 = tpu.matmul %77, %65, %cst_33 {dimension_numbers = #tpu.dot_dimension_numbers<[1], [0], [0], [1], [0, 0, 1, 1], [], []>} : vector<8x8xf32>, vector<8x8xf32>, vector<8x8xf32> -> vector<8x8xf32>
    %79 = vector.extract_strided_slice %44 {offsets = [0, 16], sizes = [8, 8], strides = [1, 1]} : vector<8x32xf32> to vector<8x8xf32>
    %80 = vector.extract_strided_slice %45 {offsets = [0, 16], sizes = [8, 8], strides = [1, 1]} : vector<8x32xf32> to vector<8x8xf32>
    %81 = vector.extract_strided_slice %46 {offsets = [0, 16], sizes = [8, 8], strides = [1, 1]} : vector<8x32xf32> to vector<8x8xf32>
    %82 = tpu.transpose %80, [1, 0] : vector<8x8xf32> -> vector<8x8xf32>
    %cst_34 = arith.constant dense<0.000000e+00> : vector<8x8xf32>
    %83 = tpu.matmul %79, %82, %cst_34 {dimension_numbers = #tpu.dot_dimension_numbers<[1], [0], [0], [1], [0, 0, 1, 1], [], []>} : vector<8x8xf32>, vector<8x8xf32>, vector<8x8xf32> -> vector<8x8xf32>
    %cst_35 = arith.constant dense<0xFF800000> : vector<8xf32>
    %84 = vector.multi_reduction <maximumf>, %83, %cst_35 [1] : vector<8x8xf32> to vector<8xf32>
    %85 = vector.shape_cast %84 : vector<8xf32> to vector<8x1xf32>
    %86 = vector.broadcast %85 : vector<8x1xf32> to vector<8x8xf32>
    %87 = arith.subf %83, %86 : vector<8x8xf32>
    %88 = math.exp %87 : vector<8x8xf32>
    %cst_36 = arith.constant dense<0.000000e+00> : vector<8xf32>
    %89 = vector.multi_reduction <add>, %88, %cst_36 [1] : vector<8x8xf32> to vector<8xf32>
    %90 = vector.shape_cast %89 : vector<8xf32> to vector<8x1xf32>
    %91 = tpu.reciprocal %90 : vector<8x1xf32> -> vector<8x1xf32>
    %92 = vector.broadcast %91 : vector<8x1xf32> to vector<8x8xf32>
    %93 = arith.mulf %88, %92 : vector<8x8xf32>
    %cst_37 = arith.constant dense<0.000000e+00> : vector<8x8xf32>
    %94 = tpu.matmul %93, %81, %cst_37 {dimension_numbers = #tpu.dot_dimension_numbers<[1], [0], [0], [1], [0, 0, 1, 1], [], []>} : vector<8x8xf32>, vector<8x8xf32>, vector<8x8xf32> -> vector<8x8xf32>
    %95 = vector.extract_strided_slice %44 {offsets = [0, 24], sizes = [8, 8], strides = [1, 1]} : vector<8x32xf32> to vector<8x8xf32>
    %96 = vector.extract_strided_slice %45 {offsets = [0, 24], sizes = [8, 8], strides = [1, 1]} : vector<8x32xf32> to vector<8x8xf32>
    %97 = vector.extract_strided_slice %46 {offsets = [0, 24], sizes = [8, 8], strides = [1, 1]} : vector<8x32xf32> to vector<8x8xf32>
    %98 = tpu.transpose %96, [1, 0] : vector<8x8xf32> -> vector<8x8xf32>
    %cst_38 = arith.constant dense<0.000000e+00> : vector<8x8xf32>
    %99 = tpu.matmul %95, %98, %cst_38 {dimension_numbers = #tpu.dot_dimension_numbers<[1], [0], [0], [1], [0, 0, 1, 1], [], []>} : vector<8x8xf32>, vector<8x8xf32>, vector<8x8xf32> -> vector<8x8xf32>
    %cst_39 = arith.constant dense<0xFF800000> : vector<8xf32>
    %100 = vector.multi_reduction <maximumf>, %99, %cst_39 [1] : vector<8x8xf32> to vector<8xf32>
    %101 = vector.shape_cast %100 : vector<8xf32> to vector<8x1xf32>
    %102 = vector.broadcast %101 : vector<8x1xf32> to vector<8x8xf32>
    %103 = arith.subf %99, %102 : vector<8x8xf32>
    %104 = math.exp %103 : vector<8x8xf32>
    %cst_40 = arith.constant dense<0.000000e+00> : vector<8xf32>
    %105 = vector.multi_reduction <add>, %104, %cst_40 [1] : vector<8x8xf32> to vector<8xf32>
    %106 = vector.shape_cast %105 : vector<8xf32> to vector<8x1xf32>
    %107 = tpu.reciprocal %106 : vector<8x1xf32> -> vector<8x1xf32>
    %108 = vector.broadcast %107 : vector<8x1xf32> to vector<8x8xf32>
    %109 = arith.mulf %104, %108 : vector<8x8xf32>
    %cst_41 = arith.constant dense<0.000000e+00> : vector<8x8xf32>
    %110 = tpu.matmul %109, %97, %cst_41 {dimension_numbers = #tpu.dot_dimension_numbers<[1], [0], [0], [1], [0, 0, 1, 1], [], []>} : vector<8x8xf32>, vector<8x8xf32>, vector<8x8xf32> -> vector<8x8xf32>
    %111 = tpu.concatenate %62, %78, %94, %110 in 1 : vector<8x8xf32>, vector<8x8xf32>, vector<8x8xf32>, vector<8x8xf32> -> vector<8x32xf32>
    %112 = vector.extract_strided_slice %41 {offsets = [8, 0], sizes = [8, 32], strides = [1, 1]} : vector<16x32xf32> to vector<8x32xf32>
    %113 = vector.extract_strided_slice %42 {offsets = [8, 0], sizes = [8, 32], strides = [1, 1]} : vector<16x32xf32> to vector<8x32xf32>
    %114 = vector.extract_strided_slice %43 {offsets = [8, 0], sizes = [8, 32], strides = [1, 1]} : vector<16x32xf32> to vector<8x32xf32>
    %115 = vector.extract_strided_slice %112 {offsets = [0, 0], sizes = [8, 8], strides = [1, 1]} : vector<8x32xf32> to vector<8x8xf32>
    %116 = vector.extract_strided_slice %113 {offsets = [0, 0], sizes = [8, 8], strides = [1, 1]} : vector<8x32xf32> to vector<8x8xf32>
    %117 = vector.extract_strided_slice %114 {offsets = [0, 0], sizes = [8, 8], strides = [1, 1]} : vector<8x32xf32> to vector<8x8xf32>
    %118 = tpu.transpose %116, [1, 0] : vector<8x8xf32> -> vector<8x8xf32>
    %cst_42 = arith.constant dense<0.000000e+00> : vector<8x8xf32>
    %119 = tpu.matmul %115, %118, %cst_42 {dimension_numbers = #tpu.dot_dimension_numbers<[1], [0], [0], [1], [0, 0, 1, 1], [], []>} : vector<8x8xf32>, vector<8x8xf32>, vector<8x8xf32> -> vector<8x8xf32>
    %cst_43 = arith.constant dense<0xFF800000> : vector<8xf32>
    %120 = vector.multi_reduction <maximumf>, %119, %cst_43 [1] : vector<8x8xf32> to vector<8xf32>
    %121 = vector.shape_cast %120 : vector<8xf32> to vector<8x1xf32>
    %122 = vector.broadcast %121 : vector<8x1xf32> to vector<8x8xf32>
    %123 = arith.subf %119, %122 : vector<8x8xf32>
    %124 = math.exp %123 : vector<8x8xf32>
    %cst_44 = arith.constant dense<0.000000e+00> : vector<8xf32>
    %125 = vector.multi_reduction <add>, %124, %cst_44 [1] : vector<8x8xf32> to vector<8xf32>
    %126 = vector.shape_cast %125 : vector<8xf32> to vector<8x1xf32>
    %127 = tpu.reciprocal %126 : vector<8x1xf32> -> vector<8x1xf32>
    %128 = vector.broadcast %127 : vector<8x1xf32> to vector<8x8xf32>
    %129 = arith.mulf %124, %128 : vector<8x8xf32>
    %cst_45 = arith.constant dense<0.000000e+00> : vector<8x8xf32>
    %130 = tpu.matmul %129, %117, %cst_45 {dimension_numbers = #tpu.dot_dimension_numbers<[1], [0], [0], [1], [0, 0, 1, 1], [], []>} : vector<8x8xf32>, vector<8x8xf32>, vector<8x8xf32> -> vector<8x8xf32>
    %131 = vector.extract_strided_slice %112 {offsets = [0, 8], sizes = [8, 8], strides = [1, 1]} : vector<8x32xf32> to vector<8x8xf32>
    %132 = vector.extract_strided_slice %113 {offsets = [0, 8], sizes = [8, 8], strides = [1, 1]} : vector<8x32xf32> to vector<8x8xf32>
    %133 = vector.extract_strided_slice %114 {offsets = [0, 8], sizes = [8, 8], strides = [1, 1]} : vector<8x32xf32> to vector<8x8xf32>
    %134 = tpu.transpose %132, [1, 0] : vector<8x8xf32> -> vector<8x8xf32>
    %cst_46 = arith.constant dense<0.000000e+00> : vector<8x8xf32>
    %135 = tpu.matmul %131, %134, %cst_46 {dimension_numbers = #tpu.dot_dimension_numbers<[1], [0], [0], [1], [0, 0, 1, 1], [], []>} : vector<8x8xf32>, vector<8x8xf32>, vector<8x8xf32> -> vector<8x8xf32>
    %cst_47 = arith.constant dense<0xFF800000> : vector<8xf32>
    %136 = vector.multi_reduction <maximumf>, %135, %cst_47 [1] : vector<8x8xf32> to vector<8xf32>
    %137 = vector.shape_cast %136 : vector<8xf32> to vector<8x1xf32>
    %138 = vector.broadcast %137 : vector<8x1xf32> to vector<8x8xf32>
    %139 = arith.subf %135, %138 : vector<8x8xf32>
    %140 = math.exp %139 : vector<8x8xf32>
    %cst_48 = arith.constant dense<0.000000e+00> : vector<8xf32>
    %141 = vector.multi_reduction <add>, %140, %cst_48 [1] : vector<8x8xf32> to vector<8xf32>
    %142 = vector.shape_cast %141 : vector<8xf32> to vector<8x1xf32>
    %143 = tpu.reciprocal %142 : vector<8x1xf32> -> vector<8x1xf32>
    %144 = vector.broadcast %143 : vector<8x1xf32> to vector<8x8xf32>
    %145 = arith.mulf %140, %144 : vector<8x8xf32>
    %cst_49 = arith.constant dense<0.000000e+00> : vector<8x8xf32>
    %146 = tpu.matmul %145, %133, %cst_49 {dimension_numbers = #tpu.dot_dimension_numbers<[1], [0], [0], [1], [0, 0, 1, 1], [], []>} : vector<8x8xf32>, vector<8x8xf32>, vector<8x8xf32> -> vector<8x8xf32>
    %147 = vector.extract_strided_slice %112 {offsets = [0, 16], sizes = [8, 8], strides = [1, 1]} : vector<8x32xf32> to vector<8x8xf32>
    %148 = vector.extract_strided_slice %113 {offsets = [0, 16], sizes = [8, 8], strides = [1, 1]} : vector<8x32xf32> to vector<8x8xf32>
    %149 = vector.extract_strided_slice %114 {offsets = [0, 16], sizes = [8, 8], strides = [1, 1]} : vector<8x32xf32> to vector<8x8xf32>
    %150 = tpu.transpose %148, [1, 0] : vector<8x8xf32> -> vector<8x8xf32>
    %cst_50 = arith.constant dense<0.000000e+00> : vector<8x8xf32>
    %151 = tpu.matmul %147, %150, %cst_50 {dimension_numbers = #tpu.dot_dimension_numbers<[1], [0], [0], [1], [0, 0, 1, 1], [], []>} : vector<8x8xf32>, vector<8x8xf32>, vector<8x8xf32> -> vector<8x8xf32>
    %cst_51 = arith.constant dense<0xFF800000> : vector<8xf32>
    %152 = vector.multi_reduction <maximumf>, %151, %cst_51 [1] : vector<8x8xf32> to vector<8xf32>
    %153 = vector.shape_cast %152 : vector<8xf32> to vector<8x1xf32>
    %154 = vector.broadcast %153 : vector<8x1xf32> to vector<8x8xf32>
    %155 = arith.subf %151, %154 : vector<8x8xf32>
    %156 = math.exp %155 : vector<8x8xf32>
    %cst_52 = arith.constant dense<0.000000e+00> : vector<8xf32>
    %157 = vector.multi_reduction <add>, %156, %cst_52 [1] : vector<8x8xf32> to vector<8xf32>
    %158 = vector.shape_cast %157 : vector<8xf32> to vector<8x1xf32>
    %159 = tpu.reciprocal %158 : vector<8x1xf32> -> vector<8x1xf32>
    %160 = vector.broadcast %159 : vector<8x1xf32> to vector<8x8xf32>
    %161 = arith.mulf %156, %160 : vector<8x8xf32>
    %cst_53 = arith.constant dense<0.000000e+00> : vector<8x8xf32>
    %162 = tpu.matmul %161, %149, %cst_53 {dimension_numbers = #tpu.dot_dimension_numbers<[1], [0], [0], [1], [0, 0, 1, 1], [], []>} : vector<8x8xf32>, vector<8x8xf32>, vector<8x8xf32> -> vector<8x8xf32>
    %163 = vector.extract_strided_slice %112 {offsets = [0, 24], sizes = [8, 8], strides = [1, 1]} : vector<8x32xf32> to vector<8x8xf32>
    %164 = vector.extract_strided_slice %113 {offsets = [0, 24], sizes = [8, 8], strides = [1, 1]} : vector<8x32xf32> to vector<8x8xf32>
    %165 = vector.extract_strided_slice %114 {offsets = [0, 24], sizes = [8, 8], strides = [1, 1]} : vector<8x32xf32> to vector<8x8xf32>
    %166 = tpu.transpose %164, [1, 0] : vector<8x8xf32> -> vector<8x8xf32>
    %cst_54 = arith.constant dense<0.000000e+00> : vector<8x8xf32>
    %167 = tpu.matmul %163, %166, %cst_54 {dimension_numbers = #tpu.dot_dimension_numbers<[1], [0], [0], [1], [0, 0, 1, 1], [], []>} : vector<8x8xf32>, vector<8x8xf32>, vector<8x8xf32> -> vector<8x8xf32>
    %cst_55 = arith.constant dense<0xFF800000> : vector<8xf32>
    %168 = vector.multi_reduction <maximumf>, %167, %cst_55 [1] : vector<8x8xf32> to vector<8xf32>
    %169 = vector.shape_cast %168 : vector<8xf32> to vector<8x1xf32>
    %170 = vector.broadcast %169 : vector<8x1xf32> to vector<8x8xf32>
    %171 = arith.subf %167, %170 : vector<8x8xf32>
    %172 = math.exp %171 : vector<8x8xf32>
    %cst_56 = arith.constant dense<0.000000e+00> : vector<8xf32>
    %173 = vector.multi_reduction <add>, %172, %cst_56 [1] : vector<8x8xf32> to vector<8xf32>
    %174 = vector.shape_cast %173 : vector<8xf32> to vector<8x1xf32>
    %175 = tpu.reciprocal %174 : vector<8x1xf32> -> vector<8x1xf32>
    %176 = vector.broadcast %175 : vector<8x1xf32> to vector<8x8xf32>
    %177 = arith.mulf %172, %176 : vector<8x8xf32>
    %cst_57 = arith.constant dense<0.000000e+00> : vector<8x8xf32>
    %178 = tpu.matmul %177, %165, %cst_57 {dimension_numbers = #tpu.dot_dimension_numbers<[1], [0], [0], [1], [0, 0, 1, 1], [], []>} : vector<8x8xf32>, vector<8x8xf32>, vector<8x8xf32> -> vector<8x8xf32>
    %179 = tpu.concatenate %130, %146, %162, %178 in 1 : vector<8x8xf32>, vector<8x8xf32>, vector<8x8xf32>, vector<8x8xf32> -> vector<8x32xf32>
    %180 = tpu.concatenate %111, %179 in 0 : vector<8x32xf32>, vector<8x32xf32> -> vector<16x32xf32>
    %cst_58 = arith.constant dense<0.000000e+00> : vector<16x32xf32>
    %181 = tpu.matmul %180, %27, %cst_58 {dimension_numbers = #tpu.dot_dimension_numbers<[1], [0], [0], [1], [0, 0, 1, 1], [], []>} : vector<16x32xf32>, vector<32x32xf32>, vector<16x32xf32> -> vector<16x32xf32>
    %182 = vector.broadcast %31 : vector<1x32xf32> to vector<16x32xf32>
    %183 = arith.addf %181, %182 : vector<16x32xf32>
    %184 = arith.addf %25, %183 : vector<16x32xf32>
    %cst_59 = arith.constant dense<0.000000e+00> : vector<16xf32>
    %185 = vector.multi_reduction <add>, %184, %cst_59 [1] : vector<16x32xf32> to vector<16xf32>
    %186 = vector.shape_cast %185 : vector<16xf32> to vector<16x1xf32>
    %cst_60 = arith.constant 3.200000e+01 : f32
    %187 = vector.broadcast %cst_60 : f32 to vector<16x1xf32>
    %188 = arith.divf %186, %187 : vector<16x1xf32>
    %189 = vector.broadcast %188 : vector<16x1xf32> to vector<16x32xf32>
    %190 = arith.subf %184, %189 : vector<16x32xf32>
    %191 = arith.mulf %190, %190 : vector<16x32xf32>
    %cst_61 = arith.constant dense<0.000000e+00> : vector<16xf32>
    %192 = vector.multi_reduction <add>, %191, %cst_61 [1] : vector<16x32xf32> to vector<16xf32>
    %193 = vector.shape_cast %192 : vector<16xf32> to vector<16x1xf32>
    %cst_62 = arith.constant 3.200000e+01 : f32
    %194 = vector.broadcast %cst_62 : f32 to vector<16x1xf32>
    %195 = arith.divf %193, %194 : vector<16x1xf32>
    %196 = vector.broadcast %188 : vector<16x1xf32> to vector<16x32xf32>
    %197 = arith.subf %184, %196 : vector<16x32xf32>
    %cst_63 = arith.constant 9.99999974E-6 : f32
    %198 = vector.broadcast %cst_63 : f32 to vector<16x1xf32>
    %199 = arith.addf %195, %198 : vector<16x1xf32>
    %200 = math.rsqrt %199 : vector<16x1xf32>
    %201 = vector.broadcast %200 : vector<16x1xf32> to vector<16x32xf32>
    %202 = arith.mulf %197, %201 : vector<16x32xf32>
    %203 = vector.broadcast %32 : vector<1x32xf32> to vector<16x32xf32>
    %204 = arith.mulf %202, %203 : vector<16x32xf32>
    %205 = vector.broadcast %33 : vector<1x32xf32> to vector<16x32xf32>
    %206 = arith.addf %204, %205 : vector<16x32xf32>
    %cst_64 = arith.constant dense<0.000000e+00> : vector<16x64xf32>
    %207 = tpu.matmul %206, %28, %cst_64 {dimension_numbers = #tpu.dot_dimension_numbers<[1], [0], [0], [1], [0, 0, 1, 1], [], []>} : vector<16x32xf32>, vector<32x64xf32>, vector<16x64xf32> -> vector<16x64xf32>
    %208 = vector.broadcast %34 : vector<1x64xf32> to vector<16x64xf32>
    %209 = arith.addf %207, %208 : vector<16x64xf32>
    %cst_65 = arith.constant 0.000000e+00 : f32
    %210 = vector.broadcast %cst_65 : f32 to vector<16x64xf32>
    %211 = arith.maximumf %209, %210 : vector<16x64xf32>
    %cst_66 = arith.constant dense<0.000000e+00> : vector<16x32xf32>
    %212 = tpu.matmul %211, %29, %cst_66 {dimension_numbers = #tpu.dot_dimension_numbers<[1], [0], [0], [1], [0, 0, 1, 1], [], []>} : vector<16x64xf32>, vector<64x32xf32>, vector<16x32xf32> -> vector<16x32xf32>
    %213 = vector.broadcast %35 : vector<1x32xf32> to vector<16x32xf32>
    %214 = arith.addf %212, %213 : vector<16x32xf32>
    %215 = arith.addf %206, %214 : vector<16x32xf32>
    %cst_67 = arith.constant dense<0.000000e+00> : vector<16xf32>
    %216 = vector.multi_reduction <add>, %215, %cst_67 [1] : vector<16x32xf32> to vector<16xf32>
    %217 = vector.shape_cast %216 : vector<16xf32> to vector<16x1xf32>
    %cst_68 = arith.constant 3.200000e+01 : f32
    %218 = vector.broadcast %cst_68 : f32 to vector<16x1xf32>
    %219 = arith.divf %217, %218 : vector<16x1xf32>
    %220 = vector.broadcast %219 : vector<16x1xf32> to vector<16x32xf32>
    %221 = arith.subf %215, %220 : vector<16x32xf32>
    %222 = arith.mulf %221, %221 : vector<16x32xf32>
    %cst_69 = arith.constant dense<0.000000e+00> : vector<16xf32>
    %223 = vector.multi_reduction <add>, %222, %cst_69 [1] : vector<16x32xf32> to vector<16xf32>
    %224 = vector.shape_cast %223 : vector<16xf32> to vector<16x1xf32>
    %cst_70 = arith.constant 3.200000e+01 : f32
    %225 = vector.broadcast %cst_70 : f32 to vector<16x1xf32>
    %226 = arith.divf %224, %225 : vector<16x1xf32>
    %227 = vector.broadcast %219 : vector<16x1xf32> to vector<16x32xf32>
    %228 = arith.subf %215, %227 : vector<16x32xf32>
    %cst_71 = arith.constant 9.99999974E-6 : f32
    %229 = vector.broadcast %cst_71 : f32 to vector<16x1xf32>
    %230 = arith.addf %226, %229 : vector<16x1xf32>
    %231 = math.rsqrt %230 : vector<16x1xf32>
    %232 = vector.broadcast %231 : vector<16x1xf32> to vector<16x32xf32>
    %233 = arith.mulf %228, %232 : vector<16x32xf32>
    %234 = vector.broadcast %36 : vector<1x32xf32> to vector<16x32xf32>
    %235 = arith.mulf %233, %234 : vector<16x32xf32>
    %236 = vector.broadcast %37 : vector<1x32xf32> to vector<16x32xf32>
    %237 = arith.addf %235, %236 : vector<16x32xf32>
    %c0_72 = arith.constant 0 : index
    %c0_73 = arith.constant 0 : index
    %238 = vector.load %arg8[%c0_72, %c0_73] : memref<32x96xf32, #tpu.memory_space<vmem>>, vector<32x96xf32>
    %c0_74 = arith.constant 0 : index
    %c0_75 = arith.constant 0 : index
    %239 = vector.load %arg9[%c0_74, %c0_75] : memref<32x32xf32, #tpu.memory_space<vmem>>, vector<32x32xf32>
    %c0_76 = arith.constant 0 : index
    %c0_77 = arith.constant 0 : index
    %240 = vector.load %arg10[%c0_76, %c0_77] : memref<32x64xf32, #tpu.memory_space<vmem>>, vector<32x64xf32>
    %c0_78 = arith.constant 0 : index
    %c0_79 = arith.constant 0 : index
    %241 = vector.load %arg11[%c0_78, %c0_79] : memref<64x32xf32, #tpu.memory_space<vmem>>, vector<64x32xf32>
    %c11 = arith.constant 11 : index
    %c0_80 = arith.constant 0 : index
    %242 = vector.load %arg2[%c11, %c0_80] : memref<19x128xf32, #tpu.memory_space<vmem>>, vector<1x96xf32>
    %c12 = arith.constant 12 : index
    %c0_81 = arith.constant 0 : index
    %243 = vector.load %arg2[%c12, %c0_81] : memref<19x128xf32, #tpu.memory_space<vmem>>, vector<1x32xf32>
    %c13 = arith.constant 13 : index
    %c0_82 = arith.constant 0 : index
    %244 = vector.load %arg2[%c13, %c0_82] : memref<19x128xf32, #tpu.memory_space<vmem>>, vector<1x32xf32>
    %c14 = arith.constant 14 : index
    %c0_83 = arith.constant 0 : index
    %245 = vector.load %arg2[%c14, %c0_83] : memref<19x128xf32, #tpu.memory_space<vmem>>, vector<1x32xf32>
    %c15 = arith.constant 15 : index
    %c0_84 = arith.constant 0 : index
    %246 = vector.load %arg2[%c15, %c0_84] : memref<19x128xf32, #tpu.memory_space<vmem>>, vector<1x64xf32>
    %c16 = arith.constant 16 : index
    %c0_85 = arith.constant 0 : index
    %247 = vector.load %arg2[%c16, %c0_85] : memref<19x128xf32, #tpu.memory_space<vmem>>, vector<1x32xf32>
    %c17 = arith.constant 17 : index
    %c0_86 = arith.constant 0 : index
    %248 = vector.load %arg2[%c17, %c0_86] : memref<19x128xf32, #tpu.memory_space<vmem>>, vector<1x32xf32>
    %c18 = arith.constant 18 : index
    %c0_87 = arith.constant 0 : index
    %249 = vector.load %arg2[%c18, %c0_87] : memref<19x128xf32, #tpu.memory_space<vmem>>, vector<1x32xf32>
    %cst_88 = arith.constant dense<0.000000e+00> : vector<16x96xf32>
    %250 = tpu.matmul %237, %238, %cst_88 {dimension_numbers = #tpu.dot_dimension_numbers<[1], [0], [0], [1], [0, 0, 1, 1], [], []>} : vector<16x32xf32>, vector<32x96xf32>, vector<16x96xf32> -> vector<16x96xf32>
    %251 = vector.broadcast %242 : vector<1x96xf32> to vector<16x96xf32>
    %252 = arith.addf %250, %251 : vector<16x96xf32>
    %253 = vector.extract_strided_slice %252 {offsets = [0, 0], sizes = [16, 32], strides = [1, 1]} : vector<16x96xf32> to vector<16x32xf32>
    %254 = vector.extract_strided_slice %252 {offsets = [0, 32], sizes = [16, 32], strides = [1, 1]} : vector<16x96xf32> to vector<16x32xf32>
    %255 = vector.extract_strided_slice %252 {offsets = [0, 64], sizes = [16, 32], strides = [1, 1]} : vector<16x96xf32> to vector<16x32xf32>
    %256 = vector.extract_strided_slice %253 {offsets = [0, 0], sizes = [8, 32], strides = [1, 1]} : vector<16x32xf32> to vector<8x32xf32>
    %257 = vector.extract_strided_slice %254 {offsets = [0, 0], sizes = [8, 32], strides = [1, 1]} : vector<16x32xf32> to vector<8x32xf32>
    %258 = vector.extract_strided_slice %255 {offsets = [0, 0], sizes = [8, 32], strides = [1, 1]} : vector<16x32xf32> to vector<8x32xf32>
    %259 = vector.extract_strided_slice %256 {offsets = [0, 0], sizes = [8, 8], strides = [1, 1]} : vector<8x32xf32> to vector<8x8xf32>
    %260 = vector.extract_strided_slice %257 {offsets = [0, 0], sizes = [8, 8], strides = [1, 1]} : vector<8x32xf32> to vector<8x8xf32>
    %261 = vector.extract_strided_slice %258 {offsets = [0, 0], sizes = [8, 8], strides = [1, 1]} : vector<8x32xf32> to vector<8x8xf32>
    %262 = tpu.transpose %260, [1, 0] : vector<8x8xf32> -> vector<8x8xf32>
    %cst_89 = arith.constant dense<0.000000e+00> : vector<8x8xf32>
    %263 = tpu.matmul %259, %262, %cst_89 {dimension_numbers = #tpu.dot_dimension_numbers<[1], [0], [0], [1], [0, 0, 1, 1], [], []>} : vector<8x8xf32>, vector<8x8xf32>, vector<8x8xf32> -> vector<8x8xf32>
    %cst_90 = arith.constant dense<0xFF800000> : vector<8xf32>
    %264 = vector.multi_reduction <maximumf>, %263, %cst_90 [1] : vector<8x8xf32> to vector<8xf32>
    %265 = vector.shape_cast %264 : vector<8xf32> to vector<8x1xf32>
    %266 = vector.broadcast %265 : vector<8x1xf32> to vector<8x8xf32>
    %267 = arith.subf %263, %266 : vector<8x8xf32>
    %268 = math.exp %267 : vector<8x8xf32>
    %cst_91 = arith.constant dense<0.000000e+00> : vector<8xf32>
    %269 = vector.multi_reduction <add>, %268, %cst_91 [1] : vector<8x8xf32> to vector<8xf32>
    %270 = vector.shape_cast %269 : vector<8xf32> to vector<8x1xf32>
    %271 = tpu.reciprocal %270 : vector<8x1xf32> -> vector<8x1xf32>
    %272 = vector.broadcast %271 : vector<8x1xf32> to vector<8x8xf32>
    %273 = arith.mulf %268, %272 : vector<8x8xf32>
    %cst_92 = arith.constant dense<0.000000e+00> : vector<8x8xf32>
    %274 = tpu.matmul %273, %261, %cst_92 {dimension_numbers = #tpu.dot_dimension_numbers<[1], [0], [0], [1], [0, 0, 1, 1], [], []>} : vector<8x8xf32>, vector<8x8xf32>, vector<8x8xf32> -> vector<8x8xf32>
    %275 = vector.extract_strided_slice %256 {offsets = [0, 8], sizes = [8, 8], strides = [1, 1]} : vector<8x32xf32> to vector<8x8xf32>
    %276 = vector.extract_strided_slice %257 {offsets = [0, 8], sizes = [8, 8], strides = [1, 1]} : vector<8x32xf32> to vector<8x8xf32>
    %277 = vector.extract_strided_slice %258 {offsets = [0, 8], sizes = [8, 8], strides = [1, 1]} : vector<8x32xf32> to vector<8x8xf32>
    %278 = tpu.transpose %276, [1, 0] : vector<8x8xf32> -> vector<8x8xf32>
    %cst_93 = arith.constant dense<0.000000e+00> : vector<8x8xf32>
    %279 = tpu.matmul %275, %278, %cst_93 {dimension_numbers = #tpu.dot_dimension_numbers<[1], [0], [0], [1], [0, 0, 1, 1], [], []>} : vector<8x8xf32>, vector<8x8xf32>, vector<8x8xf32> -> vector<8x8xf32>
    %cst_94 = arith.constant dense<0xFF800000> : vector<8xf32>
    %280 = vector.multi_reduction <maximumf>, %279, %cst_94 [1] : vector<8x8xf32> to vector<8xf32>
    %281 = vector.shape_cast %280 : vector<8xf32> to vector<8x1xf32>
    %282 = vector.broadcast %281 : vector<8x1xf32> to vector<8x8xf32>
    %283 = arith.subf %279, %282 : vector<8x8xf32>
    %284 = math.exp %283 : vector<8x8xf32>
    %cst_95 = arith.constant dense<0.000000e+00> : vector<8xf32>
    %285 = vector.multi_reduction <add>, %284, %cst_95 [1] : vector<8x8xf32> to vector<8xf32>
    %286 = vector.shape_cast %285 : vector<8xf32> to vector<8x1xf32>
    %287 = tpu.reciprocal %286 : vector<8x1xf32> -> vector<8x1xf32>
    %288 = vector.broadcast %287 : vector<8x1xf32> to vector<8x8xf32>
    %289 = arith.mulf %284, %288 : vector<8x8xf32>
    %cst_96 = arith.constant dense<0.000000e+00> : vector<8x8xf32>
    %290 = tpu.matmul %289, %277, %cst_96 {dimension_numbers = #tpu.dot_dimension_numbers<[1], [0], [0], [1], [0, 0, 1, 1], [], []>} : vector<8x8xf32>, vector<8x8xf32>, vector<8x8xf32> -> vector<8x8xf32>
    %291 = vector.extract_strided_slice %256 {offsets = [0, 16], sizes = [8, 8], strides = [1, 1]} : vector<8x32xf32> to vector<8x8xf32>
    %292 = vector.extract_strided_slice %257 {offsets = [0, 16], sizes = [8, 8], strides = [1, 1]} : vector<8x32xf32> to vector<8x8xf32>
    %293 = vector.extract_strided_slice %258 {offsets = [0, 16], sizes = [8, 8], strides = [1, 1]} : vector<8x32xf32> to vector<8x8xf32>
    %294 = tpu.transpose %292, [1, 0] : vector<8x8xf32> -> vector<8x8xf32>
    %cst_97 = arith.constant dense<0.000000e+00> : vector<8x8xf32>
    %295 = tpu.matmul %291, %294, %cst_97 {dimension_numbers = #tpu.dot_dimension_numbers<[1], [0], [0], [1], [0, 0, 1, 1], [], []>} : vector<8x8xf32>, vector<8x8xf32>, vector<8x8xf32> -> vector<8x8xf32>
    %cst_98 = arith.constant dense<0xFF800000> : vector<8xf32>
    %296 = vector.multi_reduction <maximumf>, %295, %cst_98 [1] : vector<8x8xf32> to vector<8xf32>
    %297 = vector.shape_cast %296 : vector<8xf32> to vector<8x1xf32>
    %298 = vector.broadcast %297 : vector<8x1xf32> to vector<8x8xf32>
    %299 = arith.subf %295, %298 : vector<8x8xf32>
    %300 = math.exp %299 : vector<8x8xf32>
    %cst_99 = arith.constant dense<0.000000e+00> : vector<8xf32>
    %301 = vector.multi_reduction <add>, %300, %cst_99 [1] : vector<8x8xf32> to vector<8xf32>
    %302 = vector.shape_cast %301 : vector<8xf32> to vector<8x1xf32>
    %303 = tpu.reciprocal %302 : vector<8x1xf32> -> vector<8x1xf32>
    %304 = vector.broadcast %303 : vector<8x1xf32> to vector<8x8xf32>
    %305 = arith.mulf %300, %304 : vector<8x8xf32>
    %cst_100 = arith.constant dense<0.000000e+00> : vector<8x8xf32>
    %306 = tpu.matmul %305, %293, %cst_100 {dimension_numbers = #tpu.dot_dimension_numbers<[1], [0], [0], [1], [0, 0, 1, 1], [], []>} : vector<8x8xf32>, vector<8x8xf32>, vector<8x8xf32> -> vector<8x8xf32>
    %307 = vector.extract_strided_slice %256 {offsets = [0, 24], sizes = [8, 8], strides = [1, 1]} : vector<8x32xf32> to vector<8x8xf32>
    %308 = vector.extract_strided_slice %257 {offsets = [0, 24], sizes = [8, 8], strides = [1, 1]} : vector<8x32xf32> to vector<8x8xf32>
    %309 = vector.extract_strided_slice %258 {offsets = [0, 24], sizes = [8, 8], strides = [1, 1]} : vector<8x32xf32> to vector<8x8xf32>
    %310 = tpu.transpose %308, [1, 0] : vector<8x8xf32> -> vector<8x8xf32>
    %cst_101 = arith.constant dense<0.000000e+00> : vector<8x8xf32>
    %311 = tpu.matmul %307, %310, %cst_101 {dimension_numbers = #tpu.dot_dimension_numbers<[1], [0], [0], [1], [0, 0, 1, 1], [], []>} : vector<8x8xf32>, vector<8x8xf32>, vector<8x8xf32> -> vector<8x8xf32>
    %cst_102 = arith.constant dense<0xFF800000> : vector<8xf32>
    %312 = vector.multi_reduction <maximumf>, %311, %cst_102 [1] : vector<8x8xf32> to vector<8xf32>
    %313 = vector.shape_cast %312 : vector<8xf32> to vector<8x1xf32>
    %314 = vector.broadcast %313 : vector<8x1xf32> to vector<8x8xf32>
    %315 = arith.subf %311, %314 : vector<8x8xf32>
    %316 = math.exp %315 : vector<8x8xf32>
    %cst_103 = arith.constant dense<0.000000e+00> : vector<8xf32>
    %317 = vector.multi_reduction <add>, %316, %cst_103 [1] : vector<8x8xf32> to vector<8xf32>
    %318 = vector.shape_cast %317 : vector<8xf32> to vector<8x1xf32>
    %319 = tpu.reciprocal %318 : vector<8x1xf32> -> vector<8x1xf32>
    %320 = vector.broadcast %319 : vector<8x1xf32> to vector<8x8xf32>
    %321 = arith.mulf %316, %320 : vector<8x8xf32>
    %cst_104 = arith.constant dense<0.000000e+00> : vector<8x8xf32>
    %322 = tpu.matmul %321, %309, %cst_104 {dimension_numbers = #tpu.dot_dimension_numbers<[1], [0], [0], [1], [0, 0, 1, 1], [], []>} : vector<8x8xf32>, vector<8x8xf32>, vector<8x8xf32> -> vector<8x8xf32>
    %323 = tpu.concatenate %274, %290, %306, %322 in 1 : vector<8x8xf32>, vector<8x8xf32>, vector<8x8xf32>, vector<8x8xf32> -> vector<8x32xf32>
    %324 = vector.extract_strided_slice %253 {offsets = [8, 0], sizes = [8, 32], strides = [1, 1]} : vector<16x32xf32> to vector<8x32xf32>
    %325 = vector.extract_strided_slice %254 {offsets = [8, 0], sizes = [8, 32], strides = [1, 1]} : vector<16x32xf32> to vector<8x32xf32>
    %326 = vector.extract_strided_slice %255 {offsets = [8, 0], sizes = [8, 32], strides = [1, 1]} : vector<16x32xf32> to vector<8x32xf32>
    %327 = vector.extract_strided_slice %324 {offsets = [0, 0], sizes = [8, 8], strides = [1, 1]} : vector<8x32xf32> to vector<8x8xf32>
    %328 = vector.extract_strided_slice %325 {offsets = [0, 0], sizes = [8, 8], strides = [1, 1]} : vector<8x32xf32> to vector<8x8xf32>
    %329 = vector.extract_strided_slice %326 {offsets = [0, 0], sizes = [8, 8], strides = [1, 1]} : vector<8x32xf32> to vector<8x8xf32>
    %330 = tpu.transpose %328, [1, 0] : vector<8x8xf32> -> vector<8x8xf32>
    %cst_105 = arith.constant dense<0.000000e+00> : vector<8x8xf32>
    %331 = tpu.matmul %327, %330, %cst_105 {dimension_numbers = #tpu.dot_dimension_numbers<[1], [0], [0], [1], [0, 0, 1, 1], [], []>} : vector<8x8xf32>, vector<8x8xf32>, vector<8x8xf32> -> vector<8x8xf32>
    %cst_106 = arith.constant dense<0xFF800000> : vector<8xf32>
    %332 = vector.multi_reduction <maximumf>, %331, %cst_106 [1] : vector<8x8xf32> to vector<8xf32>
    %333 = vector.shape_cast %332 : vector<8xf32> to vector<8x1xf32>
    %334 = vector.broadcast %333 : vector<8x1xf32> to vector<8x8xf32>
    %335 = arith.subf %331, %334 : vector<8x8xf32>
    %336 = math.exp %335 : vector<8x8xf32>
    %cst_107 = arith.constant dense<0.000000e+00> : vector<8xf32>
    %337 = vector.multi_reduction <add>, %336, %cst_107 [1] : vector<8x8xf32> to vector<8xf32>
    %338 = vector.shape_cast %337 : vector<8xf32> to vector<8x1xf32>
    %339 = tpu.reciprocal %338 : vector<8x1xf32> -> vector<8x1xf32>
    %340 = vector.broadcast %339 : vector<8x1xf32> to vector<8x8xf32>
    %341 = arith.mulf %336, %340 : vector<8x8xf32>
    %cst_108 = arith.constant dense<0.000000e+00> : vector<8x8xf32>
    %342 = tpu.matmul %341, %329, %cst_108 {dimension_numbers = #tpu.dot_dimension_numbers<[1], [0], [0], [1], [0, 0, 1, 1], [], []>} : vector<8x8xf32>, vector<8x8xf32>, vector<8x8xf32> -> vector<8x8xf32>
    %343 = vector.extract_strided_slice %324 {offsets = [0, 8], sizes = [8, 8], strides = [1, 1]} : vector<8x32xf32> to vector<8x8xf32>
    %344 = vector.extract_strided_slice %325 {offsets = [0, 8], sizes = [8, 8], strides = [1, 1]} : vector<8x32xf32> to vector<8x8xf32>
    %345 = vector.extract_strided_slice %326 {offsets = [0, 8], sizes = [8, 8], strides = [1, 1]} : vector<8x32xf32> to vector<8x8xf32>
    %346 = tpu.transpose %344, [1, 0] : vector<8x8xf32> -> vector<8x8xf32>
    %cst_109 = arith.constant dense<0.000000e+00> : vector<8x8xf32>
    %347 = tpu.matmul %343, %346, %cst_109 {dimension_numbers = #tpu.dot_dimension_numbers<[1], [0], [0], [1], [0, 0, 1, 1], [], []>} : vector<8x8xf32>, vector<8x8xf32>, vector<8x8xf32> -> vector<8x8xf32>
    %cst_110 = arith.constant dense<0xFF800000> : vector<8xf32>
    %348 = vector.multi_reduction <maximumf>, %347, %cst_110 [1] : vector<8x8xf32> to vector<8xf32>
    %349 = vector.shape_cast %348 : vector<8xf32> to vector<8x1xf32>
    %350 = vector.broadcast %349 : vector<8x1xf32> to vector<8x8xf32>
    %351 = arith.subf %347, %350 : vector<8x8xf32>
    %352 = math.exp %351 : vector<8x8xf32>
    %cst_111 = arith.constant dense<0.000000e+00> : vector<8xf32>
    %353 = vector.multi_reduction <add>, %352, %cst_111 [1] : vector<8x8xf32> to vector<8xf32>
    %354 = vector.shape_cast %353 : vector<8xf32> to vector<8x1xf32>
    %355 = tpu.reciprocal %354 : vector<8x1xf32> -> vector<8x1xf32>
    %356 = vector.broadcast %355 : vector<8x1xf32> to vector<8x8xf32>
    %357 = arith.mulf %352, %356 : vector<8x8xf32>
    %cst_112 = arith.constant dense<0.000000e+00> : vector<8x8xf32>
    %358 = tpu.matmul %357, %345, %cst_112 {dimension_numbers = #tpu.dot_dimension_numbers<[1], [0], [0], [1], [0, 0, 1, 1], [], []>} : vector<8x8xf32>, vector<8x8xf32>, vector<8x8xf32> -> vector<8x8xf32>
    %359 = vector.extract_strided_slice %324 {offsets = [0, 16], sizes = [8, 8], strides = [1, 1]} : vector<8x32xf32> to vector<8x8xf32>
    %360 = vector.extract_strided_slice %325 {offsets = [0, 16], sizes = [8, 8], strides = [1, 1]} : vector<8x32xf32> to vector<8x8xf32>
    %361 = vector.extract_strided_slice %326 {offsets = [0, 16], sizes = [8, 8], strides = [1, 1]} : vector<8x32xf32> to vector<8x8xf32>
    %362 = tpu.transpose %360, [1, 0] : vector<8x8xf32> -> vector<8x8xf32>
    %cst_113 = arith.constant dense<0.000000e+00> : vector<8x8xf32>
    %363 = tpu.matmul %359, %362, %cst_113 {dimension_numbers = #tpu.dot_dimension_numbers<[1], [0], [0], [1], [0, 0, 1, 1], [], []>} : vector<8x8xf32>, vector<8x8xf32>, vector<8x8xf32> -> vector<8x8xf32>
    %cst_114 = arith.constant dense<0xFF800000> : vector<8xf32>
    %364 = vector.multi_reduction <maximumf>, %363, %cst_114 [1] : vector<8x8xf32> to vector<8xf32>
    %365 = vector.shape_cast %364 : vector<8xf32> to vector<8x1xf32>
    %366 = vector.broadcast %365 : vector<8x1xf32> to vector<8x8xf32>
    %367 = arith.subf %363, %366 : vector<8x8xf32>
    %368 = math.exp %367 : vector<8x8xf32>
    %cst_115 = arith.constant dense<0.000000e+00> : vector<8xf32>
    %369 = vector.multi_reduction <add>, %368, %cst_115 [1] : vector<8x8xf32> to vector<8xf32>
    %370 = vector.shape_cast %369 : vector<8xf32> to vector<8x1xf32>
    %371 = tpu.reciprocal %370 : vector<8x1xf32> -> vector<8x1xf32>
    %372 = vector.broadcast %371 : vector<8x1xf32> to vector<8x8xf32>
    %373 = arith.mulf %368, %372 : vector<8x8xf32>
    %cst_116 = arith.constant dense<0.000000e+00> : vector<8x8xf32>
    %374 = tpu.matmul %373, %361, %cst_116 {dimension_numbers = #tpu.dot_dimension_numbers<[1], [0], [0], [1], [0, 0, 1, 1], [], []>} : vector<8x8xf32>, vector<8x8xf32>, vector<8x8xf32> -> vector<8x8xf32>
    %375 = vector.extract_strided_slice %324 {offsets = [0, 24], sizes = [8, 8], strides = [1, 1]} : vector<8x32xf32> to vector<8x8xf32>
    %376 = vector.extract_strided_slice %325 {offsets = [0, 24], sizes = [8, 8], strides = [1, 1]} : vector<8x32xf32> to vector<8x8xf32>
    %377 = vector.extract_strided_slice %326 {offsets = [0, 24], sizes = [8, 8], strides = [1, 1]} : vector<8x32xf32> to vector<8x8xf32>
    %378 = tpu.transpose %376, [1, 0] : vector<8x8xf32> -> vector<8x8xf32>
    %cst_117 = arith.constant dense<0.000000e+00> : vector<8x8xf32>
    %379 = tpu.matmul %375, %378, %cst_117 {dimension_numbers = #tpu.dot_dimension_numbers<[1], [0], [0], [1], [0, 0, 1, 1], [], []>} : vector<8x8xf32>, vector<8x8xf32>, vector<8x8xf32> -> vector<8x8xf32>
    %cst_118 = arith.constant dense<0xFF800000> : vector<8xf32>
    %380 = vector.multi_reduction <maximumf>, %379, %cst_118 [1] : vector<8x8xf32> to vector<8xf32>
    %381 = vector.shape_cast %380 : vector<8xf32> to vector<8x1xf32>
    %382 = vector.broadcast %381 : vector<8x1xf32> to vector<8x8xf32>
    %383 = arith.subf %379, %382 : vector<8x8xf32>
    %384 = math.exp %383 : vector<8x8xf32>
    %cst_119 = arith.constant dense<0.000000e+00> : vector<8xf32>
    %385 = vector.multi_reduction <add>, %384, %cst_119 [1] : vector<8x8xf32> to vector<8xf32>
    %386 = vector.shape_cast %385 : vector<8xf32> to vector<8x1xf32>
    %387 = tpu.reciprocal %386 : vector<8x1xf32> -> vector<8x1xf32>
    %388 = vector.broadcast %387 : vector<8x1xf32> to vector<8x8xf32>
    %389 = arith.mulf %384, %388 : vector<8x8xf32>
    %cst_120 = arith.constant dense<0.000000e+00> : vector<8x8xf32>
    %390 = tpu.matmul %389, %377, %cst_120 {dimension_numbers = #tpu.dot_dimension_numbers<[1], [0], [0], [1], [0, 0, 1, 1], [], []>} : vector<8x8xf32>, vector<8x8xf32>, vector<8x8xf32> -> vector<8x8xf32>
    %391 = tpu.concatenate %342, %358, %374, %390 in 1 : vector<8x8xf32>, vector<8x8xf32>, vector<8x8xf32>, vector<8x8xf32> -> vector<8x32xf32>
    %392 = tpu.concatenate %323, %391 in 0 : vector<8x32xf32>, vector<8x32xf32> -> vector<16x32xf32>
    %cst_121 = arith.constant dense<0.000000e+00> : vector<16x32xf32>
    %393 = tpu.matmul %392, %239, %cst_121 {dimension_numbers = #tpu.dot_dimension_numbers<[1], [0], [0], [1], [0, 0, 1, 1], [], []>} : vector<16x32xf32>, vector<32x32xf32>, vector<16x32xf32> -> vector<16x32xf32>
    %394 = vector.broadcast %243 : vector<1x32xf32> to vector<16x32xf32>
    %395 = arith.addf %393, %394 : vector<16x32xf32>
    %396 = arith.addf %237, %395 : vector<16x32xf32>
    %cst_122 = arith.constant dense<0.000000e+00> : vector<16xf32>
    %397 = vector.multi_reduction <add>, %396, %cst_122 [1] : vector<16x32xf32> to vector<16xf32>
    %398 = vector.shape_cast %397 : vector<16xf32> to vector<16x1xf32>
    %cst_123 = arith.constant 3.200000e+01 : f32
    %399 = vector.broadcast %cst_123 : f32 to vector<16x1xf32>
    %400 = arith.divf %398, %399 : vector<16x1xf32>
    %401 = vector.broadcast %400 : vector<16x1xf32> to vector<16x32xf32>
    %402 = arith.subf %396, %401 : vector<16x32xf32>
    %403 = arith.mulf %402, %402 : vector<16x32xf32>
    %cst_124 = arith.constant dense<0.000000e+00> : vector<16xf32>
    %404 = vector.multi_reduction <add>, %403, %cst_124 [1] : vector<16x32xf32> to vector<16xf32>
    %405 = vector.shape_cast %404 : vector<16xf32> to vector<16x1xf32>
    %cst_125 = arith.constant 3.200000e+01 : f32
    %406 = vector.broadcast %cst_125 : f32 to vector<16x1xf32>
    %407 = arith.divf %405, %406 : vector<16x1xf32>
    %408 = vector.broadcast %400 : vector<16x1xf32> to vector<16x32xf32>
    %409 = arith.subf %396, %408 : vector<16x32xf32>
    %cst_126 = arith.constant 9.99999974E-6 : f32
    %410 = vector.broadcast %cst_126 : f32 to vector<16x1xf32>
    %411 = arith.addf %407, %410 : vector<16x1xf32>
    %412 = math.rsqrt %411 : vector<16x1xf32>
    %413 = vector.broadcast %412 : vector<16x1xf32> to vector<16x32xf32>
    %414 = arith.mulf %409, %413 : vector<16x32xf32>
    %415 = vector.broadcast %244 : vector<1x32xf32> to vector<16x32xf32>
    %416 = arith.mulf %414, %415 : vector<16x32xf32>
    %417 = vector.broadcast %245 : vector<1x32xf32> to vector<16x32xf32>
    %418 = arith.addf %416, %417 : vector<16x32xf32>
    %cst_127 = arith.constant dense<0.000000e+00> : vector<16x64xf32>
    %419 = tpu.matmul %418, %240, %cst_127 {dimension_numbers = #tpu.dot_dimension_numbers<[1], [0], [0], [1], [0, 0, 1, 1], [], []>} : vector<16x32xf32>, vector<32x64xf32>, vector<16x64xf32> -> vector<16x64xf32>
    %420 = vector.broadcast %246 : vector<1x64xf32> to vector<16x64xf32>
    %421 = arith.addf %419, %420 : vector<16x64xf32>
    %cst_128 = arith.constant 0.000000e+00 : f32
    %422 = vector.broadcast %cst_128 : f32 to vector<16x64xf32>
    %423 = arith.maximumf %421, %422 : vector<16x64xf32>
    %cst_129 = arith.constant dense<0.000000e+00> : vector<16x32xf32>
    %424 = tpu.matmul %423, %241, %cst_129 {dimension_numbers = #tpu.dot_dimension_numbers<[1], [0], [0], [1], [0, 0, 1, 1], [], []>} : vector<16x64xf32>, vector<64x32xf32>, vector<16x32xf32> -> vector<16x32xf32>
    %425 = vector.broadcast %247 : vector<1x32xf32> to vector<16x32xf32>
    %426 = arith.addf %424, %425 : vector<16x32xf32>
    %427 = arith.addf %418, %426 : vector<16x32xf32>
    %cst_130 = arith.constant dense<0.000000e+00> : vector<16xf32>
    %428 = vector.multi_reduction <add>, %427, %cst_130 [1] : vector<16x32xf32> to vector<16xf32>
    %429 = vector.shape_cast %428 : vector<16xf32> to vector<16x1xf32>
    %cst_131 = arith.constant 3.200000e+01 : f32
    %430 = vector.broadcast %cst_131 : f32 to vector<16x1xf32>
    %431 = arith.divf %429, %430 : vector<16x1xf32>
    %432 = vector.broadcast %431 : vector<16x1xf32> to vector<16x32xf32>
    %433 = arith.subf %427, %432 : vector<16x32xf32>
    %434 = arith.mulf %433, %433 : vector<16x32xf32>
    %cst_132 = arith.constant dense<0.000000e+00> : vector<16xf32>
    %435 = vector.multi_reduction <add>, %434, %cst_132 [1] : vector<16x32xf32> to vector<16xf32>
    %436 = vector.shape_cast %435 : vector<16xf32> to vector<16x1xf32>
    %cst_133 = arith.constant 3.200000e+01 : f32
    %437 = vector.broadcast %cst_133 : f32 to vector<16x1xf32>
    %438 = arith.divf %436, %437 : vector<16x1xf32>
    %439 = vector.broadcast %431 : vector<16x1xf32> to vector<16x32xf32>
    %440 = arith.subf %427, %439 : vector<16x32xf32>
    %cst_134 = arith.constant 9.99999974E-6 : f32
    %441 = vector.broadcast %cst_134 : f32 to vector<16x1xf32>
    %442 = arith.addf %438, %441 : vector<16x1xf32>
    %443 = math.rsqrt %442 : vector<16x1xf32>
    %444 = vector.broadcast %443 : vector<16x1xf32> to vector<16x32xf32>
    %445 = arith.mulf %440, %444 : vector<16x32xf32>
    %446 = vector.broadcast %248 : vector<1x32xf32> to vector<16x32xf32>
    %447 = arith.mulf %445, %446 : vector<16x32xf32>
    %448 = vector.broadcast %249 : vector<1x32xf32> to vector<16x32xf32>
    %449 = arith.addf %447, %448 : vector<16x32xf32>
    %c0_135 = arith.constant 0 : index
    %c0_136 = arith.constant 0 : index
    %450 = vector.load %arg3[%c0_135, %c0_136] : memref<32x32xf32, #tpu.memory_space<vmem>>, vector<32x32xf32>
    %cst_137 = arith.constant dense<0.000000e+00> : vector<16x32xf32>
    %451 = tpu.matmul %449, %450, %cst_137 {dimension_numbers = #tpu.dot_dimension_numbers<[1], [0], [0], [1], [0, 0, 1, 1], [], []>} : vector<16x32xf32>, vector<32x32xf32>, vector<16x32xf32> -> vector<16x32xf32>
    %c2 = arith.constant 2 : index
    %c0_138 = arith.constant 0 : index
    %452 = vector.load %arg2[%c2, %c0_138] : memref<19x128xf32, #tpu.memory_space<vmem>>, vector<1x32xf32>
    %453 = vector.broadcast %452 : vector<1x32xf32> to vector<16x32xf32>
    %454 = arith.addf %451, %453 : vector<16x32xf32>
    %455 = vector.shape_cast %454 : vector<16x32xf32> to vector<2x8x32xf32>
    %c0_139 = arith.constant 0 : index
    %c0_140 = arith.constant 0 : index
    %c0_141 = arith.constant 0 : index
    %456 = vector.load %arg12[%c0_139, %c0_140, %c0_141] : memref<2x8x32xf32, #tpu.memory_space<vmem>>, vector<2x8x32xf32>
    tpu.vector_store %arg12[%c0_139, %c0_140, %c0_141], %455 {strides = array<i32>} : memref<2x8x32xf32, #tpu.memory_space<vmem>>, vector<2x8x32xf32>,
    return
  }
  func.func @transform_0(%arg0: i32) -> (i32, i32, i32) {
    %c0_i32 = arith.constant 0 : i32
    %c0_i32_0 = arith.constant 0 : i32
    %c0_i32_1 = arith.constant 0 : i32
    return %arg0, %c0_i32, %c0_i32_0 : i32, i32, i32
  }
  func.func @transform_1(%arg0: i32) -> (i32, i32) {
    %c0_i32 = arith.constant 0 : i32
    %c0_i32_0 = arith.constant 0 : i32
    %c0_i32_1 = arith.constant 0 : i32
    return %c0_i32, %c0_i32_0 : i32, i32
  }
  func.func @transform_2(%arg0: i32) -> (i32, i32) {
    %c0_i32 = arith.constant 0 : i32
    %c0_i32_0 = arith.constant 0 : i32
    %c0_i32_1 = arith.constant 0 : i32
    return %c0_i32, %c0_i32_0 : i32, i32
  }
  func.func @transform_3(%arg0: i32) -> (i32, i32) {
    %c0_i32 = arith.constant 0 : i32
    %c0_i32_0 = arith.constant 0 : i32
    %c0_i32_1 = arith.constant 0 : i32
    return %c0_i32, %c0_i32_0 : i32, i32
  }
  func.func @transform_4(%arg0: i32) -> (i32, i32) {
    %c0_i32 = arith.constant 0 : i32
    %c0_i32_0 = arith.constant 0 : i32
    %c0_i32_1 = arith.constant 0 : i32
    return %c0_i32, %c0_i32_0 : i32, i32
  }
  func.func @transform_5(%arg0: i32) -> (i32, i32) {
    %c0_i32 = arith.constant 0 : i32
    %c0_i32_0 = arith.constant 0 : i32
    %c0_i32_1 = arith.constant 0 : i32
    return %c0_i32, %c0_i32_0 : i32, i32
  }
  func.func @transform_6(%arg0: i32) -> (i32, i32) {
    %c0_i32 = arith.constant 0 : i32
    %c0_i32_0 = arith.constant 0 : i32
    %c0_i32_1 = arith.constant 0 : i32
    return %c0_i32, %c0_i32_0 : i32, i32
  }
  func.func @transform_7(%arg0: i32) -> (i32, i32) {
    %c0_i32 = arith.constant 0 : i32
    %c0_i32_0 = arith.constant 0 : i32
    %c0_i32_1 = arith.constant 0 : i32
    return %c0_i32, %c0_i32_0 : i32, i32
  }
  func.func @transform_8(%arg0: i32) -> (i32, i32) {
    %c0_i32 = arith.constant 0 : i32
    %c0_i32_0 = arith.constant 0 : i32
    %c0_i32_1 = arith.constant 0 : i32
    return %c0_i32, %c0_i32_0 : i32, i32
  }
  func.func @transform_9(%arg0: i32) -> (i32, i32) {
    %c0_i32 = arith.constant 0 : i32
    %c0_i32_0 = arith.constant 0 : i32
    %c0_i32_1 = arith.constant 0 : i32
    return %c0_i32, %c0_i32_0 : i32, i32
  }
  func.func @transform_10(%arg0: i32) -> (i32, i32) {
    %c0_i32 = arith.constant 0 : i32
    %c0_i32_0 = arith.constant 0 : i32
    %c0_i32_1 = arith.constant 0 : i32
    return %c0_i32, %c0_i32_0 : i32, i32
  }
  func.func @transform_11(%arg0: i32) -> (i32, i32, i32) {
    %c0_i32 = arith.constant 0 : i32
    %c0_i32_0 = arith.constant 0 : i32
    %c0_i32_1 = arith.constant 0 : i32
    return %arg0, %c0_i32, %c0_i32_0 : i32, i32, i32
  }
}

</mosaic_0001>

<llo_original>
// kernel: tpu_custom_call.1
$region0: #{tpu_custom_call.1}
  #allocation0 [shape = 'u32[]', space=smem, size = 0x4, offset = 0x4, fixed_abs, tag = 'smem constant byte address 0x4 - core index']
  #allocation1 [shape = 'u32[144,128]{1,0:T(1,128)}', space=vmem, size = 0x12000, scoped, tag = 'internal scratch']
  %s0 = inlined_call_operand.hbm [shape: f32[2,8,32], index: 0, kind: input, shape index: {}]
  %s1 = inlined_call_operand.hbm [shape: f32[19,128], index: 1, kind: input, shape index: {}]
  %s2 = inlined_call_operand.vmem [shape: f32[32,32], index: 2, kind: input, shape index: {}]
  %s3 = inlined_call_operand.vmem [shape: f32[32,96], index: 3, kind: input, shape index: {}]
  %s4 = inlined_call_operand.vmem [shape: f32[32,32], index: 4, kind: input, shape index: {}]
  %s5 = inlined_call_operand.vmem [shape: f32[32,64], index: 5, kind: input, shape index: {}]
  %s6 = inlined_call_operand.vmem [shape: f32[64,32], index: 6, kind: input, shape index: {}]
  %s7 = inlined_call_operand.vmem [shape: f32[32,96], index: 7, kind: input, shape index: {}]
  %s8 = inlined_call_operand.hbm [shape: f32[32,32], index: 8, kind: input, shape index: {}]
  %s9 = inlined_call_operand.vmem [shape: f32[32,64], index: 9, kind: input, shape index: {}]
  %s10 = inlined_call_operand.vmem [shape: f32[64,32], index: 10, kind: input, shape index: {}]
  %s11 = inlined_call_operand.hbm [shape: f32[2,8,32], index: 11, kind: output, shape index: {}]
  %s12 = sld [smem:[#allocation0]]
  $region66: #{tpu_custom_call.1} parent=0
    _
  %s14 = ssub.s32 1, %s12
  %s15 = scalar_select 0, %s14, %s12
  $region1: #{tpu_custom_call.1} parent=0
    #allocation2 [shape = 'u8[8192]{0}', space=vmem, size = 0x2000, scoped, tag = 'input window, operand 0, single buffered']
    #allocation3 [shape = 's32[1]{0}', space=sflag, size = 0x4, scoped, tag = 'scoped memory for tpu_custom_call.1']
    #allocation4 [shape = 's32[1]{0}', space=sflag, size = 0x4, scoped, tag = 'scoped memory for tpu_custom_call.1']
    #allocation5 [shape = 'u8[12288]{0}', space=vmem, size = 0x3000, scoped, tag = 'input window, operand 1, single buffered']
    #allocation6 [shape = 's32[1]{0}', space=sflag, size = 0x4, scoped, tag = 'scoped memory for tpu_custom_call.1']
    #allocation7 [shape = 'u8[16384]{0}', space=vmem, size = 0x4000, scoped, tag = 'input window, operand 8, single buffered']
    #allocation8 [shape = 'u8[8192]{0}', space=vmem, size = 0x2000, scoped, tag = 'output window, operand 0, single buffered']
    %16 = vsyncpa [#allocation3], 0
    %17 = vsyncpa [#allocation6], 0
    %18 = vsyncpa [#allocation4], 0
    // Predicated region
    $region2: #{tpu_custom_call.1} parent=1 // pred_check
      _
    $region3: #{tpu_custom_call.1} parent=1 // pred_check_branch
      %20 = sbr.rel (0) target = $region5
    $region4: #{tpu_custom_call.1} parent=1 // pred_region
      %s22 = ssub.s32 256, 256
      %23 = vsyncadd [#allocation3], %s22
      %s24 = sshll.u32 [#allocation2], 4
      %s25 = int_to_ptr.vmem [resolvable:$true] %s24
      %30 = dma.hbm_to_vmem [thread:$0]  %s0, 256, %s25, [#allocation3], 128, 128, 8
    $region5: #{tpu_custom_call.1} parent=1 // pred_fallthru
      _
    // Predicated region
    $region6: #{tpu_custom_call.1} parent=1 // pred_check
      _
    $region7: #{tpu_custom_call.1} parent=1 // pred_check_branch
      %32 = sbr.rel (0) target = $region9
    $region8: #{tpu_custom_call.1} parent=1 // pred_region
      %s34 = ssub.s32 384, 384
      %35 = vsyncadd [#allocation6], %s34
      %s36 = sshll.u32 [#allocation5], 4
      %s37 = int_to_ptr.vmem [resolvable:$true] %s36
      %42 = dma.hbm_to_vmem [thread:$0]  %s1, 384, %s37, [#allocation6], 128, 128, 8
    $region9: #{tpu_custom_call.1} parent=1 // pred_fallthru
      _
    // Predicated region
    $region10: #{tpu_custom_call.1} parent=1 // pred_check
      _
    $region11: #{tpu_custom_call.1} parent=1 // pred_check_branch
      %44 = sbr.rel (0) target = $region13
    $region12: #{tpu_custom_call.1} parent=1 // pred_region
      _
    $region13: #{tpu_custom_call.1} parent=1 // pred_fallthru
      _
    // Predicated region
    $region14: #{tpu_custom_call.1} parent=1 // pred_check
      _
    $region15: #{tpu_custom_call.1} parent=1 // pred_check_branch
      %46 = sbr.rel (0) target = $region17
    $region16: #{tpu_custom_call.1} parent=1 // pred_region
      _
    $region17: #{tpu_custom_call.1} parent=1 // pred_fallthru
      _
    // Predicated region
    $region18: #{tpu_custom_call.1} parent=1 // pred_check
      _
    $region19: #{tpu_custom_call.1} parent=1 // pred_check_branch
      %48 = sbr.rel (0) target = $region21
    $region20: #{tpu_custom_call.1} parent=1 // pred_region
      _
    $region21: #{tpu_custom_call.1} parent=1 // pred_fallthru
      _
    // Predicated region
    $region22: #{tpu_custom_call.1} parent=1 // pred_check
      _
    $region23: #{tpu_custom_call.1} parent=1 // pred_check_branch
      %50 = sbr.rel (0) target = $region25
    $region24: #{tpu_custom_call.1} parent=1 // pred_region
      _
    $region25: #{tpu_custom_call.1} parent=1 // pred_fallthru
      _
    // Predicated region
    $region26: #{tpu_custom_call.1} parent=1 // pred_check
      _
    $region27: #{tpu_custom_call.1} parent=1 // pred_check_branch
      %52 = sbr.rel (0) target = $region29
    $region28: #{tpu_custom_call.1} parent=1 // pred_region
      _
    $region29: #{tpu_custom_call.1} parent=1 // pred_fallthru
      _
    // Predicated region
    $region30: #{tpu_custom_call.1} parent=1 // pred_check
      _
    $region31: #{tpu_custom_call.1} parent=1 // pred_check_branch
      %54 = sbr.rel (0) target = $region33
    $region32: #{tpu_custom_call.1} parent=1 // pred_region
      _
    $region33: #{tpu_custom_call.1} parent=1 // pred_fallthru
      _
    // Predicated region
    $region34: #{tpu_custom_call.1} parent=1 // pred_check
      _
    $region35: #{tpu_custom_call.1} parent=1 // pred_check_branch
      %56 = sbr.rel (0) target = $region37
    $region36: #{tpu_custom_call.1} parent=1 // pred_region
      %s58 = ssub.s32 512, 512
      %59 = vsyncadd [#allocation6], %s58
      %s60 = sshll.u32 [#allocation7], 4
      %s61 = int_to_ptr.vmem [resolvable:$true] %s60
      %66 = dma.hbm_to_vmem [thread:$0]  %s8, 512, %s61, [#allocation6], 128, 128, 8
    $region37: #{tpu_custom_call.1} parent=1 // pred_fallthru
      _
    // Predicated region
    $region38: #{tpu_custom_call.1} parent=1 // pred_check
      _
    $region39: #{tpu_custom_call.1} parent=1 // pred_check_branch
      %68 = sbr.rel (0) target = $region41
    $region40: #{tpu_custom_call.1} parent=1 // pred_region
      _
    $region41: #{tpu_custom_call.1} parent=1 // pred_fallthru
      _
    // Predicated region
    $region42: #{tpu_custom_call.1} parent=1 // pred_check
      _
    $region43: #{tpu_custom_call.1} parent=1 // pred_check_branch
      %70 = sbr.rel (0) target = $region45
    $region44: #{tpu_custom_call.1} parent=1 // pred_region
      _
    $region45: #{tpu_custom_call.1} parent=1 // pred_fallthru
      _
    // Predicated region
    $region46: #{tpu_custom_call.1} parent=1 // pred_check
      _
    $region47: #{tpu_custom_call.1} parent=1 // pred_check_branch
      %72 = sbr.rel (0) target = $region49
    $region48: #{tpu_custom_call.1} parent=1 // pred_region
      %73 = dma.done [#allocation3], 256
    $region49: #{tpu_custom_call.1} parent=1 // pred_fallthru
      _
    // Predicated region
    $region50: #{tpu_custom_call.1} parent=1 // pred_check
      _
    $region51: #{tpu_custom_call.1} parent=1 // pred_check_branch
      %75 = sbr.rel (0) target = $region53
    $region52: #{tpu_custom_call.1} parent=1 // pred_region
      %76 = dma.done [#allocation6], 384
    $region53: #{tpu_custom_call.1} parent=1 // pred_fallthru
      _
    // Predicated region
    $region54: #{tpu_custom_call.1} parent=1 // pred_check
      _
    $region55: #{tpu_custom_call.1} parent=1 // pred_check_branch
      %78 = sbr.rel (0) target = $region57
    $region56: #{tpu_custom_call.1} parent=1 // pred_region
      %79 = dma.done [#allocation6], 512
    $region57: #{tpu_custom_call.1} parent=1 // pred_fallthru
      _
    %v80 = vld [vmem:[#allocation2] sm:$0xff]
    %v81 = vld [vmem:[#allocation2 + $0x8] sm:$0xff]
    %v82 = vld [vmem:[#allocation5] sm:$0x1]
    %v83 = vld [vmem:[#allocation5 + $0x1] sm:$0x1]
    %vm84 = vcmask 261120
    %v85 = vsel %vm84, %v80, 0.0
    %86 = vadd.xlane.f32.xlu0 %v85
    %v87 = vpop.xlane.xlu0 %86
    %v88 = vsel %vm84, %v81, 0.0
    %89 = vadd.xlane.f32.xlu0 %v88
    %v90 = vpop.xlane.xlu0 %89
    %v91 = vrcp.pop 32.0
    %v92 = vmul.f32 %v87, %v91
    %v93 = vmul.f32 %v90, %v91
    %v94 = vsub.f32 %v80, %v92
    %v95 = vsub.f32 %v81, %v93
    %v96 = vmul.f32 %v94, %v94
    %v97 = vmul.f32 %v95, %v95
    %v98 = vsel %vm84, %v96, 0.0
    %99 = vadd.xlane.f32.xlu0 %v98
    %v100 = vpop.xlane.xlu0 %99
    %v101 = vsel %vm84, %v97, 0.0
    %102 = vadd.xlane.f32.xlu0 %v101
    %v103 = vpop.xlane.xlu0 %102
    %v104 = vmul.f32 %v100, %v91
    %v105 = vmul.f32 %v103, %v91
    %v106 = vadd.f32 %v104, 1e-05
    %v107 = vadd.f32 %v105, 1e-05
    %v108 = vrsqrt.pop %v106
    %v109 = vrsqrt.pop %v107
    %v110 = vmul.f32 %v94, %v108
    %v111 = vmul.f32 %v95, %v109
    %v112 = vlaneseq
    %v113 = vshrl.u32 %v112, 7
    %v114 = vsub.s32 0, %v113
    %v115 = vrot.slane %v82, %v114
    %v116 = vmul.f32 %v110, %v115
    %v117 = vmul.f32 %v111, %v115
    %v118 = vlaneseq
    %v119 = vshrl.u32 %v118, 7
    %v120 = vsub.s32 0, %v119
    %v121 = vrot.slane %v83, %v120
    %v122 = vadd.f32 %v116, %v121
    %v123 = vadd.f32 %v117, %v121
    %v124 = vld [vmem:[%s3] sm:$0xff]
    %v125 = vld [vmem:[%s3 + $0x8] sm:$0xff]
    %v126 = vld [vmem:[%s3 + $0x10] sm:$0xff]
    %v127 = vld [vmem:[%s3 + $0x18] sm:$0xff]
    %v128 = vld [vmem:[%s4] sm:$0xff]
    %v129 = vld [vmem:[%s4 + $0x8] sm:$0xff]
    %v130 = vld [vmem:[%s4 + $0x10] sm:$0xff]
    %v131 = vld [vmem:[%s4 + $0x18] sm:$0xff]
    %v132 = vld [vmem:[%s5] sm:$0xff]
    %v133 = vld [vmem:[%s5 + $0x8] sm:$0xff]
    %v134 = vld [vmem:[%s5 + $0x10] sm:$0xff]
    %v135 = vld [vmem:[%s5 + $0x18] sm:$0xff]
    %v136 = vld [vmem:[%s6] sm:$0xff]
    %v137 = vld [vmem:[%s6 + $0x8] sm:$0xff]
    %v138 = vld [vmem:[%s6 + $0x10] sm:$0xff]
    %v139 = vld [vmem:[%s6 + $0x18] sm:$0xff]
    %v140 = vld [vmem:[%s6 + $0x20] sm:$0xff]
    %v141 = vld [vmem:[%s6 + $0x28] sm:$0xff]
    %v142 = vld [vmem:[%s6 + $0x30] sm:$0xff]
    %v143 = vld [vmem:[%s6 + $0x38] sm:$0xff]
    %v144 = vld [vmem:[#allocation5 + $0x3] sm:$0x1]
    %v145 = vld [vmem:[#allocation5 + $0x4] sm:$0x1]
    %v146 = vld [vmem:[#allocation5 + $0x5] sm:$0x1]
    %v147 = vld [vmem:[#allocation5 + $0x6] sm:$0x1]
    %v148 = vld [vmem:[#allocation5 + $0x7] sm:$0x1]
    %v149 = vld [vmem:[#allocation5 + $0x8] sm:$0x1]
    %v150 = vld [vmem:[#allocation5 + $0x9] sm:$0x1]
    %v151 = vld [vmem:[#allocation5 + $0xa] sm:$0x1]
    %v152 = vlaneseq
    %v153 = vshrl.u32 %v152, 7
    %v154 = vsub.s32 0, %v153
    %v155 = vrot.slane %v144, %v154
    %v157 = vsel %vm84, %v122, 0
    %v160 = vsel %vm84, %v123, 0
    %162 = vmatprep.subr.mxu0 0.0
    %163 = vmatpush1.msra.mxu0 %v124
    %164 = vmatprep.subr.mxu0 0.0
    %165 = vmatpush1.msra.mxu0 %v125
    %166 = vmatprep.subr.mxu0 0.0
    %167 = vmatpush1.msra.mxu0 %v126
    %168 = vmatprep.subr.mxu0 0.0
    %169 = vmatpush1.msra.mxu0 %v127
    %170 = vmatprep.subr.mxu0 0.0
    %171 = vmatpush1.msra.mxu0 0.0
    %172 = vmatprep.subr.mxu0 0.0
    %173 = vmatpush1.msra.mxu0 0.0
    %174 = vmatprep.subr.mxu0 0.0
    %175 = vmatpush1.msra.mxu0 0.0
    %176 = vmatprep.subr.mxu0 0.0
    %177 = vmatpush1.msra.mxu0 0.0
    %178 = vmatprep.subr.mxu0 0.0
    %179 = vmatpush1.msra.mxu0 0.0
    %180 = vmatprep.subr.mxu0 0.0
    %181 = vmatpush1.msra.mxu0 0.0
    %182 = vmatprep.subr.mxu0 0.0
    %183 = vmatpush1.msra.mxu0 0.0
    %184 = vmatprep.subr.mxu0 0.0
    %185 = vmatpush1.msra.mxu0 0.0
    %186 = vmatprep.subr.mxu0 0.0
    %187 = vmatpush1.msra.mxu0 0.0
    %188 = vmatprep.subr.mxu0 0.0
    %189 = vmatpush1.msra.mxu0 0.0
    %190 = vmatprep.subr.mxu0 0.0
    %191 = vmatpush1.msra.mxu0 0.0
    %192 = vmatprep.subr.mxu0 0.0
    %193 = vmatpush1.msra.mxu0 0.0
    %194 = vmatprep.subr.mxu0 0.0
    %195 = vmatpush1.msra.mxu0 0.0
    %196 = vmatprep.subr.mxu0 0.0
    %197 = vmatpush1.msra.mxu0 0.0
    %198 = vmatprep.subr.mxu0 0.0
    %199 = vmatpush1.msra.mxu0 0.0
    %200 = vmatprep.subr.mxu0 0.0
    %201 = vmatpush1.msra.mxu0 0.0
    %202 = vmatprep.subr.mxu0 0.0
    %203 = vmatpush1.msra.mxu0 0.0
    %204 = vmatprep.subr.mxu0 0.0
    %205 = vmatpush1.msra.mxu0 0.0
    %206 = vmatprep.subr.mxu0 0.0
    %207 = vmatpush1.msra.mxu0 0.0
    %208 = vmatprep.subr.mxu0 0.0
    %209 = vmatpush1.msra.mxu0 0.0
    %210 = vmatprep.subr.mxu0 0.0
    %211 = vmatpush1.msra.mxu0 0.0
    %212 = vmatprep.subr.mxu0 0.0
    %213 = vmatpush1.msra.mxu0 0.0
    %214 = vmatprep.subr.mxu0 0.0
    %215 = vmatpush1.msra.mxu0 0.0
    %216 = vmatprep.subr.mxu0 0.0
    %217 = vmatpush1.msra.mxu0 0.0
    %218 = vmatprep.subr.mxu0 0.0
    %219 = vmatpush1.msra.mxu0 0.0
    %220 = vmatprep.subr.mxu0 0.0
    %221 = vmatpush1.msra.mxu0 0.0
    %222 = vmatprep.subr.mxu0 0.0
    %223 = vmatpush1.msra.mxu0 0.0
    %224 = vmatprep.subr.mxu0 0.0
    %225 = vmatpush1.msra.mxu0 0.0
    %226 = vmatprep.mubr.f32.mxu0 0.0
    %227 = vmatmul.mubr.f32.gmra.mrb[0].mxu0 %v157
    %v228 = vpop.f32.mrb[0].mxu0
    %v229 = vadd.f32 %v155, %v228
    %v230 = vpop.f32.mrb[0].mxu0
    %231 = vmatprep.mubr.f32.mxu0 0.0
    %232 = vmatmul.mubr.f32.gmra.mrb[0].mxu0 %v160
    %v233 = vpop.f32.mrb[0].mxu0
    %v234 = vadd.f32 %v155, %v233
    %v235 = vpop.f32.mrb[0].mxu0
    %236 = vdwg.mxu0
    %238 = vrot.lane.b32.xlu0 %v229, 96
    %v239 = vpop.permute.xlu0 %238
    %vm240 = vcmask 64512
    %v241 = vsel %vm240, %v229, 0
    %v243 = vsel %vm240, %v239, 0
    %245 = vmatprep.subr.mxu0 0.0
    %246 = vmatpush1.xpose.msra.mxu0 %v243
    %247 = vmatprep.subr.mxu0 0.0
    %248 = vmatpush1.xpose.msra.mxu0 0.0
    %249 = vmatprep.subr.mxu0 0.0
    %250 = vmatpush1.xpose.msra.mxu0 0.0
    %251 = vmatprep.subr.mxu0 0.0
    %252 = vmatpush1.xpose.msra.mxu0 0.0
    %253 = vmatprep.subr.mxu0 0.0
    %254 = vmatpush1.xpose.msra.mxu0 0.0
    %255 = vmatprep.subr.mxu0 0.0
    %256 = vmatpush1.xpose.msra.mxu0 0.0
    %257 = vmatprep.subr.mxu0 0.0
    %258 = vmatpush1.xpose.msra.mxu0 0.0
    %259 = vmatprep.subr.mxu0 0.0
    %260 = vmatpush1.xpose.msra.mxu0 0.0
    %261 = vmatprep.subr.mxu0 0.0
    %262 = vmatpush1.xpose.msra.mxu0 0.0
    %263 = vmatprep.subr.mxu0 0.0
    %264 = vmatpush1.xpose.msra.mxu0 0.0
    %265 = vmatprep.subr.mxu0 0.0
    %266 = vmatpush1.xpose.msra.mxu0 0.0
    %267 = vmatprep.subr.mxu0 0.0
    %268 = vmatpush1.xpose.msra.mxu0 0.0
    %269 = vmatprep.subr.mxu0 0.0
    %270 = vmatpush1.xpose.msra.mxu0 0.0
    %271 = vmatprep.subr.mxu0 0.0
    %272 = vmatpush1.xpose.msra.mxu0 0.0
    %273 = vmatprep.subr.mxu0 0.0
    %274 = vmatpush1.xpose.msra.mxu0 0.0
    %275 = vmatprep.subr.mxu0 0.0
    %276 = vmatpush1.xpose.msra.mxu0 0.0
    %277 = vmatprep.subr.mxu0 0.0
    %278 = vmatpush1.xpose.msra.mxu0 0.0
    %279 = vmatprep.subr.mxu0 0.0
    %280 = vmatpush1.xpose.msra.mxu0 0.0
    %281 = vmatprep.subr.mxu0 0.0
    %282 = vmatpush1.xpose.msra.mxu0 0.0
    %283 = vmatprep.subr.mxu0 0.0
    %284 = vmatpush1.xpose.msra.mxu0 0.0
    %285 = vmatprep.subr.mxu0 0.0
    %286 = vmatpush1.xpose.msra.mxu0 0.0
    %287 = vmatprep.subr.mxu0 0.0
    %288 = vmatpush1.xpose.msra.mxu0 0.0
    %289 = vmatprep.subr.mxu0 0.0
    %290 = vmatpush1.xpose.msra.mxu0 0.0
    %291 = vmatprep.subr.mxu0 0.0
    %292 = vmatpush1.xpose.msra.mxu0 0.0
    %293 = vmatprep.subr.mxu0 0.0
    %294 = vmatpush1.xpose.msra.mxu0 0.0
    %295 = vmatprep.subr.mxu0 0.0
    %296 = vmatpush1.xpose.msra.mxu0 0.0
    %297 = vmatprep.subr.mxu0 0.0
    %298 = vmatpush1.xpose.msra.mxu0 0.0
    %299 = vmatprep.subr.mxu0 0.0
    %300 = vmatpush1.xpose.msra.mxu0 0.0
    %301 = vmatprep.subr.mxu0 0.0
    %302 = vmatpush1.xpose.msra.mxu0 0.0
    %303 = vmatprep.subr.mxu0 0.0
    %304 = vmatpush1.xpose.msra.mxu0 0.0
    %305 = vmatprep.subr.mxu0 0.0
    %306 = vmatpush1.xpose.msra.mxu0 0.0
    %307 = vmatprep.subr.mxu0 0.0
    %308 = vmatpush1.xpose.msra.mxu0 0.0
    %309 = vmatprep.mubr.f32.mxu0 0.0
    %310 = vmatmul.mubr.f32.gmra.mrb[0].mxu0 %v241
    %v311 = vpop.f32.mrb[0].mxu0
    %v312 = vadd.f32 0.0, %v311
    %v313 = vpop.f32.mrb[0].mxu0
    %314 = vdwg.mxu0
    %v315 = vsel %vm240, %v312, -inf
    %316 = vmax.xlane.f32.xlu0 %v315
    %v317 = vpop.xlane.xlu0 %316
    %v318 = vsub.f32 %v312, %v317
    %v319 = vmul.f32 %v318, 1.442695
    %v320 = vpow.pop %v319
    %v321 = vsel %vm240, %v320, 0.0
    %322 = vadd.xlane.f32.xlu0 %v321
    %v323 = vpop.xlane.xlu0 %322
    %v324 = vrcp.pop %v323
    %v325 = vmul.f32 %v320, %v324
    %326 = vrot.lane.b32.xlu0 %v229, 64
    %v327 = vpop.permute.xlu0 %326
    %v330 = vsel %vm240, %v325, 0
    %332 = vmatprep.subr.mxu0 0.0
    %333 = vmatpush1.msra.mxu0 %v327
    %334 = vmatprep.subr.mxu0 0.0
    %335 = vmatpush1.msra.mxu0 0.0
    %336 = vmatprep.subr.mxu0 0.0
    %337 = vmatpush1.msra.mxu0 0.0
    %338 = vmatprep.subr.mxu0 0.0
    %339 = vmatpush1.msra.mxu0 0.0
    %340 = vmatprep.subr.mxu0 0.0
    %341 = vmatpush1.msra.mxu0 0.0
    %342 = vmatprep.subr.mxu0 0.0
    %343 = vmatpush1.msra.mxu0 0.0
    %344 = vmatprep.subr.mxu0 0.0
    %345 = vmatpush1.msra.mxu0 0.0
    %346 = vmatprep.subr.mxu0 0.0
    %347 = vmatpush1.msra.mxu0 0.0
    %348 = vmatprep.subr.mxu0 0.0
    %349 = vmatpush1.msra.mxu0 0.0
    %350 = vmatprep.subr.mxu0 0.0
    %351 = vmatpush1.msra.mxu0 0.0
    %352 = vmatprep.subr.mxu0 0.0
    %353 = vmatpush1.msra.mxu0 0.0
    %354 = vmatprep.subr.mxu0 0.0
    %355 = vmatpush1.msra.mxu0 0.0
    %356 = vmatprep.subr.mxu0 0.0
    %357 = vmatpush1.msra.mxu0 0.0
    %358 = vmatprep.subr.mxu0 0.0
    %359 = vmatpush1.msra.mxu0 0.0
    %360 = vmatprep.subr.mxu0 0.0
    %361 = vmatpush1.msra.mxu0 0.0
    %362 = vmatprep.subr.mxu0 0.0
    %363 = vmatpush1.msra.mxu0 0.0
    %364 = vmatprep.subr.mxu0 0.0
    %365 = vmatpush1.msra.mxu0 0.0
    %366 = vmatprep.subr.mxu0 0.0
    %367 = vmatpush1.msra.mxu0 0.0
    %368 = vmatprep.subr.mxu0 0.0
    %369 = vmatpush1.msra.mxu0 0.0
    %370 = vmatprep.subr.mxu0 0.0
    %371 = vmatpush1.msra.mxu0 0.0
    %372 = vmatprep.subr.mxu0 0.0
    %373 = vmatpush1.msra.mxu0 0.0
    %374 = vmatprep.subr.mxu0 0.0
    %375 = vmatpush1.msra.mxu0 0.0
    %376 = vmatprep.subr.mxu0 0.0
    %377 = vmatpush1.msra.mxu0 0.0
    %378 = vmatprep.subr.mxu0 0.0
    %379 = vmatpush1.msra.mxu0 0.0
    %380 = vmatprep.subr.mxu0 0.0
    %381 = vmatpush1.msra.mxu0 0.0
    %382 = vmatprep.subr.mxu0 0.0
    %383 = vmatpush1.msra.mxu0 0.0
    %384 = vmatprep.subr.mxu0 0.0
    %385 = vmatpush1.msra.mxu0 0.0
    %386 = vmatprep.subr.mxu0 0.0
    %387 = vmatpush1.msra.mxu0 0.0
    %388 = vmatprep.subr.mxu0 0.0
    %389 = vmatpush1.msra.mxu0 0.0
    %390 = vmatprep.subr.mxu0 0.0
    %391 = vmatpush1.msra.mxu0 0.0
    %392 = vmatprep.subr.mxu0 0.0
    %393 = vmatpush1.msra.mxu0 0.0
    %394 = vmatprep.subr.mxu0 0.0
    %395 = vmatpush1.msra.mxu0 0.0
    %396 = vmatprep.mubr.f32.mxu0 0.0
    %397 = vmatmul.mubr.f32.gmra.mrb[0].mxu0 %v330
    %v398 = vpop.f32.mrb[0].mxu0
    %v399 = vadd.f32 0.0, %v398
    %v400 = vpop.f32.mrb[0].mxu0
    %401 = vdwg.mxu0
    %402 = vrot.lane.b32.xlu0 %v229, 120
    %v403 = vpop.permute.xlu0 %402
    %404 = vrot.lane.b32.xlu0 %v229, 88
    %v405 = vpop.permute.xlu0 %404
    %v406 = vsel %vm240, %v403, 0
    %v408 = vsel %vm240, %v405, 0
    %410 = vmatprep.subr.mxu0 0.0
    %411 = vmatpush1.xpose.msra.mxu0 %v408
    %412 = vmatprep.subr.mxu0 0.0
    %413 = vmatpush1.xpose.msra.mxu0 0.0
    %414 = vmatprep.subr.mxu0 0.0
    %415 = vmatpush1.xpose.msra.mxu0 0.0
    %416 = vmatprep.subr.mxu0 0.0
    %417 = vmatpush1.xpose.msra.mxu0 0.0
    %418 = vmatprep.subr.mxu0 0.0
    %419 = vmatpush1.xpose.msra.mxu0 0.0
    %420 = vmatprep.subr.mxu0 0.0
    %421 = vmatpush1.xpose.msra.mxu0 0.0
    %422 = vmatprep.subr.mxu0 0.0
    %423 = vmatpush1.xpose.msra.mxu0 0.0
    %424 = vmatprep.subr.mxu0 0.0
    %425 = vmatpush1.xpose.msra.mxu0 0.0
    %426 = vmatprep.subr.mxu0 0.0
    %427 = vmatpush1.xpose.msra.mxu0 0.0
    %428 = vmatprep.subr.mxu0 0.0
    %429 = vmatpush1.xpose.msra.mxu0 0.0
    %430 = vmatprep.subr.mxu0 0.0
    %431 = vmatpush1.xpose.msra.mxu0 0.0
    %432 = vmatprep.subr.mxu0 0.0
    %433 = vmatpush1.xpose.msra.mxu0 0.0
    %434 = vmatprep.subr.mxu0 0.0
    %435 = vmatpush1.xpose.msra.mxu0 0.0
    %436 = vmatprep.subr.mxu0 0.0
    %437 = vmatpush1.xpose.msra.mxu0 0.0
    %438 = vmatprep.subr.mxu0 0.0
    %439 = vmatpush1.xpose.msra.mxu0 0.0
    %440 = vmatprep.subr.mxu0 0.0
    %441 = vmatpush1.xpose.msra.mxu0 0.0
    %442 = vmatprep.subr.mxu0 0.0
    %443 = vmatpush1.xpose.msra.mxu0 0.0
    %444 = vmatprep.subr.mxu0 0.0
    %445 = vmatpush1.xpose.msra.mxu0 0.0
    %446 = vmatprep.subr.mxu0 0.0
    %447 = vmatpush1.xpose.msra.mxu0 0.0
    %448 = vmatprep.subr.mxu0 0.0
    %449 = vmatpush1.xpose.msra.mxu0 0.0
    %450 = vmatprep.subr.mxu0 0.0
    %451 = vmatpush1.xpose.msra.mxu0 0.0
    %452 = vmatprep.subr.mxu0 0.0
    %453 = vmatpush1.xpose.msra.mxu0 0.0
    %454 = vmatprep.subr.mxu0 0.0
    %455 = vmatpush1.xpose.msra.mxu0 0.0
    %456 = vmatprep.subr.mxu0 0.0
    %457 = vmatpush1.xpose.msra.mxu0 0.0
    %458 = vmatprep.subr.mxu0 0.0
    %459 = vmatpush1.xpose.msra.mxu0 0.0
    %460 = vmatprep.subr.mxu0 0.0
    %461 = vmatpush1.xpose.msra.mxu0 0.0
    %462 = vmatprep.subr.mxu0 0.0
    %463 = vmatpush1.xpose.msra.mxu0 0.0
    %464 = vmatprep.subr.mxu0 0.0
    %465 = vmatpush1.xpose.msra.mxu0 0.0
    %466 = vmatprep.subr.mxu0 0.0
    %467 = vmatpush1.xpose.msra.mxu0 0.0
    %468 = vmatprep.subr.mxu0 0.0
    %469 = vmatpush1.xpose.msra.mxu0 0.0
    %470 = vmatprep.subr.mxu0 0.0
    %471 = vmatpush1.xpose.msra.mxu0 0.0
    %472 = vmatprep.subr.mxu0 0.0
    %473 = vmatpush1.xpose.msra.mxu0 0.0
    %474 = vmatprep.mubr.f32.mxu0 0.0
    %475 = vmatmul.mubr.f32.gmra.mrb[0].mxu0 %v406
    %v476 = vpop.f32.mrb[0].mxu0
    %v477 = vadd.f32 0.0, %v476
    %v478 = vpop.f32.mrb[0].mxu0
    %479 = vdwg.mxu0
    %v480 = vsel %vm240, %v477, -inf
    %481 = vmax.xlane.f32.xlu0 %v480
    %v482 = vpop.xlane.xlu0 %481
    %v483 = vsub.f32 %v477, %v482
    %v484 = vmul.f32 %v483, 1.442695
    %v485 = vpow.pop %v484
    %v486 = vsel %vm240, %v485, 0.0
    %487 = vadd.xlane.f32.xlu0 %v486
    %v488 = vpop.xlane.xlu0 %487
    %v489 = vrcp.pop %v488
    %v490 = vmul.f32 %v485, %v489
    %491 = vrot.lane.b32.xlu0 %v229, 56
    %v492 = vpop.permute.xlu0 %491
    %v495 = vsel %vm240, %v490, 0
    %497 = vmatprep.subr.mxu0 0.0
    %498 = vmatpush1.msra.mxu0 %v492
    %499 = vmatprep.subr.mxu0 0.0
    %500 = vmatpush1.msra.mxu0 0.0
    %501 = vmatprep.subr.mxu0 0.0
    %502 = vmatpush1.msra.mxu0 0.0
    %503 = vmatprep.subr.mxu0 0.0
    %504 = vmatpush1.msra.mxu0 0.0
    %505 = vmatprep.subr.mxu0 0.0
    %506 = vmatpush1.msra.mxu0 0.0
    %507 = vmatprep.subr.mxu0 0.0
    %508 = vmatpush1.msra.mxu0 0.0
    %509 = vmatprep.subr.mxu0 0.0
    %510 = vmatpush1.msra.mxu0 0.0
    %511 = vmatprep.subr.mxu0 0.0
    %512 = vmatpush1.msra.mxu0 0.0
    %513 = vmatprep.subr.mxu0 0.0
    %514 = vmatpush1.msra.mxu0 0.0
    %515 = vmatprep.subr.mxu0 0.0
    %516 = vmatpush1.msra.mxu0 0.0
    %517 = vmatprep.subr.mxu0 0.0
    %518 = vmatpush1.msra.mxu0 0.0
    %519 = vmatprep.subr.mxu0 0.0
    %520 = vmatpush1.msra.mxu0 0.0
    %521 = vmatprep.subr.mxu0 0.0
    %522 = vmatpush1.msra.mxu0 0.0
    %523 = vmatprep.subr.mxu0 0.0
    %524 = vmatpush1.msra.mxu0 0.0
    %525 = vmatprep.subr.mxu0 0.0
    %526 = vmatpush1.msra.mxu0 0.0
    %527 = vmatprep.subr.mxu0 0.0
    %528 = vmatpush1.msra.mxu0 0.0
    %529 = vmatprep.subr.mxu0 0.0
    %530 = vmatpush1.msra.mxu0 0.0
    %531 = vmatprep.subr.mxu0 0.0
    %532 = vmatpush1.msra.mxu0 0.0
    %533 = vmatprep.subr.mxu0 0.0
    %534 = vmatpush1.msra.mxu0 0.0
    %535 = vmatprep.subr.mxu0 0.0
    %536 = vmatpush1.msra.mxu0 0.0
    %537 = vmatprep.subr.mxu0 0.0
    %538 = vmatpush1.msra.mxu0 0.0
    %539 = vmatprep.subr.mxu0 0.0
    %540 = vmatpush1.msra.mxu0 0.0
    %541 = vmatprep.subr.mxu0 0.0
    %542 = vmatpush1.msra.mxu0 0.0
    %543 = vmatprep.subr.mxu0 0.0
    %544 = vmatpush1.msra.mxu0 0.0
    %545 = vmatprep.subr.mxu0 0.0
    %546 = vmatpush1.msra.mxu0 0.0
    %547 = vmatprep.subr.mxu0 0.0
    %548 = vmatpush1.msra.mxu0 0.0
    %549 = vmatprep.subr.mxu0 0.0
    %550 = vmatpush1.msra.mxu0 0.0
    %551 = vmatprep.subr.mxu0 0.0
    %552 = vmatpush1.msra.mxu0 0.0
    %553 = vmatprep.subr.mxu0 0.0
    %554 = vmatpush1.msra.mxu0 0.0
    %555 = vmatprep.subr.mxu0 0.0
    %556 = vmatpush1.msra.mxu0 0.0
    %557 = vmatprep.subr.mxu0 0.0
    %558 = vmatpush1.msra.mxu0 0.0
    %559 = vmatprep.subr.mxu0 0.0
    %560 = vmatpush1.msra.mxu0 0.0
    %561 = vmatprep.mubr.f32.mxu0 0.0
    %562 = vmatmul.mubr.f32.gmra.mrb[0].mxu0 %v495
    %v563 = vpop.f32.mrb[0].mxu0
    %v564 = vadd.f32 0.0, %v563
    %v565 = vpop.f32.mrb[0].mxu0
    %566 = vdwg.mxu0
    %567 = vrot.lane.b32.xlu0 %v229, 112
    %v568 = vpop.permute.xlu0 %567
    %569 = vrot.lane.b32.xlu0 %v229, 80
    %v570 = vpop.permute.xlu0 %569
    %v571 = vsel %vm240, %v568, 0
    %v573 = vsel %vm240, %v570, 0
    %575 = vmatprep.subr.mxu0 0.0
    %576 = vmatpush1.xpose.msra.mxu0 %v573
    %577 = vmatprep.subr.mxu0 0.0
    %578 = vmatpush1.xpose.msra.mxu0 0.0
    %579 = vmatprep.subr.mxu0 0.0
    %580 = vmatpush1.xpose.msra.mxu0 0.0
    %581 = vmatprep.subr.mxu0 0.0
    %582 = vmatpush1.xpose.msra.mxu0 0.0
    %583 = vmatprep.subr.mxu0 0.0
    %584 = vmatpush1.xpose.msra.mxu0 0.0
    %585 = vmatprep.subr.mxu0 0.0
    %586 = vmatpush1.xpose.msra.mxu0 0.0
    %587 = vmatprep.subr.mxu0 0.0
    %588 = vmatpush1.xpose.msra.mxu0 0.0
    %589 = vmatprep.subr.mxu0 0.0
    %590 = vmatpush1.xpose.msra.mxu0 0.0
    %591 = vmatprep.subr.mxu0 0.0
    %592 = vmatpush1.xpose.msra.mxu0 0.0
    %593 = vmatprep.subr.mxu0 0.0
    %594 = vmatpush1.xpose.msra.mxu0 0.0
    %595 = vmatprep.subr.mxu0 0.0
    %596 = vmatpush1.xpose.msra.mxu0 0.0
    %597 = vmatprep.subr.mxu0 0.0
    %598 = vmatpush1.xpose.msra.mxu0 0.0
    %599 = vmatprep.subr.mxu0 0.0
    %600 = vmatpush1.xpose.msra.mxu0 0.0
    %601 = vmatprep.subr.mxu0 0.0
    %602 = vmatpush1.xpose.msra.mxu0 0.0
    %603 = vmatprep.subr.mxu0 0.0
    %604 = vmatpush1.xpose.msra.mxu0 0.0
    %605 = vmatprep.subr.mxu0 0.0
    %606 = vmatpush1.xpose.msra.mxu0 0.0
    %607 = vmatprep.subr.mxu0 0.0
    %608 = vmatpush1.xpose.msra.mxu0 0.0
    %609 = vmatprep.subr.mxu0 0.0
    %610 = vmatpush1.xpose.msra.mxu0 0.0
    %611 = vmatprep.subr.mxu0 0.0
    %612 = vmatpush1.xpose.msra.mxu0 0.0
    %613 = vmatprep.subr.mxu0 0.0
    %614 = vmatpush1.xpose.msra.mxu0 0.0
    %615 = vmatprep.subr.mxu0 0.0
    %616 = vmatpush1.xpose.msra.mxu0 0.0
    %617 = vmatprep.subr.mxu0 0.0
    %618 = vmatpush1.xpose.msra.mxu0 0.0
    %619 = vmatprep.subr.mxu0 0.0
    %620 = vmatpush1.xpose.msra.mxu0 0.0
    %621 = vmatprep.subr.mxu0 0.0
    %622 = vmatpush1.xpose.msra.mxu0 0.0
    %623 = vmatprep.subr.mxu0 0.0
    %624 = vmatpush1.xpose.msra.mxu0 0.0
    %625 = vmatprep.subr.mxu0 0.0
    %626 = vmatpush1.xpose.msra.mxu0 0.0
    %627 = vmatprep.subr.mxu0 0.0
    %628 = vmatpush1.xpose.msra.mxu0 0.0
    %629 = vmatprep.subr.mxu0 0.0
    %630 = vmatpush1.xpose.msra.mxu0 0.0
    %631 = vmatprep.subr.mxu0 0.0
    %632 = vmatpush1.xpose.msra.mxu0 0.0
    %633 = vmatprep.subr.mxu0 0.0
    %634 = vmatpush1.xpose.msra.mxu0 0.0
    %635 = vmatprep.subr.mxu0 0.0
    %636 = vmatpush1.xpose.msra.mxu0 0.0
    %637 = vmatprep.subr.mxu0 0.0
    %638 = vmatpush1.xpose.msra.mxu0 0.0
    %639 = vmatprep.mubr.f32.mxu0 0.0
    %640 = vmatmul.mubr.f32.gmra.mrb[0].mxu0 %v571
    %v641 = vpop.f32.mrb[0].mxu0
    %v642 = vadd.f32 0.0, %v641
    %v643 = vpop.f32.mrb[0].mxu0
    %644 = vdwg.mxu0
    %v645 = vsel %vm240, %v642, -inf
    %646 = vmax.xlane.f32.xlu0 %v645
    %v647 = vpop.xlane.xlu0 %646
    %v648 = vsub.f32 %v642, %v647
    %v649 = vmul.f32 %v648, 1.442695
    %v650 = vpow.pop %v649
    %v651 = vsel %vm240, %v650, 0.0
    %652 = vadd.xlane.f32.xlu0 %v651
    %v653 = vpop.xlane.xlu0 %652
    %v654 = vrcp.pop %v653
    %v655 = vmul.f32 %v650, %v654
    %656 = vrot.lane.b32.xlu0 %v229, 48
    %v657 = vpop.permute.xlu0 %656
    %v660 = vsel %vm240, %v655, 0
    %662 = vmatprep.subr.mxu0 0.0
    %663 = vmatpush1.msra.mxu0 %v657
    %664 = vmatprep.subr.mxu0 0.0
    %665 = vmatpush1.msra.mxu0 0.0
    %666 = vmatprep.subr.mxu0 0.0
    %667 = vmatpush1.msra.mxu0 0.0
    %668 = vmatprep.subr.mxu0 0.0
    %669 = vmatpush1.msra.mxu0 0.0
    %670 = vmatprep.subr.mxu0 0.0
    %671 = vmatpush1.msra.mxu0 0.0
    %672 = vmatprep.subr.mxu0 0.0
    %673 = vmatpush1.msra.mxu0 0.0
    %674 = vmatprep.subr.mxu0 0.0
    %675 = vmatpush1.msra.mxu0 0.0
    %676 = vmatprep.subr.mxu0 0.0
    %677 = vmatpush1.msra.mxu0 0.0
    %678 = vmatprep.subr.mxu0 0.0
    %679 = vmatpush1.msra.mxu0 0.0
    %680 = vmatprep.subr.mxu0 0.0
    %681 = vmatpush1.msra.mxu0 0.0
    %682 = vmatprep.subr.mxu0 0.0
    %683 = vmatpush1.msra.mxu0 0.0
    %684 = vmatprep.subr.mxu0 0.0
    %685 = vmatpush1.msra.mxu0 0.0
    %686 = vmatprep.subr.mxu0 0.0
    %687 = vmatpush1.msra.mxu0 0.0
    %688 = vmatprep.subr.mxu0 0.0
    %689 = vmatpush1.msra.mxu0 0.0
    %690 = vmatprep.subr.mxu0 0.0
    %691 = vmatpush1.msra.mxu0 0.0
    %692 = vmatprep.subr.mxu0 0.0
    %693 = vmatpush1.msra.mxu0 0.0
    %694 = vmatprep.subr.mxu0 0.0
    %695 = vmatpush1.msra.mxu0 0.0
    %696 = vmatprep.subr.mxu0 0.0
    %697 = vmatpush1.msra.mxu0 0.0
    %698 = vmatprep.subr.mxu0 0.0
    %699 = vmatpush1.msra.mxu0 0.0
    %700 = vmatprep.subr.mxu0 0.0
    %701 = vmatpush1.msra.mxu0 0.0
    %702 = vmatprep.subr.mxu0 0.0
    %703 = vmatpush1.msra.mxu0 0.0
    %704 = vmatprep.subr.mxu0 0.0
    %705 = vmatpush1.msra.mxu0 0.0
    %706 = vmatprep.subr.mxu0 0.0
    %707 = vmatpush1.msra.mxu0 0.0
    %708 = vmatprep.subr.mxu0 0.0
    %709 = vmatpush1.msra.mxu0 0.0
    %710 = vmatprep.subr.mxu0 0.0
    %711 = vmatpush1.msra.mxu0 0.0
    %712 = vmatprep.subr.mxu0 0.0
    %713 = vmatpush1.msra.mxu0 0.0
    %714 = vmatprep.subr.mxu0 0.0
    %715 = vmatpush1.msra.mxu0 0.0
    %716 = vmatprep.subr.mxu0 0.0
    %717 = vmatpush1.msra.mxu0 0.0
    %718 = vmatprep.subr.mxu0 0.0
    %719 = vmatpush1.msra.mxu0 0.0
    %720 = vmatprep.subr.mxu0 0.0
    %721 = vmatpush1.msra.mxu0 0.0
    %722 = vmatprep.subr.mxu0 0.0
    %723 = vmatpush1.msra.mxu0 0.0
    %724 = vmatprep.subr.mxu0 0.0
    %725 = vmatpush1.msra.mxu0 0.0
    %726 = vmatprep.mubr.f32.mxu0 0.0
    %727 = vmatmul.mubr.f32.gmra.mrb[0].mxu0 %v660
    %v728 = vpop.f32.mrb[0].mxu0
    %v729 = vadd.f32 0.0, %v728
    %v730 = vpop.f32.mrb[0].mxu0
    %731 = vdwg.mxu0
    %732 = vrot.lane.b32.xlu0 %v229, 104
    %v733 = vpop.permute.xlu0 %732
    %734 = vrot.lane.b32.xlu0 %v229, 72
    %v735 = vpop.permute.xlu0 %734
    %v736 = vsel %vm240, %v733, 0
    %v738 = vsel %vm240, %v735, 0
    %740 = vmatprep.subr.mxu0 0.0
    %741 = vmatpush1.xpose.msra.mxu0 %v738
    %742 = vmatprep.subr.mxu0 0.0
    %743 = vmatpush1.xpose.msra.mxu0 0.0
    %744 = vmatprep.subr.mxu0 0.0
    %745 = vmatpush1.xpose.msra.mxu0 0.0
    %746 = vmatprep.subr.mxu0 0.0
    %747 = vmatpush1.xpose.msra.mxu0 0.0
    %748 = vmatprep.subr.mxu0 0.0
    %749 = vmatpush1.xpose.msra.mxu0 0.0
    %750 = vmatprep.subr.mxu0 0.0
    %751 = vmatpush1.xpose.msra.mxu0 0.0
    %752 = vmatprep.subr.mxu0 0.0
    %753 = vmatpush1.xpose.msra.mxu0 0.0
    %754 = vmatprep.subr.mxu0 0.0
    %755 = vmatpush1.xpose.msra.mxu0 0.0
    %756 = vmatprep.subr.mxu0 0.0
    %757 = vmatpush1.xpose.msra.mxu0 0.0
    %758 = vmatprep.subr.mxu0 0.0
    %759 = vmatpush1.xpose.msra.mxu0 0.0
    %760 = vmatprep.subr.mxu0 0.0
    %761 = vmatpush1.xpose.msra.mxu0 0.0
    %762 = vmatprep.subr.mxu0 0.0
    %763 = vmatpush1.xpose.msra.mxu0 0.0
    %764 = vmatprep.subr.mxu0 0.0
    %765 = vmatpush1.xpose.msra.mxu0 0.0
    %766 = vmatprep.subr.mxu0 0.0
    %767 = vmatpush1.xpose.msra.mxu0 0.0
    %768 = vmatprep.subr.mxu0 0.0
    %769 = vmatpush1.xpose.msra.mxu0 0.0
    %770 = vmatprep.subr.mxu0 0.0
    %771 = vmatpush1.xpose.msra.mxu0 0.0
    %772 = vmatprep.subr.mxu0 0.0
    %773 = vmatpush1.xpose.msra.mxu0 0.0
    %774 = vmatprep.subr.mxu0 0.0
    %775 = vmatpush1.xpose.msra.mxu0 0.0
    %776 = vmatprep.subr.mxu0 0.0
    %777 = vmatpush1.xpose.msra.mxu0 0.0
    %778 = vmatprep.subr.mxu0 0.0
    %779 = vmatpush1.xpose.msra.mxu0 0.0
    %780 = vmatprep.subr.mxu0 0.0
    %781 = vmatpush1.xpose.msra.mxu0 0.0
    %782 = vmatprep.subr.mxu0 0.0
    %783 = vmatpush1.xpose.msra.mxu0 0.0
    %784 = vmatprep.subr.mxu0 0.0
    %785 = vmatpush1.xpose.msra.mxu0 0.0
    %786 = vmatprep.subr.mxu0 0.0
    %787 = vmatpush1.xpose.msra.mxu0 0.0
    %788 = vmatprep.subr.mxu0 0.0
    %789 = vmatpush1.xpose.msra.mxu0 0.0
    %790 = vmatprep.subr.mxu0 0.0
    %791 = vmatpush1.xpose.msra.mxu0 0.0
    %792 = vmatprep.subr.mxu0 0.0
    %793 = vmatpush1.xpose.msra.mxu0 0.0
    %794 = vmatprep.subr.mxu0 0.0
    %795 = vmatpush1.xpose.msra.mxu0 0.0
    %796 = vmatprep.subr.mxu0 0.0
    %797 = vmatpush1.xpose.msra.mxu0 0.0
    %798 = vmatprep.subr.mxu0 0.0
    %799 = vmatpush1.xpose.msra.mxu0 0.0
    %800 = vmatprep.subr.mxu0 0.0
    %801 = vmatpush1.xpose.msra.mxu0 0.0
    %802 = vmatprep.subr.mxu0 0.0
    %803 = vmatpush1.xpose.msra.mxu0 0.0
    %804 = vmatprep.mubr.f32.mxu0 0.0
    %805 = vmatmul.mubr.f32.gmra.mrb[0].mxu0 %v736
    %v806 = vpop.f32.mrb[0].mxu0
    %v807 = vadd.f32 0.0, %v806
    %v808 = vpop.f32.mrb[0].mxu0
    %809 = vdwg.mxu0
    %v810 = vsel %vm240, %v807, -inf
    %811 = vmax.xlane.f32.xlu0 %v810
    %v812 = vpop.xlane.xlu0 %811
    %v813 = vsub.f32 %v807, %v812
    %v814 = vmul.f32 %v813, 1.442695
    %v815 = vpow.pop %v814
    %v816 = vsel %vm240, %v815, 0.0
    %817 = vadd.xlane.f32.xlu0 %v816
    %v818 = vpop.xlane.xlu0 %817
    %v819 = vrcp.pop %v818
    %v820 = vmul.f32 %v815, %v819
    %821 = vrot.lane.b32.xlu0 %v229, 40
    %v822 = vpop.permute.xlu0 %821
    %v825 = vsel %vm240, %v820, 0
    %827 = vmatprep.subr.mxu0 0.0
    %828 = vmatpush1.msra.mxu0 %v822
    %829 = vmatprep.subr.mxu0 0.0
    %830 = vmatpush1.msra.mxu0 0.0
    %831 = vmatprep.subr.mxu0 0.0
    %832 = vmatpush1.msra.mxu0 0.0
    %833 = vmatprep.subr.mxu0 0.0
    %834 = vmatpush1.msra.mxu0 0.0
    %835 = vmatprep.subr.mxu0 0.0
    %836 = vmatpush1.msra.mxu0 0.0
    %837 = vmatprep.subr.mxu0 0.0
    %838 = vmatpush1.msra.mxu0 0.0
    %839 = vmatprep.subr.mxu0 0.0
    %840 = vmatpush1.msra.mxu0 0.0
    %841 = vmatprep.subr.mxu0 0.0
    %842 = vmatpush1.msra.mxu0 0.0
    %843 = vmatprep.subr.mxu0 0.0
    %844 = vmatpush1.msra.mxu0 0.0
    %845 = vmatprep.subr.mxu0 0.0
    %846 = vmatpush1.msra.mxu0 0.0
    %847 = vmatprep.subr.mxu0 0.0
    %848 = vmatpush1.msra.mxu0 0.0
    %849 = vmatprep.subr.mxu0 0.0
    %850 = vmatpush1.msra.mxu0 0.0
    %851 = vmatprep.subr.mxu0 0.0
    %852 = vmatpush1.msra.mxu0 0.0
    %853 = vmatprep.subr.mxu0 0.0
    %854 = vmatpush1.msra.mxu0 0.0
    %855 = vmatprep.subr.mxu0 0.0
    %856 = vmatpush1.msra.mxu0 0.0
    %857 = vmatprep.subr.mxu0 0.0
    %858 = vmatpush1.msra.mxu0 0.0
    %859 = vmatprep.subr.mxu0 0.0
    %860 = vmatpush1.msra.mxu0 0.0
    %861 = vmatprep.subr.mxu0 0.0
    %862 = vmatpush1.msra.mxu0 0.0
    %863 = vmatprep.subr.mxu0 0.0
    %864 = vmatpush1.msra.mxu0 0.0
    %865 = vmatprep.subr.mxu0 0.0
    %866 = vmatpush1.msra.mxu0 0.0
    %867 = vmatprep.subr.mxu0 0.0
    %868 = vmatpush1.msra.mxu0 0.0
    %869 = vmatprep.subr.mxu0 0.0
    %870 = vmatpush1.msra.mxu0 0.0
    %871 = vmatprep.subr.mxu0 0.0
    %872 = vmatpush1.msra.mxu0 0.0
    %873 = vmatprep.subr.mxu0 0.0
    %874 = vmatpush1.msra.mxu0 0.0
    %875 = vmatprep.subr.mxu0 0.0
    %876 = vmatpush1.msra.mxu0 0.0
    %877 = vmatprep.subr.mxu0 0.0
    %878 = vmatpush1.msra.mxu0 0.0
    %879 = vmatprep.subr.mxu0 0.0
    %880 = vmatpush1.msra.mxu0 0.0
    %881 = vmatprep.subr.mxu0 0.0
    %882 = vmatpush1.msra.mxu0 0.0
    %883 = vmatprep.subr.mxu0 0.0
    %884 = vmatpush1.msra.mxu0 0.0
    %885 = vmatprep.subr.mxu0 0.0
    %886 = vmatpush1.msra.mxu0 0.0
    %887 = vmatprep.subr.mxu0 0.0
    %888 = vmatpush1.msra.mxu0 0.0
    %889 = vmatprep.subr.mxu0 0.0
    %890 = vmatpush1.msra.mxu0 0.0
    %891 = vmatprep.mubr.f32.mxu0 0.0
    %892 = vmatmul.mubr.f32.gmra.mrb[0].mxu0 %v825
    %v893 = vpop.f32.mrb[0].mxu0
    %v894 = vadd.f32 0.0, %v893
    %v895 = vpop.f32.mrb[0].mxu0
    %896 = vdwg.mxu0
    %898 = vrot.lane.b32.xlu0 %v564, 8
    %v899 = vpop.permute.xlu0 %898
    %902 = vrot.lane.b32.xlu0 %v729, 16
    %v903 = vpop.permute.xlu0 %902
    %906 = vrot.lane.b32.xlu0 %v894, 24
    %v907 = vpop.permute.xlu0 %906
    %v909 = vsel %vm240, %v399, %v899
    %vm910 = vcmask 130048
    %v911 = vsel %vm910, %v909, %v903
    %vm912 = vcmask 195584
    %v913 = vsel %vm912, %v911, %v907
    %915 = vrot.lane.b32.xlu0 %v234, 96
    %v916 = vpop.permute.xlu0 %915
    %v917 = vsel %vm240, %v234, 0
    %v919 = vsel %vm240, %v916, 0
    %921 = vmatprep.subr.mxu0 0.0
    %922 = vmatpush1.xpose.msra.mxu0 %v919
    %923 = vmatprep.subr.mxu0 0.0
    %924 = vmatpush1.xpose.msra.mxu0 0.0
    %925 = vmatprep.subr.mxu0 0.0
    %926 = vmatpush1.xpose.msra.mxu0 0.0
    %927 = vmatprep.subr.mxu0 0.0
    %928 = vmatpush1.xpose.msra.mxu0 0.0
    %929 = vmatprep.subr.mxu0 0.0
    %930 = vmatpush1.xpose.msra.mxu0 0.0
    %931 = vmatprep.subr.mxu0 0.0
    %932 = vmatpush1.xpose.msra.mxu0 0.0
    %933 = vmatprep.subr.mxu0 0.0
    %934 = vmatpush1.xpose.msra.mxu0 0.0
    %935 = vmatprep.subr.mxu0 0.0
    %936 = vmatpush1.xpose.msra.mxu0 0.0
    %937 = vmatprep.subr.mxu0 0.0
    %938 = vmatpush1.xpose.msra.mxu0 0.0
    %939 = vmatprep.subr.mxu0 0.0
    %940 = vmatpush1.xpose.msra.mxu0 0.0
    %941 = vmatprep.subr.mxu0 0.0
    %942 = vmatpush1.xpose.msra.mxu0 0.0
    %943 = vmatprep.subr.mxu0 0.0
    %944 = vmatpush1.xpose.msra.mxu0 0.0
    %945 = vmatprep.subr.mxu0 0.0
    %946 = vmatpush1.xpose.msra.mxu0 0.0
    %947 = vmatprep.subr.mxu0 0.0
    %948 = vmatpush1.xpose.msra.mxu0 0.0
    %949 = vmatprep.subr.mxu0 0.0
    %950 = vmatpush1.xpose.msra.mxu0 0.0
    %951 = vmatprep.subr.mxu0 0.0
    %952 = vmatpush1.xpose.msra.mxu0 0.0
    %953 = vmatprep.subr.mxu0 0.0
    %954 = vmatpush1.xpose.msra.mxu0 0.0
    %955 = vmatprep.subr.mxu0 0.0
    %956 = vmatpush1.xpose.msra.mxu0 0.0
    %957 = vmatprep.subr.mxu0 0.0
    %958 = vmatpush1.xpose.msra.mxu0 0.0
    %959 = vmatprep.subr.mxu0 0.0
    %960 = vmatpush1.xpose.msra.mxu0 0.0
    %961 = vmatprep.subr.mxu0 0.0
    %962 = vmatpush1.xpose.msra.mxu0 0.0
    %963 = vmatprep.subr.mxu0 0.0
    %964 = vmatpush1.xpose.msra.mxu0 0.0
    %965 = vmatprep.subr.mxu0 0.0
    %966 = vmatpush1.xpose.msra.mxu0 0.0
    %967 = vmatprep.subr.mxu0 0.0
    %968 = vmatpush1.xpose.msra.mxu0 0.0
    %969 = vmatprep.subr.mxu0 0.0
    %970 = vmatpush1.xpose.msra.mxu0 0.0
    %971 = vmatprep.subr.mxu0 0.0
    %972 = vmatpush1.xpose.msra.mxu0 0.0
    %973 = vmatprep.subr.mxu0 0.0
    %974 = vmatpush1.xpose.msra.mxu0 0.0
    %975 = vmatprep.subr.mxu0 0.0
    %976 = vmatpush1.xpose.msra.mxu0 0.0
    %977 = vmatprep.subr.mxu0 0.0
    %978 = vmatpush1.xpose.msra.mxu0 0.0
    %979 = vmatprep.subr.mxu0 0.0
    %980 = vmatpush1.xpose.msra.mxu0 0.0
    %981 = vmatprep.subr.mxu0 0.0
    %982 = vmatpush1.xpose.msra.mxu0 0.0
    %983 = vmatprep.subr.mxu0 0.0
    %984 = vmatpush1.xpose.msra.mxu0 0.0
    %985 = vmatprep.mubr.f32.mxu0 0.0
    %986 = vmatmul.mubr.f32.gmra.mrb[0].mxu0 %v917
    %v987 = vpop.f32.mrb[0].mxu0
    %v988 = vadd.f32 0.0, %v987
    %v989 = vpop.f32.mrb[0].mxu0
    %990 = vdwg.mxu0
    %v991 = vsel %vm240, %v988, -inf
    %992 = vmax.xlane.f32.xlu0 %v991
    %v993 = vpop.xlane.xlu0 %992
    %v994 = vsub.f32 %v988, %v993
    %v995 = vmul.f32 %v994, 1.442695
    %v996 = vpow.pop %v995
    %v997 = vsel %vm240, %v996, 0.0
    %998 = vadd.xlane.f32.xlu0 %v997
    %v999 = vpop.xlane.xlu0 %998
    %v1000 = vrcp.pop %v999
    %v1001 = vmul.f32 %v996, %v1000
    %1002 = vrot.lane.b32.xlu0 %v234, 64
    %v1003 = vpop.permute.xlu0 %1002
    %v1006 = vsel %vm240, %v1001, 0
    %1008 = vmatprep.subr.mxu0 0.0
    %1009 = vmatpush1.msra.mxu0 %v1003
    %1010 = vmatprep.subr.mxu0 0.0
    %1011 = vmatpush1.msra.mxu0 0.0
    %1012 = vmatprep.subr.mxu0 0.0
    %1013 = vmatpush1.msra.mxu0 0.0
    %1014 = vmatprep.subr.mxu0 0.0
    %1015 = vmatpush1.msra.mxu0 0.0
    %1016 = vmatprep.subr.mxu0 0.0
    %1017 = vmatpush1.msra.mxu0 0.0
    %1018 = vmatprep.subr.mxu0 0.0
    %1019 = vmatpush1.msra.mxu0 0.0
    %1020 = vmatprep.subr.mxu0 0.0
    %1021 = vmatpush1.msra.mxu0 0.0
    %1022 = vmatprep.subr.mxu0 0.0
    %1023 = vmatpush1.msra.mxu0 0.0
    %1024 = vmatprep.subr.mxu0 0.0
    %1025 = vmatpush1.msra.mxu0 0.0
    %1026 = vmatprep.subr.mxu0 0.0
    %1027 = vmatpush1.msra.mxu0 0.0
    %1028 = vmatprep.subr.mxu0 0.0
    %1029 = vmatpush1.msra.mxu0 0.0
    %1030 = vmatprep.subr.mxu0 0.0
    %1031 = vmatpush1.msra.mxu0 0.0
    %1032 = vmatprep.subr.mxu0 0.0
    %1033 = vmatpush1.msra.mxu0 0.0
    %1034 = vmatprep.subr.mxu0 0.0
    %1035 = vmatpush1.msra.mxu0 0.0
    %1036 = vmatprep.subr.mxu0 0.0
    %1037 = vmatpush1.msra.mxu0 0.0
    %1038 = vmatprep.subr.mxu0 0.0
    %1039 = vmatpush1.msra.mxu0 0.0
    %1040 = vmatprep.subr.mxu0 0.0
    %1041 = vmatpush1.msra.mxu0 0.0
    %1042 = vmatprep.subr.mxu0 0.0
    %1043 = vmatpush1.msra.mxu0 0.0
    %1044 = vmatprep.subr.mxu0 0.0
    %1045 = vmatpush1.msra.mxu0 0.0
    %1046 = vmatprep.subr.mxu0 0.0
    %1047 = vmatpush1.msra.mxu0 0.0
    %1048 = vmatprep.subr.mxu0 0.0
    %1049 = vmatpush1.msra.mxu0 0.0
    %1050 = vmatprep.subr.mxu0 0.0
    %1051 = vmatpush1.msra.mxu0 0.0
    %1052 = vmatprep.subr.mxu0 0.0
    %1053 = vmatpush1.msra.mxu0 0.0
    %1054 = vmatprep.subr.mxu0 0.0
    %1055 = vmatpush1.msra.mxu0 0.0
    %1056 = vmatprep.subr.mxu0 0.0
    %1057 = vmatpush1.msra.mxu0 0.0
    %1058 = vmatprep.subr.mxu0 0.0
    %1059 = vmatpush1.msra.mxu0 0.0
    %1060 = vmatprep.subr.mxu0 0.0
    %1061 = vmatpush1.msra.mxu0 0.0
    %1062 = vmatprep.subr.mxu0 0.0
    %1063 = vmatpush1.msra.mxu0 0.0
    %1064 = vmatprep.subr.mxu0 0.0
    %1065 = vmatpush1.msra.mxu0 0.0
    %1066 = vmatprep.subr.mxu0 0.0
    %1067 = vmatpush1.msra.mxu0 0.0
    %1068 = vmatprep.subr.mxu0 0.0
    %1069 = vmatpush1.msra.mxu0 0.0
    %1070 = vmatprep.subr.mxu0 0.0
    %1071 = vmatpush1.msra.mxu0 0.0
    %1072 = vmatprep.mubr.f32.mxu0 0.0
    %1073 = vmatmul.mubr.f32.gmra.mrb[0].mxu0 %v1006
    %v1074 = vpop.f32.mrb[0].mxu0
    %v1075 = vadd.f32 0.0, %v1074
    %v1076 = vpop.f32.mrb[0].mxu0
    %1077 = vdwg.mxu0
    %1078 = vrot.lane.b32.xlu0 %v234, 120
    %v1079 = vpop.permute.xlu0 %1078
    %1080 = vrot.lane.b32.xlu0 %v234, 88
    %v1081 = vpop.permute.xlu0 %1080
    %v1082 = vsel %vm240, %v1079, 0
    %v1084 = vsel %vm240, %v1081, 0
    %1086 = vmatprep.subr.mxu0 0.0
    %1087 = vmatpush1.xpose.msra.mxu0 %v1084
    %1088 = vmatprep.subr.mxu0 0.0
    %1089 = vmatpush1.xpose.msra.mxu0 0.0
    %1090 = vmatprep.subr.mxu0 0.0
    %1091 = vmatpush1.xpose.msra.mxu0 0.0
    %1092 = vmatprep.subr.mxu0 0.0
    %1093 = vmatpush1.xpose.msra.mxu0 0.0
    %1094 = vmatprep.subr.mxu0 0.0
    %1095 = vmatpush1.xpose.msra.mxu0 0.0
    %1096 = vmatprep.subr.mxu0 0.0
    %1097 = vmatpush1.xpose.msra.mxu0 0.0
    %1098 = vmatprep.subr.mxu0 0.0
    %1099 = vmatpush1.xpose.msra.mxu0 0.0
    %1100 = vmatprep.subr.mxu0 0.0
    %1101 = vmatpush1.xpose.msra.mxu0 0.0
    %1102 = vmatprep.subr.mxu0 0.0
    %1103 = vmatpush1.xpose.msra.mxu0 0.0
    %1104 = vmatprep.subr.mxu0 0.0
    %1105 = vmatpush1.xpose.msra.mxu0 0.0
    %1106 = vmatprep.subr.mxu0 0.0
    %1107 = vmatpush1.xpose.msra.mxu0 0.0
    %1108 = vmatprep.subr.mxu0 0.0
    %1109 = vmatpush1.xpose.msra.mxu0 0.0
    %1110 = vmatprep.subr.mxu0 0.0
    %1111 = vmatpush1.xpose.msra.mxu0 0.0
    %1112 = vmatprep.subr.mxu0 0.0
    %1113 = vmatpush1.xpose.msra.mxu0 0.0
    %1114 = vmatprep.subr.mxu0 0.0
    %1115 = vmatpush1.xpose.msra.mxu0 0.0
    %1116 = vmatprep.subr.mxu0 0.0
    %1117 = vmatpush1.xpose.msra.mxu0 0.0
    %1118 = vmatprep.subr.mxu0 0.0
    %1119 = vmatpush1.xpose.msra.mxu0 0.0
    %1120 = vmatprep.subr.mxu0 0.0
    %1121 = vmatpush1.xpose.msra.mxu0 0.0
    %1122 = vmatprep.subr.mxu0 0.0
    %1123 = vmatpush1.xpose.msra.mxu0 0.0
    %1124 = vmatprep.subr.mxu0 0.0
    %1125 = vmatpush1.xpose.msra.mxu0 0.0
    %1126 = vmatprep.subr.mxu0 0.0
    %1127 = vmatpush1.xpose.msra.mxu0 0.0
    %1128 = vmatprep.subr.mxu0 0.0
    %1129 = vmatpush1.xpose.msra.mxu0 0.0
    %1130 = vmatprep.subr.mxu0 0.0
    %1131 = vmatpush1.xpose.msra.mxu0 0.0
    %1132 = vmatprep.subr.mxu0 0.0
    %1133 = vmatpush1.xpose.msra.mxu0 0.0
    %1134 = vmatprep.subr.mxu0 0.0
    %1135 = vmatpush1.xpose.msra.mxu0 0.0
    %1136 = vmatprep.subr.mxu0 0.0
    %1137 = vmatpush1.xpose.msra.mxu0 0.0
    %1138 = vmatprep.subr.mxu0 0.0
    %1139 = vmatpush1.xpose.msra.mxu0 0.0
    %1140 = vmatprep.subr.mxu0 0.0
    %1141 = vmatpush1.xpose.msra.mxu0 0.0
    %1142 = vmatprep.subr.mxu0 0.0
    %1143 = vmatpush1.xpose.msra.mxu0 0.0
    %1144 = vmatprep.subr.mxu0 0.0
    %1145 = vmatpush1.xpose.msra.mxu0 0.0
    %1146 = vmatprep.subr.mxu0 0.0
    %1147 = vmatpush1.xpose.msra.mxu0 0.0
    %1148 = vmatprep.subr.mxu0 0.0
    %1149 = vmatpush1.xpose.msra.mxu0 0.0
    %1150 = vmatprep.mubr.f32.mxu0 0.0
    %1151 = vmatmul.mubr.f32.gmra.mrb[0].mxu0 %v1082
    %v1152 = vpop.f32.mrb[0].mxu0
    %v1153 = vadd.f32 0.0, %v1152
    %v1154 = vpop.f32.mrb[0].mxu0
    %1155 = vdwg.mxu0
    %v1156 = vsel %vm240, %v1153, -inf
    %1157 = vmax.xlane.f32.xlu0 %v1156
    %v1158 = vpop.xlane.xlu0 %1157
    %v1159 = vsub.f32 %v1153, %v1158
    %v1160 = vmul.f32 %v1159, 1.442695
    %v1161 = vpow.pop %v1160
    %v1162 = vsel %vm240, %v1161, 0.0
    %1163 = vadd.xlane.f32.xlu0 %v1162
    %v1164 = vpop.xlane.xlu0 %1163
    %v1165 = vrcp.pop %v1164
    %v1166 = vmul.f32 %v1161, %v1165
    %1167 = vrot.lane.b32.xlu0 %v234, 56
    %v1168 = vpop.permute.xlu0 %1167
    %v1171 = vsel %vm240, %v1166, 0
    %1173 = vmatprep.subr.mxu0 0.0
    %1174 = vmatpush1.msra.mxu0 %v1168
    %1175 = vmatprep.subr.mxu0 0.0
    %1176 = vmatpush1.msra.mxu0 0.0
    %1177 = vmatprep.subr.mxu0 0.0
    %1178 = vmatpush1.msra.mxu0 0.0
    %1179 = vmatprep.subr.mxu0 0.0
    %1180 = vmatpush1.msra.mxu0 0.0
    %1181 = vmatprep.subr.mxu0 0.0
    %1182 = vmatpush1.msra.mxu0 0.0
    %1183 = vmatprep.subr.mxu0 0.0
    %1184 = vmatpush1.msra.mxu0 0.0
    %1185 = vmatprep.subr.mxu0 0.0
    %1186 = vmatpush1.msra.mxu0 0.0
    %1187 = vmatprep.subr.mxu0 0.0
    %1188 = vmatpush1.msra.mxu0 0.0
    %1189 = vmatprep.subr.mxu0 0.0
    %1190 = vmatpush1.msra.mxu0 0.0
    %1191 = vmatprep.subr.mxu0 0.0
    %1192 = vmatpush1.msra.mxu0 0.0
    %1193 = vmatprep.subr.mxu0 0.0
    %1194 = vmatpush1.msra.mxu0 0.0
    %1195 = vmatprep.subr.mxu0 0.0
    %1196 = vmatpush1.msra.mxu0 0.0
    %1197 = vmatprep.subr.mxu0 0.0
    %1198 = vmatpush1.msra.mxu0 0.0
    %1199 = vmatprep.subr.mxu0 0.0
    %1200 = vmatpush1.msra.mxu0 0.0
    %1201 = vmatprep.subr.mxu0 0.0
    %1202 = vmatpush1.msra.mxu0 0.0
    %1203 = vmatprep.subr.mxu0 0.0
    %1204 = vmatpush1.msra.mxu0 0.0
    %1205 = vmatprep.subr.mxu0 0.0
    %1206 = vmatpush1.msra.mxu0 0.0
    %1207 = vmatprep.subr.mxu0 0.0
    %1208 = vmatpush1.msra.mxu0 0.0
    %1209 = vmatprep.subr.mxu0 0.0
    %1210 = vmatpush1.msra.mxu0 0.0
    %1211 = vmatprep.subr.mxu0 0.0
    %1212 = vmatpush1.msra.mxu0 0.0
    %1213 = vmatprep.subr.mxu0 0.0
    %1214 = vmatpush1.msra.mxu0 0.0
    %1215 = vmatprep.subr.mxu0 0.0
    %1216 = vmatpush1.msra.mxu0 0.0
    %1217 = vmatprep.subr.mxu0 0.0
    %1218 = vmatpush1.msra.mxu0 0.0
    %1219 = vmatprep.subr.mxu0 0.0
    %1220 = vmatpush1.msra.mxu0 0.0
    %1221 = vmatprep.subr.mxu0 0.0
    %1222 = vmatpush1.msra.mxu0 0.0
    %1223 = vmatprep.subr.mxu0 0.0
    %1224 = vmatpush1.msra.mxu0 0.0
    %1225 = vmatprep.subr.mxu0 0.0
    %1226 = vmatpush1.msra.mxu0 0.0
    %1227 = vmatprep.subr.mxu0 0.0
    %1228 = vmatpush1.msra.mxu0 0.0
    %1229 = vmatprep.subr.mxu0 0.0
    %1230 = vmatpush1.msra.mxu0 0.0
    %1231 = vmatprep.subr.mxu0 0.0
    %1232 = vmatpush1.msra.mxu0 0.0
    %1233 = vmatprep.subr.mxu0 0.0
    %1234 = vmatpush1.msra.mxu0 0.0
    %1235 = vmatprep.subr.mxu0 0.0
    %1236 = vmatpush1.msra.mxu0 0.0
    %1237 = vmatprep.mubr.f32.mxu0 0.0
    %1238 = vmatmul.mubr.f32.gmra.mrb[0].mxu0 %v1171
    %v1239 = vpop.f32.mrb[0].mxu0
    %v1240 = vadd.f32 0.0, %v1239
    %v1241 = vpop.f32.mrb[0].mxu0
    %1242 = vdwg.mxu0
    %1243 = vrot.lane.b32.xlu0 %v234, 112
    %v1244 = vpop.permute.xlu0 %1243
    %1245 = vrot.lane.b32.xlu0 %v234, 80
    %v1246 = vpop.permute.xlu0 %1245
    %v1247 = vsel %vm240, %v1244, 0
    %v1249 = vsel %vm240, %v1246, 0
    %1251 = vmatprep.subr.mxu0 0.0
    %1252 = vmatpush1.xpose.msra.mxu0 %v1249
    %1253 = vmatprep.subr.mxu0 0.0
    %1254 = vmatpush1.xpose.msra.mxu0 0.0
    %1255 = vmatprep.subr.mxu0 0.0
    %1256 = vmatpush1.xpose.msra.mxu0 0.0
    %1257 = vmatprep.subr.mxu0 0.0
    %1258 = vmatpush1.xpose.msra.mxu0 0.0
    %1259 = vmatprep.subr.mxu0 0.0
    %1260 = vmatpush1.xpose.msra.mxu0 0.0
    %1261 = vmatprep.subr.mxu0 0.0
    %1262 = vmatpush1.xpose.msra.mxu0 0.0
    %1263 = vmatprep.subr.mxu0 0.0
    %1264 = vmatpush1.xpose.msra.mxu0 0.0
    %1265 = vmatprep.subr.mxu0 0.0
    %1266 = vmatpush1.xpose.msra.mxu0 0.0
    %1267 = vmatprep.subr.mxu0 0.0
    %1268 = vmatpush1.xpose.msra.mxu0 0.0
    %1269 = vmatprep.subr.mxu0 0.0
    %1270 = vmatpush1.xpose.msra.mxu0 0.0
    %1271 = vmatprep.subr.mxu0 0.0
    %1272 = vmatpush1.xpose.msra.mxu0 0.0
    %1273 = vmatprep.subr.mxu0 0.0
    %1274 = vmatpush1.xpose.msra.mxu0 0.0
    %1275 = vmatprep.subr.mxu0 0.0
    %1276 = vmatpush1.xpose.msra.mxu0 0.0
    %1277 = vmatprep.subr.mxu0 0.0
    %1278 = vmatpush1.xpose.msra.mxu0 0.0
    %1279 = vmatprep.subr.mxu0 0.0
    %1280 = vmatpush1.xpose.msra.mxu0 0.0
    %1281 = vmatprep.subr.mxu0 0.0
    %1282 = vmatpush1.xpose.msra.mxu0 0.0
    %1283 = vmatprep.subr.mxu0 0.0
    %1284 = vmatpush1.xpose.msra.mxu0 0.0
    %1285 = vmatprep.subr.mxu0 0.0
    %1286 = vmatpush1.xpose.msra.mxu0 0.0
    %1287 = vmatprep.subr.mxu0 0.0
    %1288 = vmatpush1.xpose.msra.mxu0 0.0
    %1289 = vmatprep.subr.mxu0 0.0
    %1290 = vmatpush1.xpose.msra.mxu0 0.0
    %1291 = vmatprep.subr.mxu0 0.0
    %1292 = vmatpush1.xpose.msra.mxu0 0.0
    %1293 = vmatprep.subr.mxu0 0.0
    %1294 = vmatpush1.xpose.msra.mxu0 0.0
    %1295 = vmatprep.subr.mxu0 0.0
    %1296 = vmatpush1.xpose.msra.mxu0 0.0
    %1297 = vmatprep.subr.mxu0 0.0
    %1298 = vmatpush1.xpose.msra.mxu0 0.0
    %1299 = vmatprep.subr.mxu0 0.0
    %1300 = vmatpush1.xpose.msra.mxu0 0.0
    %1301 = vmatprep.subr.mxu0 0.0
    %1302 = vmatpush1.xpose.msra.mxu0 0.0
    %1303 = vmatprep.subr.mxu0 0.0
    %1304 = vmatpush1.xpose.msra.mxu0 0.0
    %1305 = vmatprep.subr.mxu0 0.0
    %1306 = vmatpush1.xpose.msra.mxu0 0.0
    %1307 = vmatprep.subr.mxu0 0.0
    %1308 = vmatpush1.xpose.msra.mxu0 0.0
    %1309 = vmatprep.subr.mxu0 0.0
    %1310 = vmatpush1.xpose.msra.mxu0 0.0
    %1311 = vmatprep.subr.mxu0 0.0
    %1312 = vmatpush1.xpose.msra.mxu0 0.0
    %1313 = vmatprep.subr.mxu0 0.0
    %1314 = vmatpush1.xpose.msra.mxu0 0.0
    %1315 = vmatprep.mubr.f32.mxu0 0.0
    %1316 = vmatmul.mubr.f32.gmra.mrb[0].mxu0 %v1247
    %v1317 = vpop.f32.mrb[0].mxu0
    %v1318 = vadd.f32 0.0, %v1317
    %v1319 = vpop.f32.mrb[0].mxu0
    %1320 = vdwg.mxu0
    %v1321 = vsel %vm240, %v1318, -inf
    %1322 = vmax.xlane.f32.xlu0 %v1321
    %v1323 = vpop.xlane.xlu0 %1322
    %v1324 = vsub.f32 %v1318, %v1323
    %v1325 = vmul.f32 %v1324, 1.442695
    %v1326 = vpow.pop %v1325
    %v1327 = vsel %vm240, %v1326, 0.0
    %1328 = vadd.xlane.f32.xlu0 %v1327
    %v1329 = vpop.xlane.xlu0 %1328
    %v1330 = vrcp.pop %v1329
    %v1331 = vmul.f32 %v1326, %v1330
    %1332 = vrot.lane.b32.xlu0 %v234, 48
    %v1333 = vpop.permute.xlu0 %1332
    %v1336 = vsel %vm240, %v1331, 0
    %1338 = vmatprep.subr.mxu0 0.0
    %1339 = vmatpush1.msra.mxu0 %v1333
    %1340 = vmatprep.subr.mxu0 0.0
    %1341 = vmatpush1.msra.mxu0 0.0
    %1342 = vmatprep.subr.mxu0 0.0
    %1343 = vmatpush1.msra.mxu0 0.0
    %1344 = vmatprep.subr.mxu0 0.0
    %1345 = vmatpush1.msra.mxu0 0.0
    %1346 = vmatprep.subr.mxu0 0.0
    %1347 = vmatpush1.msra.mxu0 0.0
    %1348 = vmatprep.subr.mxu0 0.0
    %1349 = vmatpush1.msra.mxu0 0.0
    %1350 = vmatprep.subr.mxu0 0.0
    %1351 = vmatpush1.msra.mxu0 0.0
    %1352 = vmatprep.subr.mxu0 0.0
    %1353 = vmatpush1.msra.mxu0 0.0
    %1354 = vmatprep.subr.mxu0 0.0
    %1355 = vmatpush1.msra.mxu0 0.0
    %1356 = vmatprep.subr.mxu0 0.0
    %1357 = vmatpush1.msra.mxu0 0.0
    %1358 = vmatprep.subr.mxu0 0.0
    %1359 = vmatpush1.msra.mxu0 0.0
    %1360 = vmatprep.subr.mxu0 0.0
    %1361 = vmatpush1.msra.mxu0 0.0
    %1362 = vmatprep.subr.mxu0 0.0
    %1363 = vmatpush1.msra.mxu0 0.0
    %1364 = vmatprep.subr.mxu0 0.0
    %1365 = vmatpush1.msra.mxu0 0.0
    %1366 = vmatprep.subr.mxu0 0.0
    %1367 = vmatpush1.msra.mxu0 0.0
    %1368 = vmatprep.subr.mxu0 0.0
    %1369 = vmatpush1.msra.mxu0 0.0
    %1370 = vmatprep.subr.mxu0 0.0
    %1371 = vmatpush1.msra.mxu0 0.0
    %1372 = vmatprep.subr.mxu0 0.0
    %1373 = vmatpush1.msra.mxu0 0.0
    %1374 = vmatprep.subr.mxu0 0.0
    %1375 = vmatpush1.msra.mxu0 0.0
    %1376 = vmatprep.subr.mxu0 0.0
    %1377 = vmatpush1.msra.mxu0 0.0
    %1378 = vmatprep.subr.mxu0 0.0
    %1379 = vmatpush1.msra.mxu0 0.0
    %1380 = vmatprep.subr.mxu0 0.0
    %1381 = vmatpush1.msra.mxu0 0.0
    %1382 = vmatprep.subr.mxu0 0.0
    %1383 = vmatpush1.msra.mxu0 0.0
    %1384 = vmatprep.subr.mxu0 0.0
    %1385 = vmatpush1.msra.mxu0 0.0
    %1386 = vmatprep.subr.mxu0 0.0
    %1387 = vmatpush1.msra.mxu0 0.0
    %1388 = vmatprep.subr.mxu0 0.0
    %1389 = vmatpush1.msra.mxu0 0.0
    %1390 = vmatprep.subr.mxu0 0.0
    %1391 = vmatpush1.msra.mxu0 0.0
    %1392 = vmatprep.subr.mxu0 0.0
    %1393 = vmatpush1.msra.mxu0 0.0
    %1394 = vmatprep.subr.mxu0 0.0
    %1395 = vmatpush1.msra.mxu0 0.0
    %1396 = vmatprep.subr.mxu0 0.0
    %1397 = vmatpush1.msra.mxu0 0.0
    %1398 = vmatprep.subr.mxu0 0.0
    %1399 = vmatpush1.msra.mxu0 0.0
    %1400 = vmatprep.subr.mxu0 0.0
    %1401 = vmatpush1.msra.mxu0 0.0
    %1402 = vmatprep.mubr.f32.mxu0 0.0
    %1403 = vmatmul.mubr.f32.gmra.mrb[0].mxu0 %v1336
    %v1404 = vpop.f32.mrb[0].mxu0
    %v1405 = vadd.f32 0.0, %v1404
    %v1406 = vpop.f32.mrb[0].mxu0
    %1407 = vdwg.mxu0
    %1408 = vrot.lane.b32.xlu0 %v234, 104
    %v1409 = vpop.permute.xlu0 %1408
    %1410 = vrot.lane.b32.xlu0 %v234, 72
    %v1411 = vpop.permute.xlu0 %1410
    %v1412 = vsel %vm240, %v1409, 0
    %v1414 = vsel %vm240, %v1411, 0
    %1416 = vmatprep.subr.mxu0 0.0
    %1417 = vmatpush1.xpose.msra.mxu0 %v1414
    %1418 = vmatprep.subr.mxu0 0.0
    %1419 = vmatpush1.xpose.msra.mxu0 0.0
    %1420 = vmatprep.subr.mxu0 0.0
    %1421 = vmatpush1.xpose.msra.mxu0 0.0
    %1422 = vmatprep.subr.mxu0 0.0
    %1423 = vmatpush1.xpose.msra.mxu0 0.0
    %1424 = vmatprep.subr.mxu0 0.0
    %1425 = vmatpush1.xpose.msra.mxu0 0.0
    %1426 = vmatprep.subr.mxu0 0.0
    %1427 = vmatpush1.xpose.msra.mxu0 0.0
    %1428 = vmatprep.subr.mxu0 0.0
    %1429 = vmatpush1.xpose.msra.mxu0 0.0
    %1430 = vmatprep.subr.mxu0 0.0
    %1431 = vmatpush1.xpose.msra.mxu0 0.0
    %1432 = vmatprep.subr.mxu0 0.0
    %1433 = vmatpush1.xpose.msra.mxu0 0.0
    %1434 = vmatprep.subr.mxu0 0.0
    %1435 = vmatpush1.xpose.msra.mxu0 0.0
    %1436 = vmatprep.subr.mxu0 0.0
    %1437 = vmatpush1.xpose.msra.mxu0 0.0
    %1438 = vmatprep.subr.mxu0 0.0
    %1439 = vmatpush1.xpose.msra.mxu0 0.0
    %1440 = vmatprep.subr.mxu0 0.0
    %1441 = vmatpush1.xpose.msra.mxu0 0.0
    %1442 = vmatprep.subr.mxu0 0.0
    %1443 = vmatpush1.xpose.msra.mxu0 0.0
    %1444 = vmatprep.subr.mxu0 0.0
    %1445 = vmatpush1.xpose.msra.mxu0 0.0
    %1446 = vmatprep.subr.mxu0 0.0
    %1447 = vmatpush1.xpose.msra.mxu0 0.0
    %1448 = vmatprep.subr.mxu0 0.0
    %1449 = vmatpush1.xpose.msra.mxu0 0.0
    %1450 = vmatprep.subr.mxu0 0.0
    %1451 = vmatpush1.xpose.msra.mxu0 0.0
    %1452 = vmatprep.subr.mxu0 0.0
    %1453 = vmatpush1.xpose.msra.mxu0 0.0
    %1454 = vmatprep.subr.mxu0 0.0
    %1455 = vmatpush1.xpose.msra.mxu0 0.0
    %1456 = vmatprep.subr.mxu0 0.0
    %1457 = vmatpush1.xpose.msra.mxu0 0.0
    %1458 = vmatprep.subr.mxu0 0.0
    %1459 = vmatpush1.xpose.msra.mxu0 0.0
    %1460 = vmatprep.subr.mxu0 0.0
    %1461 = vmatpush1.xpose.msra.mxu0 0.0
    %1462 = vmatprep.subr.mxu0 0.0
    %1463 = vmatpush1.xpose.msra.mxu0 0.0
    %1464 = vmatprep.subr.mxu0 0.0
    %1465 = vmatpush1.xpose.msra.mxu0 0.0
    %1466 = vmatprep.subr.mxu0 0.0
    %1467 = vmatpush1.xpose.msra.mxu0 0.0
    %1468 = vmatprep.subr.mxu0 0.0
    %1469 = vmatpush1.xpose.msra.mxu0 0.0
    %1470 = vmatprep.subr.mxu0 0.0
    %1471 = vmatpush1.xpose.msra.mxu0 0.0
    %1472 = vmatprep.subr.mxu0 0.0
    %1473 = vmatpush1.xpose.msra.mxu0 0.0
    %1474 = vmatprep.subr.mxu0 0.0
    %1475 = vmatpush1.xpose.msra.mxu0 0.0
    %1476 = vmatprep.subr.mxu0 0.0
    %1477 = vmatpush1.xpose.msra.mxu0 0.0
    %1478 = vmatprep.subr.mxu0 0.0
    %1479 = vmatpush1.xpose.msra.mxu0 0.0
    %1480 = vmatprep.mubr.f32.mxu0 0.0
    %1481 = vmatmul.mubr.f32.gmra.mrb[0].mxu0 %v1412
    %v1482 = vpop.f32.mrb[0].mxu0
    %v1483 = vadd.f32 0.0, %v1482
    %v1484 = vpop.f32.mrb[0].mxu0
    %1485 = vdwg.mxu0
    %v1486 = vsel %vm240, %v1483, -inf
    %1487 = vmax.xlane.f32.xlu0 %v1486
    %v1488 = vpop.xlane.xlu0 %1487
    %v1489 = vsub.f32 %v1483, %v1488
    %v1490 = vmul.f32 %v1489, 1.442695
    %v1491 = vpow.pop %v1490
    %v1492 = vsel %vm240, %v1491, 0.0
    %1493 = vadd.xlane.f32.xlu0 %v1492
    %v1494 = vpop.xlane.xlu0 %1493
    %v1495 = vrcp.pop %v1494
    %v1496 = vmul.f32 %v1491, %v1495
    %1497 = vrot.lane.b32.xlu0 %v234, 40
    %v1498 = vpop.permute.xlu0 %1497
    %v1501 = vsel %vm240, %v1496, 0
    %1503 = vmatprep.subr.mxu0 0.0
    %1504 = vmatpush1.msra.mxu0 %v1498
    %1505 = vmatprep.subr.mxu0 0.0
    %1506 = vmatpush1.msra.mxu0 0.0
    %1507 = vmatprep.subr.mxu0 0.0
    %1508 = vmatpush1.msra.mxu0 0.0
    %1509 = vmatprep.subr.mxu0 0.0
    %1510 = vmatpush1.msra.mxu0 0.0
    %1511 = vmatprep.subr.mxu0 0.0
    %1512 = vmatpush1.msra.mxu0 0.0
    %1513 = vmatprep.subr.mxu0 0.0
    %1514 = vmatpush1.msra.mxu0 0.0
    %1515 = vmatprep.subr.mxu0 0.0
    %1516 = vmatpush1.msra.mxu0 0.0
    %1517 = vmatprep.subr.mxu0 0.0
    %1518 = vmatpush1.msra.mxu0 0.0
    %1519 = vmatprep.subr.mxu0 0.0
    %1520 = vmatpush1.msra.mxu0 0.0
    %1521 = vmatprep.subr.mxu0 0.0
    %1522 = vmatpush1.msra.mxu0 0.0
    %1523 = vmatprep.subr.mxu0 0.0
    %1524 = vmatpush1.msra.mxu0 0.0
    %1525 = vmatprep.subr.mxu0 0.0
    %1526 = vmatpush1.msra.mxu0 0.0
    %1527 = vmatprep.subr.mxu0 0.0
    %1528 = vmatpush1.msra.mxu0 0.0
    %1529 = vmatprep.subr.mxu0 0.0
    %1530 = vmatpush1.msra.mxu0 0.0
    %1531 = vmatprep.subr.mxu0 0.0
    %1532 = vmatpush1.msra.mxu0 0.0
    %1533 = vmatprep.subr.mxu0 0.0
    %1534 = vmatpush1.msra.mxu0 0.0
    %1535 = vmatprep.subr.mxu0 0.0
    %1536 = vmatpush1.msra.mxu0 0.0
    %1537 = vmatprep.subr.mxu0 0.0
    %1538 = vmatpush1.msra.mxu0 0.0
    %1539 = vmatprep.subr.mxu0 0.0
    %1540 = vmatpush1.msra.mxu0 0.0
    %1541 = vmatprep.subr.mxu0 0.0
    %1542 = vmatpush1.msra.mxu0 0.0
    %1543 = vmatprep.subr.mxu0 0.0
    %1544 = vmatpush1.msra.mxu0 0.0
    %1545 = vmatprep.subr.mxu0 0.0
    %1546 = vmatpush1.msra.mxu0 0.0
    %1547 = vmatprep.subr.mxu0 0.0
    %1548 = vmatpush1.msra.mxu0 0.0
    %1549 = vmatprep.subr.mxu0 0.0
    %1550 = vmatpush1.msra.mxu0 0.0
    %1551 = vmatprep.subr.mxu0 0.0
    %1552 = vmatpush1.msra.mxu0 0.0
    %1553 = vmatprep.subr.mxu0 0.0
    %1554 = vmatpush1.msra.mxu0 0.0
    %1555 = vmatprep.subr.mxu0 0.0
    %1556 = vmatpush1.msra.mxu0 0.0
    %1557 = vmatprep.subr.mxu0 0.0
    %1558 = vmatpush1.msra.mxu0 0.0
    %1559 = vmatprep.subr.mxu0 0.0
    %1560 = vmatpush1.msra.mxu0 0.0
    %1561 = vmatprep.subr.mxu0 0.0
    %1562 = vmatpush1.msra.mxu0 0.0
    %1563 = vmatprep.subr.mxu0 0.0
    %1564 = vmatpush1.msra.mxu0 0.0
    %1565 = vmatprep.subr.mxu0 0.0
    %1566 = vmatpush1.msra.mxu0 0.0
    %1567 = vmatprep.mubr.f32.mxu0 0.0
    %1568 = vmatmul.mubr.f32.gmra.mrb[0].mxu0 %v1501
    %v1569 = vpop.f32.mrb[0].mxu0
    %v1570 = vadd.f32 0.0, %v1569
    %v1571 = vpop.f32.mrb[0].mxu0
    %1572 = vdwg.mxu0
    %1574 = vrot.lane.b32.xlu0 %v1240, 8
    %v1575 = vpop.permute.xlu0 %1574
    %1578 = vrot.lane.b32.xlu0 %v1405, 16
    %v1579 = vpop.permute.xlu0 %1578
    %1582 = vrot.lane.b32.xlu0 %v1570, 24
    %v1583 = vpop.permute.xlu0 %1582
    %v1585 = vsel %vm240, %v1075, %v1575
    %v1586 = vsel %vm910, %v1585, %v1579
    %v1587 = vsel %vm912, %v1586, %v1583
    %v1588 = vlaneseq
    %v1589 = vshrl.u32 %v1588, 7
    %v1590 = vsub.s32 0, %v1589
    %v1591 = vrot.slane %v145, %v1590
    %v1593 = vsel %vm84, %v913, 0
    %v1596 = vsel %vm84, %v1587, 0
    %1598 = vmatprep.subr.mxu0 0.0
    %1599 = vmatpush1.msra.mxu0 %v128
    %1600 = vmatprep.subr.mxu0 0.0
    %1601 = vmatpush1.msra.mxu0 %v129
    %1602 = vmatprep.subr.mxu0 0.0
    %1603 = vmatpush1.msra.mxu0 %v130
    %1604 = vmatprep.subr.mxu0 0.0
    %1605 = vmatpush1.msra.mxu0 %v131
    %1606 = vmatprep.subr.mxu0 0.0
    %1607 = vmatpush1.msra.mxu0 0.0
    %1608 = vmatprep.subr.mxu0 0.0
    %1609 = vmatpush1.msra.mxu0 0.0
    %1610 = vmatprep.subr.mxu0 0.0
    %1611 = vmatpush1.msra.mxu0 0.0
    %1612 = vmatprep.subr.mxu0 0.0
    %1613 = vmatpush1.msra.mxu0 0.0
    %1614 = vmatprep.subr.mxu0 0.0
    %1615 = vmatpush1.msra.mxu0 0.0
    %1616 = vmatprep.subr.mxu0 0.0
    %1617 = vmatpush1.msra.mxu0 0.0
    %1618 = vmatprep.subr.mxu0 0.0
    %1619 = vmatpush1.msra.mxu0 0.0
    %1620 = vmatprep.subr.mxu0 0.0
    %1621 = vmatpush1.msra.mxu0 0.0
    %1622 = vmatprep.subr.mxu0 0.0
    %1623 = vmatpush1.msra.mxu0 0.0
    %1624 = vmatprep.subr.mxu0 0.0
    %1625 = vmatpush1.msra.mxu0 0.0
    %1626 = vmatprep.subr.mxu0 0.0
    %1627 = vmatpush1.msra.mxu0 0.0
    %1628 = vmatprep.subr.mxu0 0.0
    %1629 = vmatpush1.msra.mxu0 0.0
    %1630 = vmatprep.subr.mxu0 0.0
    %1631 = vmatpush1.msra.mxu0 0.0
    %1632 = vmatprep.subr.mxu0 0.0
    %1633 = vmatpush1.msra.mxu0 0.0
    %1634 = vmatprep.subr.mxu0 0.0
    %1635 = vmatpush1.msra.mxu0 0.0
    %1636 = vmatprep.subr.mxu0 0.0
    %1637 = vmatpush1.msra.mxu0 0.0
    %1638 = vmatprep.subr.mxu0 0.0
    %1639 = vmatpush1.msra.mxu0 0.0
    %1640 = vmatprep.subr.mxu0 0.0
    %1641 = vmatpush1.msra.mxu0 0.0
    %1642 = vmatprep.subr.mxu0 0.0
    %1643 = vmatpush1.msra.mxu0 0.0
    %1644 = vmatprep.subr.mxu0 0.0
    %1645 = vmatpush1.msra.mxu0 0.0
    %1646 = vmatprep.subr.mxu0 0.0
    %1647 = vmatpush1.msra.mxu0 0.0
    %1648 = vmatprep.subr.mxu0 0.0
    %1649 = vmatpush1.msra.mxu0 0.0
    %1650 = vmatprep.subr.mxu0 0.0
    %1651 = vmatpush1.msra.mxu0 0.0
    %1652 = vmatprep.subr.mxu0 0.0
    %1653 = vmatpush1.msra.mxu0 0.0
    %1654 = vmatprep.subr.mxu0 0.0
    %1655 = vmatpush1.msra.mxu0 0.0
    %1656 = vmatprep.subr.mxu0 0.0
    %1657 = vmatpush1.msra.mxu0 0.0
    %1658 = vmatprep.subr.mxu0 0.0
    %1659 = vmatpush1.msra.mxu0 0.0
    %1660 = vmatprep.subr.mxu0 0.0
    %1661 = vmatpush1.msra.mxu0 0.0
    %1662 = vmatprep.mubr.f32.mxu0 0.0
    %1663 = vmatmul.mubr.f32.gmra.mrb[0].mxu0 %v1593
    %v1664 = vpop.f32.mrb[0].mxu0
    %v1665 = vadd.f32 %v1591, %v1664
    %v1666 = vpop.f32.mrb[0].mxu0
    %1667 = vmatprep.mubr.f32.mxu0 0.0
    %1668 = vmatmul.mubr.f32.gmra.mrb[0].mxu0 %v1596
    %v1669 = vpop.f32.mrb[0].mxu0
    %v1670 = vadd.f32 %v1591, %v1669
    %v1671 = vpop.f32.mrb[0].mxu0
    %1672 = vdwg.mxu0
    %v1673 = vadd.f32 %v122, %v1665
    %v1674 = vadd.f32 %v123, %v1670
    %v1675 = vsel %vm84, %v1673, 0.0
    %1676 = vadd.xlane.f32.xlu0 %v1675
    %v1677 = vpop.xlane.xlu0 %1676
    %v1678 = vsel %vm84, %v1674, 0.0
    %1679 = vadd.xlane.f32.xlu0 %v1678
    %v1680 = vpop.xlane.xlu0 %1679
    %v1681 = vmul.f32 %v1677, %v91
    %v1682 = vmul.f32 %v1680, %v91
    %v1683 = vsub.f32 %v1673, %v1681
    %v1684 = vsub.f32 %v1674, %v1682
    %v1685 = vmul.f32 %v1683, %v1683
    %v1686 = vmul.f32 %v1684, %v1684
    %v1687 = vsel %vm84, %v1685, 0.0
    %1688 = vadd.xlane.f32.xlu0 %v1687
    %v1689 = vpop.xlane.xlu0 %1688
    %v1690 = vsel %vm84, %v1686, 0.0
    %1691 = vadd.xlane.f32.xlu0 %v1690
    %v1692 = vpop.xlane.xlu0 %1691
    %v1693 = vmul.f32 %v1689, %v91
    %v1694 = vmul.f32 %v1692, %v91
    %v1695 = vadd.f32 %v1693, 1e-05
    %v1696 = vadd.f32 %v1694, 1e-05
    %v1697 = vrsqrt.pop %v1695
    %v1698 = vrsqrt.pop %v1696
    %v1699 = vmul.f32 %v1683, %v1697
    %v1700 = vmul.f32 %v1684, %v1698
    %v1701 = vlaneseq
    %v1702 = vshrl.u32 %v1701, 7
    %v1703 = vsub.s32 0, %v1702
    %v1704 = vrot.slane %v146, %v1703
    %v1705 = vmul.f32 %v1699, %v1704
    %v1706 = vmul.f32 %v1700, %v1704
    %v1707 = vlaneseq
    %v1708 = vshrl.u32 %v1707, 7
    %v1709 = vsub.s32 0, %v1708
    %v1710 = vrot.slane %v147, %v1709
    %v1711 = vadd.f32 %v1705, %v1710
    %v1712 = vadd.f32 %v1706, %v1710
    %v1713 = vlaneseq
    %v1714 = vshrl.u32 %v1713, 7
    %v1715 = vsub.s32 0, %v1714
    %v1716 = vrot.slane %v148, %v1715
    %v1718 = vsel %vm84, %v1711, 0
    %v1721 = vsel %vm84, %v1712, 0
    %1723 = vmatprep.subr.mxu0 0.0
    %1724 = vmatpush1.msra.mxu0 %v132
    %1725 = vmatprep.subr.mxu0 0.0
    %1726 = vmatpush1.msra.mxu0 %v133
    %1727 = vmatprep.subr.mxu0 0.0
    %1728 = vmatpush1.msra.mxu0 %v134
    %1729 = vmatprep.subr.mxu0 0.0
    %1730 = vmatpush1.msra.mxu0 %v135
    %1731 = vmatprep.subr.mxu0 0.0
    %1732 = vmatpush1.msra.mxu0 0.0
    %1733 = vmatprep.subr.mxu0 0.0
    %1734 = vmatpush1.msra.mxu0 0.0
    %1735 = vmatprep.subr.mxu0 0.0
    %1736 = vmatpush1.msra.mxu0 0.0
    %1737 = vmatprep.subr.mxu0 0.0
    %1738 = vmatpush1.msra.mxu0 0.0
    %1739 = vmatprep.subr.mxu0 0.0
    %1740 = vmatpush1.msra.mxu0 0.0
    %1741 = vmatprep.subr.mxu0 0.0
    %1742 = vmatpush1.msra.mxu0 0.0
    %1743 = vmatprep.subr.mxu0 0.0
    %1744 = vmatpush1.msra.mxu0 0.0
    %1745 = vmatprep.subr.mxu0 0.0
    %1746 = vmatpush1.msra.mxu0 0.0
    %1747 = vmatprep.subr.mxu0 0.0
    %1748 = vmatpush1.msra.mxu0 0.0
    %1749 = vmatprep.subr.mxu0 0.0
    %1750 = vmatpush1.msra.mxu0 0.0
    %1751 = vmatprep.subr.mxu0 0.0
    %1752 = vmatpush1.msra.mxu0 0.0
    %1753 = vmatprep.subr.mxu0 0.0
    %1754 = vmatpush1.msra.mxu0 0.0
    %1755 = vmatprep.subr.mxu0 0.0
    %1756 = vmatpush1.msra.mxu0 0.0
    %1757 = vmatprep.subr.mxu0 0.0
    %1758 = vmatpush1.msra.mxu0 0.0
    %1759 = vmatprep.subr.mxu0 0.0
    %1760 = vmatpush1.msra.mxu0 0.0
    %1761 = vmatprep.subr.mxu0 0.0
    %1762 = vmatpush1.msra.mxu0 0.0
    %1763 = vmatprep.subr.mxu0 0.0
    %1764 = vmatpush1.msra.mxu0 0.0
    %1765 = vmatprep.subr.mxu0 0.0
    %1766 = vmatpush1.msra.mxu0 0.0
    %1767 = vmatprep.subr.mxu0 0.0
    %1768 = vmatpush1.msra.mxu0 0.0
    %1769 = vmatprep.subr.mxu0 0.0
    %1770 = vmatpush1.msra.mxu0 0.0
    %1771 = vmatprep.subr.mxu0 0.0
    %1772 = vmatpush1.msra.mxu0 0.0
    %1773 = vmatprep.subr.mxu0 0.0
    %1774 = vmatpush1.msra.mxu0 0.0
    %1775 = vmatprep.subr.mxu0 0.0
    %1776 = vmatpush1.msra.mxu0 0.0
    %1777 = vmatprep.subr.mxu0 0.0
    %1778 = vmatpush1.msra.mxu0 0.0
    %1779 = vmatprep.subr.mxu0 0.0
    %1780 = vmatpush1.msra.mxu0 0.0
    %1781 = vmatprep.subr.mxu0 0.0
    %1782 = vmatpush1.msra.mxu0 0.0
    %1783 = vmatprep.subr.mxu0 0.0
    %1784 = vmatpush1.msra.mxu0 0.0
    %1785 = vmatprep.subr.mxu0 0.0
    %1786 = vmatpush1.msra.mxu0 0.0
    %1787 = vmatprep.mubr.f32.mxu0 0.0
    %1788 = vmatmul.mubr.f32.gmra.mrb[0].mxu0 %v1718
    %v1789 = vpop.f32.mrb[0].mxu0
    %v1790 = vadd.f32 %v1716, %v1789
    %v1791 = vpop.f32.mrb[0].mxu0
    %1792 = vmatprep.mubr.f32.mxu0 0.0
    %1793 = vmatmul.mubr.f32.gmra.mrb[0].mxu0 %v1721
    %v1794 = vpop.f32.mrb[0].mxu0
    %v1795 = vadd.f32 %v1716, %v1794
    %v1796 = vpop.f32.mrb[0].mxu0
    %1797 = vdwg.mxu0
    %v1798 = vmax.f32 %v1790, 0.0
    %v1799 = vmax.f32 %v1795, 0.0
    %v1800 = vlaneseq
    %v1801 = vshrl.u32 %v1800, 7
    %v1802 = vsub.s32 0, %v1801
    %v1803 = vrot.slane %v149, %v1802
    %vm1804 = vcmask 523264
    %v1806 = vsel %vm1804, %v1798, 0
    %v1809 = vsel %vm1804, %v1799, 0
    %1811 = vmatprep.subr.mxu0 0.0
    %1812 = vmatpush1.msra.mxu0 %v136
    %1813 = vmatprep.subr.mxu0 0.0
    %1814 = vmatpush1.msra.mxu0 %v137
    %1815 = vmatprep.subr.mxu0 0.0
    %1816 = vmatpush1.msra.mxu0 %v138
    %1817 = vmatprep.subr.mxu0 0.0
    %1818 = vmatpush1.msra.mxu0 %v139
    %1819 = vmatprep.subr.mxu0 0.0
    %1820 = vmatpush1.msra.mxu0 %v140
    %1821 = vmatprep.subr.mxu0 0.0
    %1822 = vmatpush1.msra.mxu0 %v141
    %1823 = vmatprep.subr.mxu0 0.0
    %1824 = vmatpush1.msra.mxu0 %v142
    %1825 = vmatprep.subr.mxu0 0.0
    %1826 = vmatpush1.msra.mxu0 %v143
    %1827 = vmatprep.subr.mxu0 0.0
    %1828 = vmatpush1.msra.mxu0 0.0
    %1829 = vmatprep.subr.mxu0 0.0
    %1830 = vmatpush1.msra.mxu0 0.0
    %1831 = vmatprep.subr.mxu0 0.0
    %1832 = vmatpush1.msra.mxu0 0.0
    %1833 = vmatprep.subr.mxu0 0.0
    %1834 = vmatpush1.msra.mxu0 0.0
    %1835 = vmatprep.subr.mxu0 0.0
    %1836 = vmatpush1.msra.mxu0 0.0
    %1837 = vmatprep.subr.mxu0 0.0
    %1838 = vmatpush1.msra.mxu0 0.0
    %1839 = vmatprep.subr.mxu0 0.0
    %1840 = vmatpush1.msra.mxu0 0.0
    %1841 = vmatprep.subr.mxu0 0.0
    %1842 = vmatpush1.msra.mxu0 0.0
    %1843 = vmatprep.subr.mxu0 0.0
    %1844 = vmatpush1.msra.mxu0 0.0
    %1845 = vmatprep.subr.mxu0 0.0
    %1846 = vmatpush1.msra.mxu0 0.0
    %1847 = vmatprep.subr.mxu0 0.0
    %1848 = vmatpush1.msra.mxu0 0.0
    %1849 = vmatprep.subr.mxu0 0.0
    %1850 = vmatpush1.msra.mxu0 0.0
    %1851 = vmatprep.subr.mxu0 0.0
    %1852 = vmatpush1.msra.mxu0 0.0
    %1853 = vmatprep.subr.mxu0 0.0
    %1854 = vmatpush1.msra.mxu0 0.0
    %1855 = vmatprep.subr.mxu0 0.0
    %1856 = vmatpush1.msra.mxu0 0.0
    %1857 = vmatprep.subr.mxu0 0.0
    %1858 = vmatpush1.msra.mxu0 0.0
    %1859 = vmatprep.subr.mxu0 0.0
    %1860 = vmatpush1.msra.mxu0 0.0
    %1861 = vmatprep.subr.mxu0 0.0
    %1862 = vmatpush1.msra.mxu0 0.0
    %1863 = vmatprep.subr.mxu0 0.0
    %1864 = vmatpush1.msra.mxu0 0.0
    %1865 = vmatprep.subr.mxu0 0.0
    %1866 = vmatpush1.msra.mxu0 0.0
    %1867 = vmatprep.subr.mxu0 0.0
    %1868 = vmatpush1.msra.mxu0 0.0
    %1869 = vmatprep.subr.mxu0 0.0
    %1870 = vmatpush1.msra.mxu0 0.0
    %1871 = vmatprep.subr.mxu0 0.0
    %1872 = vmatpush1.msra.mxu0 0.0
    %1873 = vmatprep.subr.mxu0 0.0
    %1874 = vmatpush1.msra.mxu0 0.0
    %1875 = vmatprep.mubr.f32.mxu0 0.0
    %1876 = vmatmul.mubr.f32.gmra.mrb[0].mxu0 %v1806
    %v1877 = vpop.f32.mrb[0].mxu0
    %v1878 = vadd.f32 %v1803, %v1877
    %v1879 = vpop.f32.mrb[0].mxu0
    %1880 = vmatprep.mubr.f32.mxu0 0.0
    %1881 = vmatmul.mubr.f32.gmra.mrb[0].mxu0 %v1809
    %v1882 = vpop.f32.mrb[0].mxu0
    %v1883 = vadd.f32 %v1803, %v1882
    %v1884 = vpop.f32.mrb[0].mxu0
    %1885 = vdwg.mxu0
    %v1886 = vadd.f32 %v1711, %v1878
    %v1887 = vadd.f32 %v1712, %v1883
    %v1888 = vsel %vm84, %v1886, 0.0
    %1889 = vadd.xlane.f32.xlu0 %v1888
    %v1890 = vpop.xlane.xlu0 %1889
    %v1891 = vsel %vm84, %v1887, 0.0
    %1892 = vadd.xlane.f32.xlu0 %v1891
    %v1893 = vpop.xlane.xlu0 %1892
    %v1894 = vmul.f32 %v1890, %v91
    %v1895 = vmul.f32 %v1893, %v91
    %v1896 = vsub.f32 %v1886, %v1894
    %v1897 = vsub.f32 %v1887, %v1895
    %v1898 = vmul.f32 %v1896, %v1896
    %v1899 = vmul.f32 %v1897, %v1897
    %v1900 = vsel %vm84, %v1898, 0.0
    %1901 = vadd.xlane.f32.xlu0 %v1900
    %v1902 = vpop.xlane.xlu0 %1901
    %v1903 = vsel %vm84, %v1899, 0.0
    %1904 = vadd.xlane.f32.xlu0 %v1903
    %v1905 = vpop.xlane.xlu0 %1904
    %v1906 = vmul.f32 %v1902, %v91
    %v1907 = vmul.f32 %v1905, %v91
    %v1908 = vadd.f32 %v1906, 1e-05
    %v1909 = vadd.f32 %v1907, 1e-05
    %v1910 = vrsqrt.pop %v1908
    %v1911 = vrsqrt.pop %v1909
    %v1912 = vmul.f32 %v1896, %v1910
    %v1913 = vmul.f32 %v1897, %v1911
    %v1914 = vlaneseq
    %v1915 = vshrl.u32 %v1914, 7
    %v1916 = vsub.s32 0, %v1915
    %v1917 = vrot.slane %v150, %v1916
    %v1918 = vmul.f32 %v1912, %v1917
    %v1919 = vmul.f32 %v1913, %v1917
    %v1920 = vlaneseq
    %v1921 = vshrl.u32 %v1920, 7
    %v1922 = vsub.s32 0, %v1921
    %v1923 = vrot.slane %v151, %v1922
    %v1924 = vadd.f32 %v1918, %v1923
    %v1925 = vadd.f32 %v1919, %v1923
    %v1926 = vld [vmem:[%s7] sm:$0xff]
    %v1927 = vld [vmem:[%s7 + $0x8] sm:$0xff]
    %v1928 = vld [vmem:[%s7 + $0x10] sm:$0xff]
    %v1929 = vld [vmem:[%s7 + $0x18] sm:$0xff]
    %v1930 = vld [vmem:[#allocation7] sm:$0xff]
    %v1931 = vld [vmem:[#allocation7 + $0x8] sm:$0xff]
    %v1932 = vld [vmem:[#allocation7 + $0x10] sm:$0xff]
    %v1933 = vld [vmem:[#allocation7 + $0x18] sm:$0xff]
    %v1934 = vld [vmem:[%s9] sm:$0xff]
    %v1935 = vld [vmem:[%s9 + $0x8] sm:$0xff]
    %v1936 = vld [vmem:[%s9 + $0x10] sm:$0xff]
    %v1937 = vld [vmem:[%s9 + $0x18] sm:$0xff]
    %v1938 = vld [vmem:[%s10] sm:$0xff]
    %v1939 = vld [vmem:[%s10 + $0x8] sm:$0xff]
    %v1940 = vld [vmem:[%s10 + $0x10] sm:$0xff]
    %v1941 = vld [vmem:[%s10 + $0x18] sm:$0xff]
    %v1942 = vld [vmem:[%s10 + $0x20] sm:$0xff]
    %v1943 = vld [vmem:[%s10 + $0x28] sm:$0xff]
    %v1944 = vld [vmem:[%s10 + $0x30] sm:$0xff]
    %v1945 = vld [vmem:[%s10 + $0x38] sm:$0xff]
    %v1946 = vld [vmem:[#allocation5 + $0xb] sm:$0x1]
    %v1947 = vld [vmem:[#allocation5 + $0xc] sm:$0x1]
    %v1948 = vld [vmem:[#allocation5 + $0xd] sm:$0x1]
    %v1949 = vld [vmem:[#allocation5 + $0xe] sm:$0x1]
    %v1950 = vld [vmem:[#allocation5 + $0xf] sm:$0x1]
    %v1951 = vld [vmem:[#allocation5 + $0x10] sm:$0x1]
    %v1952 = vld [vmem:[#allocation5 + $0x11] sm:$0x1]
    %v1953 = vld [vmem:[#allocation5 + $0x12] sm:$0x1]
    %v1954 = vlaneseq
    %v1955 = vshrl.u32 %v1954, 7
    %v1956 = vsub.s32 0, %v1955
    %v1957 = vrot.slane %v1946, %v1956
    %v1959 = vsel %vm84, %v1924, 0
    %v1962 = vsel %vm84, %v1925, 0
    %1964 = vmatprep.subr.mxu0 0.0
    %1965 = vmatpush1.msra.mxu0 %v1926
    %1966 = vmatprep.subr.mxu0 0.0
    %1967 = vmatpush1.msra.mxu0 %v1927
    %1968 = vmatprep.subr.mxu0 0.0
    %1969 = vmatpush1.msra.mxu0 %v1928
    %1970 = vmatprep.subr.mxu0 0.0
    %1971 = vmatpush1.msra.mxu0 %v1929
    %1972 = vmatprep.subr.mxu0 0.0
    %1973 = vmatpush1.msra.mxu0 0.0
    %1974 = vmatprep.subr.mxu0 0.0
    %1975 = vmatpush1.msra.mxu0 0.0
    %1976 = vmatprep.subr.mxu0 0.0
    %1977 = vmatpush1.msra.mxu0 0.0
    %1978 = vmatprep.subr.mxu0 0.0
    %1979 = vmatpush1.msra.mxu0 0.0
    %1980 = vmatprep.subr.mxu0 0.0
    %1981 = vmatpush1.msra.mxu0 0.0
    %1982 = vmatprep.subr.mxu0 0.0
    %1983 = vmatpush1.msra.mxu0 0.0
    %1984 = vmatprep.subr.mxu0 0.0
    %1985 = vmatpush1.msra.mxu0 0.0
    %1986 = vmatprep.subr.mxu0 0.0
    %1987 = vmatpush1.msra.mxu0 0.0
    %1988 = vmatprep.subr.mxu0 0.0
    %1989 = vmatpush1.msra.mxu0 0.0
    %1990 = vmatprep.subr.mxu0 0.0
    %1991 = vmatpush1.msra.mxu0 0.0
    %1992 = vmatprep.subr.mxu0 0.0
    %1993 = vmatpush1.msra.mxu0 0.0
    %1994 = vmatprep.subr.mxu0 0.0
    %1995 = vmatpush1.msra.mxu0 0.0
    %1996 = vmatprep.subr.mxu0 0.0
    %1997 = vmatpush1.msra.mxu0 0.0
    %1998 = vmatprep.subr.mxu0 0.0
    %1999 = vmatpush1.msra.mxu0 0.0
    %2000 = vmatprep.subr.mxu0 0.0
    %2001 = vmatpush1.msra.mxu0 0.0
    %2002 = vmatprep.subr.mxu0 0.0
    %2003 = vmatpush1.msra.mxu0 0.0
    %2004 = vmatprep.subr.mxu0 0.0
    %2005 = vmatpush1.msra.mxu0 0.0
    %2006 = vmatprep.subr.mxu0 0.0
    %2007 = vmatpush1.msra.mxu0 0.0
    %2008 = vmatprep.subr.mxu0 0.0
    %2009 = vmatpush1.msra.mxu0 0.0
    %2010 = vmatprep.subr.mxu0 0.0
    %2011 = vmatpush1.msra.mxu0 0.0
    %2012 = vmatprep.subr.mxu0 0.0
    %2013 = vmatpush1.msra.mxu0 0.0
    %2014 = vmatprep.subr.mxu0 0.0
    %2015 = vmatpush1.msra.mxu0 0.0
    %2016 = vmatprep.subr.mxu0 0.0
    %2017 = vmatpush1.msra.mxu0 0.0
    %2018 = vmatprep.subr.mxu0 0.0
    %2019 = vmatpush1.msra.mxu0 0.0
    %2020 = vmatprep.subr.mxu0 0.0
    %2021 = vmatpush1.msra.mxu0 0.0
    %2022 = vmatprep.subr.mxu0 0.0
    %2023 = vmatpush1.msra.mxu0 0.0
    %2024 = vmatprep.subr.mxu0 0.0
    %2025 = vmatpush1.msra.mxu0 0.0
    %2026 = vmatprep.subr.mxu0 0.0
    %2027 = vmatpush1.msra.mxu0 0.0
    %2028 = vmatprep.mubr.f32.mxu0 0.0
    %2029 = vmatmul.mubr.f32.gmra.mrb[0].mxu0 %v1959
    %v2030 = vpop.f32.mrb[0].mxu0
    %v2031 = vadd.f32 %v1957, %v2030
    %v2032 = vpop.f32.mrb[0].mxu0
    %2033 = vmatprep.mubr.f32.mxu0 0.0
    %2034 = vmatmul.mubr.f32.gmra.mrb[0].mxu0 %v1962
    %v2035 = vpop.f32.mrb[0].mxu0
    %v2036 = vadd.f32 %v1957, %v2035
    %v2037 = vpop.f32.mrb[0].mxu0
    %2038 = vdwg.mxu0
    %2040 = vrot.lane.b32.xlu0 %v2031, 96
    %v2041 = vpop.permute.xlu0 %2040
    %v2042 = vsel %vm240, %v2031, 0
    %v2044 = vsel %vm240, %v2041, 0
    %2046 = vmatprep.subr.mxu0 0.0
    %2047 = vmatpush1.xpose.msra.mxu0 %v2044
    %2048 = vmatprep.subr.mxu0 0.0
    %2049 = vmatpush1.xpose.msra.mxu0 0.0
    %2050 = vmatprep.subr.mxu0 0.0
    %2051 = vmatpush1.xpose.msra.mxu0 0.0
    %2052 = vmatprep.subr.mxu0 0.0
    %2053 = vmatpush1.xpose.msra.mxu0 0.0
    %2054 = vmatprep.subr.mxu0 0.0
    %2055 = vmatpush1.xpose.msra.mxu0 0.0
    %2056 = vmatprep.subr.mxu0 0.0
    %2057 = vmatpush1.xpose.msra.mxu0 0.0
    %2058 = vmatprep.subr.mxu0 0.0
    %2059 = vmatpush1.xpose.msra.mxu0 0.0
    %2060 = vmatprep.subr.mxu0 0.0
    %2061 = vmatpush1.xpose.msra.mxu0 0.0
    %2062 = vmatprep.subr.mxu0 0.0
    %2063 = vmatpush1.xpose.msra.mxu0 0.0
    %2064 = vmatprep.subr.mxu0 0.0
    %2065 = vmatpush1.xpose.msra.mxu0 0.0
    %2066 = vmatprep.subr.mxu0 0.0
    %2067 = vmatpush1.xpose.msra.mxu0 0.0
    %2068 = vmatprep.subr.mxu0 0.0
    %2069 = vmatpush1.xpose.msra.mxu0 0.0
    %2070 = vmatprep.subr.mxu0 0.0
    %2071 = vmatpush1.xpose.msra.mxu0 0.0
    %2072 = vmatprep.subr.mxu0 0.0
    %2073 = vmatpush1.xpose.msra.mxu0 0.0
    %2074 = vmatprep.subr.mxu0 0.0
    %2075 = vmatpush1.xpose.msra.mxu0 0.0
    %2076 = vmatprep.subr.mxu0 0.0
    %2077 = vmatpush1.xpose.msra.mxu0 0.0
    %2078 = vmatprep.subr.mxu0 0.0
    %2079 = vmatpush1.xpose.msra.mxu0 0.0
    %2080 = vmatprep.subr.mxu0 0.0
    %2081 = vmatpush1.xpose.msra.mxu0 0.0
    %2082 = vmatprep.subr.mxu0 0.0
    %2083 = vmatpush1.xpose.msra.mxu0 0.0
    %2084 = vmatprep.subr.mxu0 0.0
    %2085 = vmatpush1.xpose.msra.mxu0 0.0
    %2086 = vmatprep.subr.mxu0 0.0
    %2087 = vmatpush1.xpose.msra.mxu0 0.0
    %2088 = vmatprep.subr.mxu0 0.0
    %2089 = vmatpush1.xpose.msra.mxu0 0.0
    %2090 = vmatprep.subr.mxu0 0.0
    %2091 = vmatpush1.xpose.msra.mxu0 0.0
    %2092 = vmatprep.subr.mxu0 0.0
    %2093 = vmatpush1.xpose.msra.mxu0 0.0
    %2094 = vmatprep.subr.mxu0 0.0
    %2095 = vmatpush1.xpose.msra.mxu0 0.0
    %2096 = vmatprep.subr.mxu0 0.0
    %2097 = vmatpush1.xpose.msra.mxu0 0.0
    %2098 = vmatprep.subr.mxu0 0.0
    %2099 = vmatpush1.xpose.msra.mxu0 0.0
    %2100 = vmatprep.subr.mxu0 0.0
    %2101 = vmatpush1.xpose.msra.mxu0 0.0
    %2102 = vmatprep.subr.mxu0 0.0
    %2103 = vmatpush1.xpose.msra.mxu0 0.0
    %2104 = vmatprep.subr.mxu0 0.0
    %2105 = vmatpush1.xpose.msra.mxu0 0.0
    %2106 = vmatprep.subr.mxu0 0.0
    %2107 = vmatpush1.xpose.msra.mxu0 0.0
    %2108 = vmatprep.subr.mxu0 0.0
    %2109 = vmatpush1.xpose.msra.mxu0 0.0
    %2110 = vmatprep.mubr.f32.mxu0 0.0
    %2111 = vmatmul.mubr.f32.gmra.mrb[0].mxu0 %v2042
    %v2112 = vpop.f32.mrb[0].mxu0
    %v2113 = vadd.f32 0.0, %v2112
    %v2114 = vpop.f32.mrb[0].mxu0
    %2115 = vdwg.mxu0
    %v2116 = vsel %vm240, %v2113, -inf
    %2117 = vmax.xlane.f32.xlu0 %v2116
    %v2118 = vpop.xlane.xlu0 %2117
    %v2119 = vsub.f32 %v2113, %v2118
    %v2120 = vmul.f32 %v2119, 1.442695
    %v2121 = vpow.pop %v2120
    %v2122 = vsel %vm240, %v2121, 0.0
    %2123 = vadd.xlane.f32.xlu0 %v2122
    %v2124 = vpop.xlane.xlu0 %2123
    %v2125 = vrcp.pop %v2124
    %v2126 = vmul.f32 %v2121, %v2125
    %2127 = vrot.lane.b32.xlu0 %v2031, 64
    %v2128 = vpop.permute.xlu0 %2127
    %v2131 = vsel %vm240, %v2126, 0
    %2133 = vmatprep.subr.mxu0 0.0
    %2134 = vmatpush1.msra.mxu0 %v2128
    %2135 = vmatprep.subr.mxu0 0.0
    %2136 = vmatpush1.msra.mxu0 0.0
    %2137 = vmatprep.subr.mxu0 0.0
    %2138 = vmatpush1.msra.mxu0 0.0
    %2139 = vmatprep.subr.mxu0 0.0
    %2140 = vmatpush1.msra.mxu0 0.0
    %2141 = vmatprep.subr.mxu0 0.0
    %2142 = vmatpush1.msra.mxu0 0.0
    %2143 = vmatprep.subr.mxu0 0.0
    %2144 = vmatpush1.msra.mxu0 0.0
    %2145 = vmatprep.subr.mxu0 0.0
    %2146 = vmatpush1.msra.mxu0 0.0
    %2147 = vmatprep.subr.mxu0 0.0
    %2148 = vmatpush1.msra.mxu0 0.0
    %2149 = vmatprep.subr.mxu0 0.0
    %2150 = vmatpush1.msra.mxu0 0.0
    %2151 = vmatprep.subr.mxu0 0.0
    %2152 = vmatpush1.msra.mxu0 0.0
    %2153 = vmatprep.subr.mxu0 0.0
    %2154 = vmatpush1.msra.mxu0 0.0
    %2155 = vmatprep.subr.mxu0 0.0
    %2156 = vmatpush1.msra.mxu0 0.0
    %2157 = vmatprep.subr.mxu0 0.0
    %2158 = vmatpush1.msra.mxu0 0.0
    %2159 = vmatprep.subr.mxu0 0.0
    %2160 = vmatpush1.msra.mxu0 0.0
    %2161 = vmatprep.subr.mxu0 0.0
    %2162 = vmatpush1.msra.mxu0 0.0
    %2163 = vmatprep.subr.mxu0 0.0
    %2164 = vmatpush1.msra.mxu0 0.0
    %2165 = vmatprep.subr.mxu0 0.0
    %2166 = vmatpush1.msra.mxu0 0.0
    %2167 = vmatprep.subr.mxu0 0.0
    %2168 = vmatpush1.msra.mxu0 0.0
    %2169 = vmatprep.subr.mxu0 0.0
    %2170 = vmatpush1.msra.mxu0 0.0
    %2171 = vmatprep.subr.mxu0 0.0
    %2172 = vmatpush1.msra.mxu0 0.0
    %2173 = vmatprep.subr.mxu0 0.0
    %2174 = vmatpush1.msra.mxu0 0.0
    %2175 = vmatprep.subr.mxu0 0.0
    %2176 = vmatpush1.msra.mxu0 0.0
    %2177 = vmatprep.subr.mxu0 0.0
    %2178 = vmatpush1.msra.mxu0 0.0
    %2179 = vmatprep.subr.mxu0 0.0
    %2180 = vmatpush1.msra.mxu0 0.0
    %2181 = vmatprep.subr.mxu0 0.0
    %2182 = vmatpush1.msra.mxu0 0.0
    %2183 = vmatprep.subr.mxu0 0.0
    %2184 = vmatpush1.msra.mxu0 0.0
    %2185 = vmatprep.subr.mxu0 0.0
    %2186 = vmatpush1.msra.mxu0 0.0
    %2187 = vmatprep.subr.mxu0 0.0
    %2188 = vmatpush1.msra.mxu0 0.0
    %2189 = vmatprep.subr.mxu0 0.0
    %2190 = vmatpush1.msra.mxu0 0.0
    %2191 = vmatprep.subr.mxu0 0.0
    %2192 = vmatpush1.msra.mxu0 0.0
    %2193 = vmatprep.subr.mxu0 0.0
    %2194 = vmatpush1.msra.mxu0 0.0
    %2195 = vmatprep.subr.mxu0 0.0
    %2196 = vmatpush1.msra.mxu0 0.0
    %2197 = vmatprep.mubr.f32.mxu0 0.0
    %2198 = vmatmul.mubr.f32.gmra.mrb[0].mxu0 %v2131
    %v2199 = vpop.f32.mrb[0].mxu0
    %v2200 = vadd.f32 0.0, %v2199
    %v2201 = vpop.f32.mrb[0].mxu0
    %2202 = vdwg.mxu0
    %2203 = vrot.lane.b32.xlu0 %v2031, 120
    %v2204 = vpop.permute.xlu0 %2203
    %2205 = vrot.lane.b32.xlu0 %v2031, 88
    %v2206 = vpop.permute.xlu0 %2205
    %v2207 = vsel %vm240, %v2204, 0
    %v2209 = vsel %vm240, %v2206, 0
    %2211 = vmatprep.subr.mxu0 0.0
    %2212 = vmatpush1.xpose.msra.mxu0 %v2209
    %2213 = vmatprep.subr.mxu0 0.0
    %2214 = vmatpush1.xpose.msra.mxu0 0.0
    %2215 = vmatprep.subr.mxu0 0.0
    %2216 = vmatpush1.xpose.msra.mxu0 0.0
    %2217 = vmatprep.subr.mxu0 0.0
    %2218 = vmatpush1.xpose.msra.mxu0 0.0
    %2219 = vmatprep.subr.mxu0 0.0
    %2220 = vmatpush1.xpose.msra.mxu0 0.0
    %2221 = vmatprep.subr.mxu0 0.0
    %2222 = vmatpush1.xpose.msra.mxu0 0.0
    %2223 = vmatprep.subr.mxu0 0.0
    %2224 = vmatpush1.xpose.msra.mxu0 0.0
    %2225 = vmatprep.subr.mxu0 0.0
    %2226 = vmatpush1.xpose.msra.mxu0 0.0
    %2227 = vmatprep.subr.mxu0 0.0
    %2228 = vmatpush1.xpose.msra.mxu0 0.0
    %2229 = vmatprep.subr.mxu0 0.0
    %2230 = vmatpush1.xpose.msra.mxu0 0.0
    %2231 = vmatprep.subr.mxu0 0.0
    %2232 = vmatpush1.xpose.msra.mxu0 0.0
    %2233 = vmatprep.subr.mxu0 0.0
    %2234 = vmatpush1.xpose.msra.mxu0 0.0
    %2235 = vmatprep.subr.mxu0 0.0
    %2236 = vmatpush1.xpose.msra.mxu0 0.0
    %2237 = vmatprep.subr.mxu0 0.0
    %2238 = vmatpush1.xpose.msra.mxu0 0.0
    %2239 = vmatprep.subr.mxu0 0.0
    %2240 = vmatpush1.xpose.msra.mxu0 0.0
    %2241 = vmatprep.subr.mxu0 0.0
    %2242 = vmatpush1.xpose.msra.mxu0 0.0
    %2243 = vmatprep.subr.mxu0 0.0
    %2244 = vmatpush1.xpose.msra.mxu0 0.0
    %2245 = vmatprep.subr.mxu0 0.0
    %2246 = vmatpush1.xpose.msra.mxu0 0.0
    %2247 = vmatprep.subr.mxu0 0.0
    %2248 = vmatpush1.xpose.msra.mxu0 0.0
    %2249 = vmatprep.subr.mxu0 0.0
    %2250 = vmatpush1.xpose.msra.mxu0 0.0
    %2251 = vmatprep.subr.mxu0 0.0
    %2252 = vmatpush1.xpose.msra.mxu0 0.0
    %2253 = vmatprep.subr.mxu0 0.0
    %2254 = vmatpush1.xpose.msra.mxu0 0.0
    %2255 = vmatprep.subr.mxu0 0.0
    %2256 = vmatpush1.xpose.msra.mxu0 0.0
    %2257 = vmatprep.subr.mxu0 0.0
    %2258 = vmatpush1.xpose.msra.mxu0 0.0
    %2259 = vmatprep.subr.mxu0 0.0
    %2260 = vmatpush1.xpose.msra.mxu0 0.0
    %2261 = vmatprep.subr.mxu0 0.0
    %2262 = vmatpush1.xpose.msra.mxu0 0.0
    %2263 = vmatprep.subr.mxu0 0.0
    %2264 = vmatpush1.xpose.msra.mxu0 0.0
    %2265 = vmatprep.subr.mxu0 0.0
    %2266 = vmatpush1.xpose.msra.mxu0 0.0
    %2267 = vmatprep.subr.mxu0 0.0
    %2268 = vmatpush1.xpose.msra.mxu0 0.0
    %2269 = vmatprep.subr.mxu0 0.0
    %2270 = vmatpush1.xpose.msra.mxu0 0.0
    %2271 = vmatprep.subr.mxu0 0.0
    %2272 = vmatpush1.xpose.msra.mxu0 0.0
    %2273 = vmatprep.subr.mxu0 0.0
    %2274 = vmatpush1.xpose.msra.mxu0 0.0
    %2275 = vmatprep.mubr.f32.mxu0 0.0
    %2276 = vmatmul.mubr.f32.gmra.mrb[0].mxu0 %v2207
    %v2277 = vpop.f32.mrb[0].mxu0
    %v2278 = vadd.f32 0.0, %v2277
    %v2279 = vpop.f32.mrb[0].mxu0
    %2280 = vdwg.mxu0
    %v2281 = vsel %vm240, %v2278, -inf
    %2282 = vmax.xlane.f32.xlu0 %v2281
    %v2283 = vpop.xlane.xlu0 %2282
    %v2284 = vsub.f32 %v2278, %v2283
    %v2285 = vmul.f32 %v2284, 1.442695
    %v2286 = vpow.pop %v2285
    %v2287 = vsel %vm240, %v2286, 0.0
    %2288 = vadd.xlane.f32.xlu0 %v2287
    %v2289 = vpop.xlane.xlu0 %2288
    %v2290 = vrcp.pop %v2289
    %v2291 = vmul.f32 %v2286, %v2290
    %2292 = vrot.lane.b32.xlu0 %v2031, 56
    %v2293 = vpop.permute.xlu0 %2292
    %v2296 = vsel %vm240, %v2291, 0
    %2298 = vmatprep.subr.mxu0 0.0
    %2299 = vmatpush1.msra.mxu0 %v2293
    %2300 = vmatprep.subr.mxu0 0.0
    %2301 = vmatpush1.msra.mxu0 0.0
    %2302 = vmatprep.subr.mxu0 0.0
    %2303 = vmatpush1.msra.mxu0 0.0
    %2304 = vmatprep.subr.mxu0 0.0
    %2305 = vmatpush1.msra.mxu0 0.0
    %2306 = vmatprep.subr.mxu0 0.0
    %2307 = vmatpush1.msra.mxu0 0.0
    %2308 = vmatprep.subr.mxu0 0.0
    %2309 = vmatpush1.msra.mxu0 0.0
    %2310 = vmatprep.subr.mxu0 0.0
    %2311 = vmatpush1.msra.mxu0 0.0
    %2312 = vmatprep.subr.mxu0 0.0
    %2313 = vmatpush1.msra.mxu0 0.0
    %2314 = vmatprep.subr.mxu0 0.0
    %2315 = vmatpush1.msra.mxu0 0.0
    %2316 = vmatprep.subr.mxu0 0.0
    %2317 = vmatpush1.msra.mxu0 0.0
    %2318 = vmatprep.subr.mxu0 0.0
    %2319 = vmatpush1.msra.mxu0 0.0
    %2320 = vmatprep.subr.mxu0 0.0
    %2321 = vmatpush1.msra.mxu0 0.0
    %2322 = vmatprep.subr.mxu0 0.0
    %2323 = vmatpush1.msra.mxu0 0.0
    %2324 = vmatprep.subr.mxu0 0.0
    %2325 = vmatpush1.msra.mxu0 0.0
    %2326 = vmatprep.subr.mxu0 0.0
    %2327 = vmatpush1.msra.mxu0 0.0
    %2328 = vmatprep.subr.mxu0 0.0
    %2329 = vmatpush1.msra.mxu0 0.0
    %2330 = vmatprep.subr.mxu0 0.0
    %2331 = vmatpush1.msra.mxu0 0.0
    %2332 = vmatprep.subr.mxu0 0.0
    %2333 = vmatpush1.msra.mxu0 0.0
    %2334 = vmatprep.subr.mxu0 0.0
    %2335 = vmatpush1.msra.mxu0 0.0
    %2336 = vmatprep.subr.mxu0 0.0
    %2337 = vmatpush1.msra.mxu0 0.0
    %2338 = vmatprep.subr.mxu0 0.0
    %2339 = vmatpush1.msra.mxu0 0.0
    %2340 = vmatprep.subr.mxu0 0.0
    %2341 = vmatpush1.msra.mxu0 0.0
    %2342 = vmatprep.subr.mxu0 0.0
    %2343 = vmatpush1.msra.mxu0 0.0
    %2344 = vmatprep.subr.mxu0 0.0
    %2345 = vmatpush1.msra.mxu0 0.0
    %2346 = vmatprep.subr.mxu0 0.0
    %2347 = vmatpush1.msra.mxu0 0.0
    %2348 = vmatprep.subr.mxu0 0.0
    %2349 = vmatpush1.msra.mxu0 0.0
    %2350 = vmatprep.subr.mxu0 0.0
    %2351 = vmatpush1.msra.mxu0 0.0
    %2352 = vmatprep.subr.mxu0 0.0
    %2353 = vmatpush1.msra.mxu0 0.0
    %2354 = vmatprep.subr.mxu0 0.0
    %2355 = vmatpush1.msra.mxu0 0.0
    %2356 = vmatprep.subr.mxu0 0.0
    %2357 = vmatpush1.msra.mxu0 0.0
    %2358 = vmatprep.subr.mxu0 0.0
    %2359 = vmatpush1.msra.mxu0 0.0
    %2360 = vmatprep.subr.mxu0 0.0
    %2361 = vmatpush1.msra.mxu0 0.0
    %2362 = vmatprep.mubr.f32.mxu0 0.0
    %2363 = vmatmul.mubr.f32.gmra.mrb[0].mxu0 %v2296
    %v2364 = vpop.f32.mrb[0].mxu0
    %v2365 = vadd.f32 0.0, %v2364
    %v2366 = vpop.f32.mrb[0].mxu0
    %2367 = vdwg.mxu0
    %2368 = vrot.lane.b32.xlu0 %v2031, 112
    %v2369 = vpop.permute.xlu0 %2368
    %2370 = vrot.lane.b32.xlu0 %v2031, 80
    %v2371 = vpop.permute.xlu0 %2370
    %v2372 = vsel %vm240, %v2369, 0
    %v2374 = vsel %vm240, %v2371, 0
    %2376 = vmatprep.subr.mxu0 0.0
    %2377 = vmatpush1.xpose.msra.mxu0 %v2374
    %2378 = vmatprep.subr.mxu0 0.0
    %2379 = vmatpush1.xpose.msra.mxu0 0.0
    %2380 = vmatprep.subr.mxu0 0.0
    %2381 = vmatpush1.xpose.msra.mxu0 0.0
    %2382 = vmatprep.subr.mxu0 0.0
    %2383 = vmatpush1.xpose.msra.mxu0 0.0
    %2384 = vmatprep.subr.mxu0 0.0
    %2385 = vmatpush1.xpose.msra.mxu0 0.0
    %2386 = vmatprep.subr.mxu0 0.0
    %2387 = vmatpush1.xpose.msra.mxu0 0.0
    %2388 = vmatprep.subr.mxu0 0.0
    %2389 = vmatpush1.xpose.msra.mxu0 0.0
    %2390 = vmatprep.subr.mxu0 0.0
    %2391 = vmatpush1.xpose.msra.mxu0 0.0
    %2392 = vmatprep.subr.mxu0 0.0
    %2393 = vmatpush1.xpose.msra.mxu0 0.0
    %2394 = vmatprep.subr.mxu0 0.0
    %2395 = vmatpush1.xpose.msra.mxu0 0.0
    %2396 = vmatprep.subr.mxu0 0.0
    %2397 = vmatpush1.xpose.msra.mxu0 0.0
    %2398 = vmatprep.subr.mxu0 0.0
    %2399 = vmatpush1.xpose.msra.mxu0 0.0
    %2400 = vmatprep.subr.mxu0 0.0
    %2401 = vmatpush1.xpose.msra.mxu0 0.0
    %2402 = vmatprep.subr.mxu0 0.0
    %2403 = vmatpush1.xpose.msra.mxu0 0.0
    %2404 = vmatprep.subr.mxu0 0.0
    %2405 = vmatpush1.xpose.msra.mxu0 0.0
    %2406 = vmatprep.subr.mxu0 0.0
    %2407 = vmatpush1.xpose.msra.mxu0 0.0
    %2408 = vmatprep.subr.mxu0 0.0
    %2409 = vmatpush1.xpose.msra.mxu0 0.0
    %2410 = vmatprep.subr.mxu0 0.0
    %2411 = vmatpush1.xpose.msra.mxu0 0.0
    %2412 = vmatprep.subr.mxu0 0.0
    %2413 = vmatpush1.xpose.msra.mxu0 0.0
    %2414 = vmatprep.subr.mxu0 0.0
    %2415 = vmatpush1.xpose.msra.mxu0 0.0
    %2416 = vmatprep.subr.mxu0 0.0
    %2417 = vmatpush1.xpose.msra.mxu0 0.0
    %2418 = vmatprep.subr.mxu0 0.0
    %2419 = vmatpush1.xpose.msra.mxu0 0.0
    %2420 = vmatprep.subr.mxu0 0.0
    %2421 = vmatpush1.xpose.msra.mxu0 0.0
    %2422 = vmatprep.subr.mxu0 0.0
    %2423 = vmatpush1.xpose.msra.mxu0 0.0
    %2424 = vmatprep.subr.mxu0 0.0
    %2425 = vmatpush1.xpose.msra.mxu0 0.0
    %2426 = vmatprep.subr.mxu0 0.0
    %2427 = vmatpush1.xpose.msra.mxu0 0.0
    %2428 = vmatprep.subr.mxu0 0.0
    %2429 = vmatpush1.xpose.msra.mxu0 0.0
    %2430 = vmatprep.subr.mxu0 0.0
    %2431 = vmatpush1.xpose.msra.mxu0 0.0
    %2432 = vmatprep.subr.mxu0 0.0
    %2433 = vmatpush1.xpose.msra.mxu0 0.0
    %2434 = vmatprep.subr.mxu0 0.0
    %2435 = vmatpush1.xpose.msra.mxu0 0.0
    %2436 = vmatprep.subr.mxu0 0.0
    %2437 = vmatpush1.xpose.msra.mxu0 0.0
    %2438 = vmatprep.subr.mxu0 0.0
    %2439 = vmatpush1.xpose.msra.mxu0 0.0
    %2440 = vmatprep.mubr.f32.mxu0 0.0
    %2441 = vmatmul.mubr.f32.gmra.mrb[0].mxu0 %v2372
    %v2442 = vpop.f32.mrb[0].mxu0
    %v2443 = vadd.f32 0.0, %v2442
    %v2444 = vpop.f32.mrb[0].mxu0
    %2445 = vdwg.mxu0
    %v2446 = vsel %vm240, %v2443, -inf
    %2447 = vmax.xlane.f32.xlu0 %v2446
    %v2448 = vpop.xlane.xlu0 %2447
    %v2449 = vsub.f32 %v2443, %v2448
    %v2450 = vmul.f32 %v2449, 1.442695
    %v2451 = vpow.pop %v2450
    %v2452 = vsel %vm240, %v2451, 0.0
    %2453 = vadd.xlane.f32.xlu0 %v2452
    %v2454 = vpop.xlane.xlu0 %2453
    %v2455 = vrcp.pop %v2454
    %v2456 = vmul.f32 %v2451, %v2455
    %2457 = vrot.lane.b32.xlu0 %v2031, 48
    %v2458 = vpop.permute.xlu0 %2457
    %v2461 = vsel %vm240, %v2456, 0
    %2463 = vmatprep.subr.mxu0 0.0
    %2464 = vmatpush1.msra.mxu0 %v2458
    %2465 = vmatprep.subr.mxu0 0.0
    %2466 = vmatpush1.msra.mxu0 0.0
    %2467 = vmatprep.subr.mxu0 0.0
    %2468 = vmatpush1.msra.mxu0 0.0
    %2469 = vmatprep.subr.mxu0 0.0
    %2470 = vmatpush1.msra.mxu0 0.0
    %2471 = vmatprep.subr.mxu0 0.0
    %2472 = vmatpush1.msra.mxu0 0.0
    %2473 = vmatprep.subr.mxu0 0.0
    %2474 = vmatpush1.msra.mxu0 0.0
    %2475 = vmatprep.subr.mxu0 0.0
    %2476 = vmatpush1.msra.mxu0 0.0
    %2477 = vmatprep.subr.mxu0 0.0
    %2478 = vmatpush1.msra.mxu0 0.0
    %2479 = vmatprep.subr.mxu0 0.0
    %2480 = vmatpush1.msra.mxu0 0.0
    %2481 = vmatprep.subr.mxu0 0.0
    %2482 = vmatpush1.msra.mxu0 0.0
    %2483 = vmatprep.subr.mxu0 0.0
    %2484 = vmatpush1.msra.mxu0 0.0
    %2485 = vmatprep.subr.mxu0 0.0
    %2486 = vmatpush1.msra.mxu0 0.0
    %2487 = vmatprep.subr.mxu0 0.0
    %2488 = vmatpush1.msra.mxu0 0.0
    %2489 = vmatprep.subr.mxu0 0.0
    %2490 = vmatpush1.msra.mxu0 0.0
    %2491 = vmatprep.subr.mxu0 0.0
    %2492 = vmatpush1.msra.mxu0 0.0
    %2493 = vmatprep.subr.mxu0 0.0
    %2494 = vmatpush1.msra.mxu0 0.0
    %2495 = vmatprep.subr.mxu0 0.0
    %2496 = vmatpush1.msra.mxu0 0.0
    %2497 = vmatprep.subr.mxu0 0.0
    %2498 = vmatpush1.msra.mxu0 0.0
    %2499 = vmatprep.subr.mxu0 0.0
    %2500 = vmatpush1.msra.mxu0 0.0
    %2501 = vmatprep.subr.mxu0 0.0
    %2502 = vmatpush1.msra.mxu0 0.0
    %2503 = vmatprep.subr.mxu0 0.0
    %2504 = vmatpush1.msra.mxu0 0.0
    %2505 = vmatprep.subr.mxu0 0.0
    %2506 = vmatpush1.msra.mxu0 0.0
    %2507 = vmatprep.subr.mxu0 0.0
    %2508 = vmatpush1.msra.mxu0 0.0
    %2509 = vmatprep.subr.mxu0 0.0
    %2510 = vmatpush1.msra.mxu0 0.0
    %2511 = vmatprep.subr.mxu0 0.0
    %2512 = vmatpush1.msra.mxu0 0.0
    %2513 = vmatprep.subr.mxu0 0.0
    %2514 = vmatpush1.msra.mxu0 0.0
    %2515 = vmatprep.subr.mxu0 0.0
    %2516 = vmatpush1.msra.mxu0 0.0
    %2517 = vmatprep.subr.mxu0 0.0
    %2518 = vmatpush1.msra.mxu0 0.0
    %2519 = vmatprep.subr.mxu0 0.0
    %2520 = vmatpush1.msra.mxu0 0.0
    %2521 = vmatprep.subr.mxu0 0.0
    %2522 = vmatpush1.msra.mxu0 0.0
    %2523 = vmatprep.subr.mxu0 0.0
    %2524 = vmatpush1.msra.mxu0 0.0
    %2525 = vmatprep.subr.mxu0 0.0
    %2526 = vmatpush1.msra.mxu0 0.0
    %2527 = vmatprep.mubr.f32.mxu0 0.0
    %2528 = vmatmul.mubr.f32.gmra.mrb[0].mxu0 %v2461
    %v2529 = vpop.f32.mrb[0].mxu0
    %v2530 = vadd.f32 0.0, %v2529
    %v2531 = vpop.f32.mrb[0].mxu0
    %2532 = vdwg.mxu0
    %2533 = vrot.lane.b32.xlu0 %v2031, 104
    %v2534 = vpop.permute.xlu0 %2533
    %2535 = vrot.lane.b32.xlu0 %v2031, 72
    %v2536 = vpop.permute.xlu0 %2535
    %v2537 = vsel %vm240, %v2534, 0
    %v2539 = vsel %vm240, %v2536, 0
    %2541 = vmatprep.subr.mxu0 0.0
    %2542 = vmatpush1.xpose.msra.mxu0 %v2539
    %2543 = vmatprep.subr.mxu0 0.0
    %2544 = vmatpush1.xpose.msra.mxu0 0.0
    %2545 = vmatprep.subr.mxu0 0.0
    %2546 = vmatpush1.xpose.msra.mxu0 0.0
    %2547 = vmatprep.subr.mxu0 0.0
    %2548 = vmatpush1.xpose.msra.mxu0 0.0
    %2549 = vmatprep.subr.mxu0 0.0
    %2550 = vmatpush1.xpose.msra.mxu0 0.0
    %2551 = vmatprep.subr.mxu0 0.0
    %2552 = vmatpush1.xpose.msra.mxu0 0.0
    %2553 = vmatprep.subr.mxu0 0.0
    %2554 = vmatpush1.xpose.msra.mxu0 0.0
    %2555 = vmatprep.subr.mxu0 0.0
    %2556 = vmatpush1.xpose.msra.mxu0 0.0
    %2557 = vmatprep.subr.mxu0 0.0
    %2558 = vmatpush1.xpose.msra.mxu0 0.0
    %2559 = vmatprep.subr.mxu0 0.0
    %2560 = vmatpush1.xpose.msra.mxu0 0.0
    %2561 = vmatprep.subr.mxu0 0.0
    %2562 = vmatpush1.xpose.msra.mxu0 0.0
    %2563 = vmatprep.subr.mxu0 0.0
    %2564 = vmatpush1.xpose.msra.mxu0 0.0
    %2565 = vmatprep.subr.mxu0 0.0
    %2566 = vmatpush1.xpose.msra.mxu0 0.0
    %2567 = vmatprep.subr.mxu0 0.0
    %2568 = vmatpush1.xpose.msra.mxu0 0.0
    %2569 = vmatprep.subr.mxu0 0.0
    %2570 = vmatpush1.xpose.msra.mxu0 0.0
    %2571 = vmatprep.subr.mxu0 0.0
    %2572 = vmatpush1.xpose.msra.mxu0 0.0
    %2573 = vmatprep.subr.mxu0 0.0
    %2574 = vmatpush1.xpose.msra.mxu0 0.0
    %2575 = vmatprep.subr.mxu0 0.0
    %2576 = vmatpush1.xpose.msra.mxu0 0.0
    %2577 = vmatprep.subr.mxu0 0.0
    %2578 = vmatpush1.xpose.msra.mxu0 0.0
    %2579 = vmatprep.subr.mxu0 0.0
    %2580 = vmatpush1.xpose.msra.mxu0 0.0
    %2581 = vmatprep.subr.mxu0 0.0
    %2582 = vmatpush1.xpose.msra.mxu0 0.0
    %2583 = vmatprep.subr.mxu0 0.0
    %2584 = vmatpush1.xpose.msra.mxu0 0.0
    %2585 = vmatprep.subr.mxu0 0.0
    %2586 = vmatpush1.xpose.msra.mxu0 0.0
    %2587 = vmatprep.subr.mxu0 0.0
    %2588 = vmatpush1.xpose.msra.mxu0 0.0
    %2589 = vmatprep.subr.mxu0 0.0
    %2590 = vmatpush1.xpose.msra.mxu0 0.0
    %2591 = vmatprep.subr.mxu0 0.0
    %2592 = vmatpush1.xpose.msra.mxu0 0.0
    %2593 = vmatprep.subr.mxu0 0.0
    %2594 = vmatpush1.xpose.msra.mxu0 0.0
    %2595 = vmatprep.subr.mxu0 0.0
    %2596 = vmatpush1.xpose.msra.mxu0 0.0
    %2597 = vmatprep.subr.mxu0 0.0
    %2598 = vmatpush1.xpose.msra.mxu0 0.0
    %2599 = vmatprep.subr.mxu0 0.0
    %2600 = vmatpush1.xpose.msra.mxu0 0.0
    %2601 = vmatprep.subr.mxu0 0.0
    %2602 = vmatpush1.xpose.msra.mxu0 0.0
    %2603 = vmatprep.subr.mxu0 0.0
    %2604 = vmatpush1.xpose.msra.mxu0 0.0
    %2605 = vmatprep.mubr.f32.mxu0 0.0
    %2606 = vmatmul.mubr.f32.gmra.mrb[0].mxu0 %v2537
    %v2607 = vpop.f32.mrb[0].mxu0
    %v2608 = vadd.f32 0.0, %v2607
    %v2609 = vpop.f32.mrb[0].mxu0
    %2610 = vdwg.mxu0
    %v2611 = vsel %vm240, %v2608, -inf
    %2612 = vmax.xlane.f32.xlu0 %v2611
    %v2613 = vpop.xlane.xlu0 %2612
    %v2614 = vsub.f32 %v2608, %v2613
    %v2615 = vmul.f32 %v2614, 1.442695
    %v2616 = vpow.pop %v2615
    %v2617 = vsel %vm240, %v2616, 0.0
    %2618 = vadd.xlane.f32.xlu0 %v2617
    %v2619 = vpop.xlane.xlu0 %2618
    %v2620 = vrcp.pop %v2619
    %v2621 = vmul.f32 %v2616, %v2620
    %2622 = vrot.lane.b32.xlu0 %v2031, 40
    %v2623 = vpop.permute.xlu0 %2622
    %v2626 = vsel %vm240, %v2621, 0
    %2628 = vmatprep.subr.mxu0 0.0
    %2629 = vmatpush1.msra.mxu0 %v2623
    %2630 = vmatprep.subr.mxu0 0.0
    %2631 = vmatpush1.msra.mxu0 0.0
    %2632 = vmatprep.subr.mxu0 0.0
    %2633 = vmatpush1.msra.mxu0 0.0
    %2634 = vmatprep.subr.mxu0 0.0
    %2635 = vmatpush1.msra.mxu0 0.0
    %2636 = vmatprep.subr.mxu0 0.0
    %2637 = vmatpush1.msra.mxu0 0.0
    %2638 = vmatprep.subr.mxu0 0.0
    %2639 = vmatpush1.msra.mxu0 0.0
    %2640 = vmatprep.subr.mxu0 0.0
    %2641 = vmatpush1.msra.mxu0 0.0
    %2642 = vmatprep.subr.mxu0 0.0
    %2643 = vmatpush1.msra.mxu0 0.0
    %2644 = vmatprep.subr.mxu0 0.0
    %2645 = vmatpush1.msra.mxu0 0.0
    %2646 = vmatprep.subr.mxu0 0.0
    %2647 = vmatpush1.msra.mxu0 0.0
    %2648 = vmatprep.subr.mxu0 0.0
    %2649 = vmatpush1.msra.mxu0 0.0
    %2650 = vmatprep.subr.mxu0 0.0
    %2651 = vmatpush1.msra.mxu0 0.0
    %2652 = vmatprep.subr.mxu0 0.0
    %2653 = vmatpush1.msra.mxu0 0.0
    %2654 = vmatprep.subr.mxu0 0.0
    %2655 = vmatpush1.msra.mxu0 0.0
    %2656 = vmatprep.subr.mxu0 0.0
    %2657 = vmatpush1.msra.mxu0 0.0
    %2658 = vmatprep.subr.mxu0 0.0
    %2659 = vmatpush1.msra.mxu0 0.0
    %2660 = vmatprep.subr.mxu0 0.0
    %2661 = vmatpush1.msra.mxu0 0.0
    %2662 = vmatprep.subr.mxu0 0.0
    %2663 = vmatpush1.msra.mxu0 0.0
    %2664 = vmatprep.subr.mxu0 0.0
    %2665 = vmatpush1.msra.mxu0 0.0
    %2666 = vmatprep.subr.mxu0 0.0
    %2667 = vmatpush1.msra.mxu0 0.0
    %2668 = vmatprep.subr.mxu0 0.0
    %2669 = vmatpush1.msra.mxu0 0.0
    %2670 = vmatprep.subr.mxu0 0.0
    %2671 = vmatpush1.msra.mxu0 0.0
    %2672 = vmatprep.subr.mxu0 0.0
    %2673 = vmatpush1.msra.mxu0 0.0
    %2674 = vmatprep.subr.mxu0 0.0
    %2675 = vmatpush1.msra.mxu0 0.0
    %2676 = vmatprep.subr.mxu0 0.0
    %2677 = vmatpush1.msra.mxu0 0.0
    %2678 = vmatprep.subr.mxu0 0.0
    %2679 = vmatpush1.msra.mxu0 0.0
    %2680 = vmatprep.subr.mxu0 0.0
    %2681 = vmatpush1.msra.mxu0 0.0
    %2682 = vmatprep.subr.mxu0 0.0
    %2683 = vmatpush1.msra.mxu0 0.0
    %2684 = vmatprep.subr.mxu0 0.0
    %2685 = vmatpush1.msra.mxu0 0.0
    %2686 = vmatprep.subr.mxu0 0.0
    %2687 = vmatpush1.msra.mxu0 0.0
    %2688 = vmatprep.subr.mxu0 0.0
    %2689 = vmatpush1.msra.mxu0 0.0
    %2690 = vmatprep.subr.mxu0 0.0
    %2691 = vmatpush1.msra.mxu0 0.0
    %2692 = vmatprep.mubr.f32.mxu0 0.0
    %2693 = vmatmul.mubr.f32.gmra.mrb[0].mxu0 %v2626
    %v2694 = vpop.f32.mrb[0].mxu0
    %v2695 = vadd.f32 0.0, %v2694
    %v2696 = vpop.f32.mrb[0].mxu0
    %2697 = vdwg.mxu0
    %2699 = vrot.lane.b32.xlu0 %v2365, 8
    %v2700 = vpop.permute.xlu0 %2699
    %2703 = vrot.lane.b32.xlu0 %v2530, 16
    %v2704 = vpop.permute.xlu0 %2703
    %2707 = vrot.lane.b32.xlu0 %v2695, 24
    %v2708 = vpop.permute.xlu0 %2707
    %v2710 = vsel %vm240, %v2200, %v2700
    %v2711 = vsel %vm910, %v2710, %v2704
    %v2712 = vsel %vm912, %v2711, %v2708
    %2714 = vrot.lane.b32.xlu0 %v2036, 96
    %v2715 = vpop.permute.xlu0 %2714
    %v2716 = vsel %vm240, %v2036, 0
    %v2718 = vsel %vm240, %v2715, 0
    %2720 = vmatprep.subr.mxu0 0.0
    %2721 = vmatpush1.xpose.msra.mxu0 %v2718
    %2722 = vmatprep.subr.mxu0 0.0
    %2723 = vmatpush1.xpose.msra.mxu0 0.0
    %2724 = vmatprep.subr.mxu0 0.0
    %2725 = vmatpush1.xpose.msra.mxu0 0.0
    %2726 = vmatprep.subr.mxu0 0.0
    %2727 = vmatpush1.xpose.msra.mxu0 0.0
    %2728 = vmatprep.subr.mxu0 0.0
    %2729 = vmatpush1.xpose.msra.mxu0 0.0
    %2730 = vmatprep.subr.mxu0 0.0
    %2731 = vmatpush1.xpose.msra.mxu0 0.0
    %2732 = vmatprep.subr.mxu0 0.0
    %2733 = vmatpush1.xpose.msra.mxu0 0.0
    %2734 = vmatprep.subr.mxu0 0.0
    %2735 = vmatpush1.xpose.msra.mxu0 0.0
    %2736 = vmatprep.subr.mxu0 0.0
    %2737 = vmatpush1.xpose.msra.mxu0 0.0
    %2738 = vmatprep.subr.mxu0 0.0
    %2739 = vmatpush1.xpose.msra.mxu0 0.0
    %2740 = vmatprep.subr.mxu0 0.0
    %2741 = vmatpush1.xpose.msra.mxu0 0.0
    %2742 = vmatprep.subr.mxu0 0.0
    %2743 = vmatpush1.xpose.msra.mxu0 0.0
    %2744 = vmatprep.subr.mxu0 0.0
    %2745 = vmatpush1.xpose.msra.mxu0 0.0
    %2746 = vmatprep.subr.mxu0 0.0
    %2747 = vmatpush1.xpose.msra.mxu0 0.0
    %2748 = vmatprep.subr.mxu0 0.0
    %2749 = vmatpush1.xpose.msra.mxu0 0.0
    %2750 = vmatprep.subr.mxu0 0.0
    %2751 = vmatpush1.xpose.msra.mxu0 0.0
    %2752 = vmatprep.subr.mxu0 0.0
    %2753 = vmatpush1.xpose.msra.mxu0 0.0
    %2754 = vmatprep.subr.mxu0 0.0
    %2755 = vmatpush1.xpose.msra.mxu0 0.0
    %2756 = vmatprep.subr.mxu0 0.0
    %2757 = vmatpush1.xpose.msra.mxu0 0.0
    %2758 = vmatprep.subr.mxu0 0.0
    %2759 = vmatpush1.xpose.msra.mxu0 0.0
    %2760 = vmatprep.subr.mxu0 0.0
    %2761 = vmatpush1.xpose.msra.mxu0 0.0
    %2762 = vmatprep.subr.mxu0 0.0
    %2763 = vmatpush1.xpose.msra.mxu0 0.0
    %2764 = vmatprep.subr.mxu0 0.0
    %2765 = vmatpush1.xpose.msra.mxu0 0.0
    %2766 = vmatprep.subr.mxu0 0.0
    %2767 = vmatpush1.xpose.msra.mxu0 0.0
    %2768 = vmatprep.subr.mxu0 0.0
    %2769 = vmatpush1.xpose.msra.mxu0 0.0
    %2770 = vmatprep.subr.mxu0 0.0
    %2771 = vmatpush1.xpose.msra.mxu0 0.0
    %2772 = vmatprep.subr.mxu0 0.0
    %2773 = vmatpush1.xpose.msra.mxu0 0.0
    %2774 = vmatprep.subr.mxu0 0.0
    %2775 = vmatpush1.xpose.msra.mxu0 0.0
    %2776 = vmatprep.subr.mxu0 0.0
    %2777 = vmatpush1.xpose.msra.mxu0 0.0
    %2778 = vmatprep.subr.mxu0 0.0
    %2779 = vmatpush1.xpose.msra.mxu0 0.0
    %2780 = vmatprep.subr.mxu0 0.0
    %2781 = vmatpush1.xpose.msra.mxu0 0.0
    %2782 = vmatprep.subr.mxu0 0.0
    %2783 = vmatpush1.xpose.msra.mxu0 0.0
    %2784 = vmatprep.mubr.f32.mxu0 0.0
    %2785 = vmatmul.mubr.f32.gmra.mrb[0].mxu0 %v2716
    %v2786 = vpop.f32.mrb[0].mxu0
    %v2787 = vadd.f32 0.0, %v2786
    %v2788 = vpop.f32.mrb[0].mxu0
    %2789 = vdwg.mxu0
    %v2790 = vsel %vm240, %v2787, -inf
    %2791 = vmax.xlane.f32.xlu0 %v2790
    %v2792 = vpop.xlane.xlu0 %2791
    %v2793 = vsub.f32 %v2787, %v2792
    %v2794 = vmul.f32 %v2793, 1.442695
    %v2795 = vpow.pop %v2794
    %v2796 = vsel %vm240, %v2795, 0.0
    %2797 = vadd.xlane.f32.xlu0 %v2796
    %v2798 = vpop.xlane.xlu0 %2797
    %v2799 = vrcp.pop %v2798
    %v2800 = vmul.f32 %v2795, %v2799
    %2801 = vrot.lane.b32.xlu0 %v2036, 64
    %v2802 = vpop.permute.xlu0 %2801
    %v2805 = vsel %vm240, %v2800, 0
    %2807 = vmatprep.subr.mxu0 0.0
    %2808 = vmatpush1.msra.mxu0 %v2802
    %2809 = vmatprep.subr.mxu0 0.0
    %2810 = vmatpush1.msra.mxu0 0.0
    %2811 = vmatprep.subr.mxu0 0.0
    %2812 = vmatpush1.msra.mxu0 0.0
    %2813 = vmatprep.subr.mxu0 0.0
    %2814 = vmatpush1.msra.mxu0 0.0
    %2815 = vmatprep.subr.mxu0 0.0
    %2816 = vmatpush1.msra.mxu0 0.0
    %2817 = vmatprep.subr.mxu0 0.0
    %2818 = vmatpush1.msra.mxu0 0.0
    %2819 = vmatprep.subr.mxu0 0.0
    %2820 = vmatpush1.msra.mxu0 0.0
    %2821 = vmatprep.subr.mxu0 0.0
    %2822 = vmatpush1.msra.mxu0 0.0
    %2823 = vmatprep.subr.mxu0 0.0
    %2824 = vmatpush1.msra.mxu0 0.0
    %2825 = vmatprep.subr.mxu0 0.0
    %2826 = vmatpush1.msra.mxu0 0.0
    %2827 = vmatprep.subr.mxu0 0.0
    %2828 = vmatpush1.msra.mxu0 0.0
    %2829 = vmatprep.subr.mxu0 0.0
    %2830 = vmatpush1.msra.mxu0 0.0
    %2831 = vmatprep.subr.mxu0 0.0
    %2832 = vmatpush1.msra.mxu0 0.0
    %2833 = vmatprep.subr.mxu0 0.0
    %2834 = vmatpush1.msra.mxu0 0.0
    %2835 = vmatprep.subr.mxu0 0.0
    %2836 = vmatpush1.msra.mxu0 0.0
    %2837 = vmatprep.subr.mxu0 0.0
    %2838 = vmatpush1.msra.mxu0 0.0
    %2839 = vmatprep.subr.mxu0 0.0
    %2840 = vmatpush1.msra.mxu0 0.0
    %2841 = vmatprep.subr.mxu0 0.0
    %2842 = vmatpush1.msra.mxu0 0.0
    %2843 = vmatprep.subr.mxu0 0.0
    %2844 = vmatpush1.msra.mxu0 0.0
    %2845 = vmatprep.subr.mxu0 0.0
    %2846 = vmatpush1.msra.mxu0 0.0
    %2847 = vmatprep.subr.mxu0 0.0
    %2848 = vmatpush1.msra.mxu0 0.0
    %2849 = vmatprep.subr.mxu0 0.0
    %2850 = vmatpush1.msra.mxu0 0.0
    %2851 = vmatprep.subr.mxu0 0.0
    %2852 = vmatpush1.msra.mxu0 0.0
    %2853 = vmatprep.subr.mxu0 0.0
    %2854 = vmatpush1.msra.mxu0 0.0
    %2855 = vmatprep.subr.mxu0 0.0
    %2856 = vmatpush1.msra.mxu0 0.0
    %2857 = vmatprep.subr.mxu0 0.0
    %2858 = vmatpush1.msra.mxu0 0.0
    %2859 = vmatprep.subr.mxu0 0.0
    %2860 = vmatpush1.msra.mxu0 0.0
    %2861 = vmatprep.subr.mxu0 0.0
    %2862 = vmatpush1.msra.mxu0 0.0
    %2863 = vmatprep.subr.mxu0 0.0
    %2864 = vmatpush1.msra.mxu0 0.0
    %2865 = vmatprep.subr.mxu0 0.0
    %2866 = vmatpush1.msra.mxu0 0.0
    %2867 = vmatprep.subr.mxu0 0.0
    %2868 = vmatpush1.msra.mxu0 0.0
    %2869 = vmatprep.subr.mxu0 0.0
    %2870 = vmatpush1.msra.mxu0 0.0
    %2871 = vmatprep.mubr.f32.mxu0 0.0
    %2872 = vmatmul.mubr.f32.gmra.mrb[0].mxu0 %v2805
    %v2873 = vpop.f32.mrb[0].mxu0
    %v2874 = vadd.f32 0.0, %v2873
    %v2875 = vpop.f32.mrb[0].mxu0
    %2876 = vdwg.mxu0
    %2877 = vrot.lane.b32.xlu0 %v2036, 120
    %v2878 = vpop.permute.xlu0 %2877
    %2879 = vrot.lane.b32.xlu0 %v2036, 88
    %v2880 = vpop.permute.xlu0 %2879
    %v2881 = vsel %vm240, %v2878, 0
    %v2883 = vsel %vm240, %v2880, 0
    %2885 = vmatprep.subr.mxu0 0.0
    %2886 = vmatpush1.xpose.msra.mxu0 %v2883
    %2887 = vmatprep.subr.mxu0 0.0
    %2888 = vmatpush1.xpose.msra.mxu0 0.0
    %2889 = vmatprep.subr.mxu0 0.0
    %2890 = vmatpush1.xpose.msra.mxu0 0.0
    %2891 = vmatprep.subr.mxu0 0.0
    %2892 = vmatpush1.xpose.msra.mxu0 0.0
    %2893 = vmatprep.subr.mxu0 0.0
    %2894 = vmatpush1.xpose.msra.mxu0 0.0
    %2895 = vmatprep.subr.mxu0 0.0
    %2896 = vmatpush1.xpose.msra.mxu0 0.0
    %2897 = vmatprep.subr.mxu0 0.0
    %2898 = vmatpush1.xpose.msra.mxu0 0.0
    %2899 = vmatprep.subr.mxu0 0.0
    %2900 = vmatpush1.xpose.msra.mxu0 0.0
    %2901 = vmatprep.subr.mxu0 0.0
    %2902 = vmatpush1.xpose.msra.mxu0 0.0
    %2903 = vmatprep.subr.mxu0 0.0
    %2904 = vmatpush1.xpose.msra.mxu0 0.0
    %2905 = vmatprep.subr.mxu0 0.0
    %2906 = vmatpush1.xpose.msra.mxu0 0.0
    %2907 = vmatprep.subr.mxu0 0.0
    %2908 = vmatpush1.xpose.msra.mxu0 0.0
    %2909 = vmatprep.subr.mxu0 0.0
    %2910 = vmatpush1.xpose.msra.mxu0 0.0
    %2911 = vmatprep.subr.mxu0 0.0
    %2912 = vmatpush1.xpose.msra.mxu0 0.0
    %2913 = vmatprep.subr.mxu0 0.0
    %2914 = vmatpush1.xpose.msra.mxu0 0.0
    %2915 = vmatprep.subr.mxu0 0.0
    %2916 = vmatpush1.xpose.msra.mxu0 0.0
    %2917 = vmatprep.subr.mxu0 0.0
    %2918 = vmatpush1.xpose.msra.mxu0 0.0
    %2919 = vmatprep.subr.mxu0 0.0
    %2920 = vmatpush1.xpose.msra.mxu0 0.0
    %2921 = vmatprep.subr.mxu0 0.0
    %2922 = vmatpush1.xpose.msra.mxu0 0.0
    %2923 = vmatprep.subr.mxu0 0.0
    %2924 = vmatpush1.xpose.msra.mxu0 0.0
    %2925 = vmatprep.subr.mxu0 0.0
    %2926 = vmatpush1.xpose.msra.mxu0 0.0
    %2927 = vmatprep.subr.mxu0 0.0
    %2928 = vmatpush1.xpose.msra.mxu0 0.0
    %2929 = vmatprep.subr.mxu0 0.0
    %2930 = vmatpush1.xpose.msra.mxu0 0.0
    %2931 = vmatprep.subr.mxu0 0.0
    %2932 = vmatpush1.xpose.msra.mxu0 0.0
    %2933 = vmatprep.subr.mxu0 0.0
    %2934 = vmatpush1.xpose.msra.mxu0 0.0
    %2935 = vmatprep.subr.mxu0 0.0
    %2936 = vmatpush1.xpose.msra.mxu0 0.0
    %2937 = vmatprep.subr.mxu0 0.0
    %2938 = vmatpush1.xpose.msra.mxu0 0.0
    %2939 = vmatprep.subr.mxu0 0.0
    %2940 = vmatpush1.xpose.msra.mxu0 0.0
    %2941 = vmatprep.subr.mxu0 0.0
    %2942 = vmatpush1.xpose.msra.mxu0 0.0
    %2943 = vmatprep.subr.mxu0 0.0
    %2944 = vmatpush1.xpose.msra.mxu0 0.0
    %2945 = vmatprep.subr.mxu0 0.0
    %2946 = vmatpush1.xpose.msra.mxu0 0.0
    %2947 = vmatprep.subr.mxu0 0.0
    %2948 = vmatpush1.xpose.msra.mxu0 0.0
    %2949 = vmatprep.mubr.f32.mxu0 0.0
    %2950 = vmatmul.mubr.f32.gmra.mrb[0].mxu0 %v2881
    %v2951 = vpop.f32.mrb[0].mxu0
    %v2952 = vadd.f32 0.0, %v2951
    %v2953 = vpop.f32.mrb[0].mxu0
    %2954 = vdwg.mxu0
    %v2955 = vsel %vm240, %v2952, -inf
    %2956 = vmax.xlane.f32.xlu0 %v2955
    %v2957 = vpop.xlane.xlu0 %2956
    %v2958 = vsub.f32 %v2952, %v2957
    %v2959 = vmul.f32 %v2958, 1.442695
    %v2960 = vpow.pop %v2959
    %v2961 = vsel %vm240, %v2960, 0.0
    %2962 = vadd.xlane.f32.xlu0 %v2961
    %v2963 = vpop.xlane.xlu0 %2962
    %v2964 = vrcp.pop %v2963
    %v2965 = vmul.f32 %v2960, %v2964
    %2966 = vrot.lane.b32.xlu0 %v2036, 56
    %v2967 = vpop.permute.xlu0 %2966
    %v2970 = vsel %vm240, %v2965, 0
    %2972 = vmatprep.subr.mxu0 0.0
    %2973 = vmatpush1.msra.mxu0 %v2967
    %2974 = vmatprep.subr.mxu0 0.0
    %2975 = vmatpush1.msra.mxu0 0.0
    %2976 = vmatprep.subr.mxu0 0.0
    %2977 = vmatpush1.msra.mxu0 0.0
    %2978 = vmatprep.subr.mxu0 0.0
    %2979 = vmatpush1.msra.mxu0 0.0
    %2980 = vmatprep.subr.mxu0 0.0
    %2981 = vmatpush1.msra.mxu0 0.0
    %2982 = vmatprep.subr.mxu0 0.0
    %2983 = vmatpush1.msra.mxu0 0.0
    %2984 = vmatprep.subr.mxu0 0.0
    %2985 = vmatpush1.msra.mxu0 0.0
    %2986 = vmatprep.subr.mxu0 0.0
    %2987 = vmatpush1.msra.mxu0 0.0
    %2988 = vmatprep.subr.mxu0 0.0
    %2989 = vmatpush1.msra.mxu0 0.0
    %2990 = vmatprep.subr.mxu0 0.0
    %2991 = vmatpush1.msra.mxu0 0.0
    %2992 = vmatprep.subr.mxu0 0.0
    %2993 = vmatpush1.msra.mxu0 0.0
    %2994 = vmatprep.subr.mxu0 0.0
    %2995 = vmatpush1.msra.mxu0 0.0
    %2996 = vmatprep.subr.mxu0 0.0
    %2997 = vmatpush1.msra.mxu0 0.0
    %2998 = vmatprep.subr.mxu0 0.0
    %2999 = vmatpush1.msra.mxu0 0.0
    %3000 = vmatprep.subr.mxu0 0.0
    %3001 = vmatpush1.msra.mxu0 0.0
    %3002 = vmatprep.subr.mxu0 0.0
    %3003 = vmatpush1.msra.mxu0 0.0
    %3004 = vmatprep.subr.mxu0 0.0
    %3005 = vmatpush1.msra.mxu0 0.0
    %3006 = vmatprep.subr.mxu0 0.0
    %3007 = vmatpush1.msra.mxu0 0.0
    %3008 = vmatprep.subr.mxu0 0.0
    %3009 = vmatpush1.msra.mxu0 0.0
    %3010 = vmatprep.subr.mxu0 0.0
    %3011 = vmatpush1.msra.mxu0 0.0
    %3012 = vmatprep.subr.mxu0 0.0
    %3013 = vmatpush1.msra.mxu0 0.0
    %3014 = vmatprep.subr.mxu0 0.0
    %3015 = vmatpush1.msra.mxu0 0.0
    %3016 = vmatprep.subr.mxu0 0.0
    %3017 = vmatpush1.msra.mxu0 0.0
    %3018 = vmatprep.subr.mxu0 0.0
    %3019 = vmatpush1.msra.mxu0 0.0
    %3020 = vmatprep.subr.mxu0 0.0
    %3021 = vmatpush1.msra.mxu0 0.0
    %3022 = vmatprep.subr.mxu0 0.0
    %3023 = vmatpush1.msra.mxu0 0.0
    %3024 = vmatprep.subr.mxu0 0.0
    %3025 = vmatpush1.msra.mxu0 0.0
    %3026 = vmatprep.subr.mxu0 0.0
    %3027 = vmatpush1.msra.mxu0 0.0
    %3028 = vmatprep.subr.mxu0 0.0
    %3029 = vmatpush1.msra.mxu0 0.0
    %3030 = vmatprep.subr.mxu0 0.0
    %3031 = vmatpush1.msra.mxu0 0.0
    %3032 = vmatprep.subr.mxu0 0.0
    %3033 = vmatpush1.msra.mxu0 0.0
    %3034 = vmatprep.subr.mxu0 0.0
    %3035 = vmatpush1.msra.mxu0 0.0
    %3036 = vmatprep.mubr.f32.mxu0 0.0
    %3037 = vmatmul.mubr.f32.gmra.mrb[0].mxu0 %v2970
    %v3038 = vpop.f32.mrb[0].mxu0
    %v3039 = vadd.f32 0.0, %v3038
    %v3040 = vpop.f32.mrb[0].mxu0
    %3041 = vdwg.mxu0
    %3042 = vrot.lane.b32.xlu0 %v2036, 112
    %v3043 = vpop.permute.xlu0 %3042
    %3044 = vrot.lane.b32.xlu0 %v2036, 80
    %v3045 = vpop.permute.xlu0 %3044
    %v3046 = vsel %vm240, %v3043, 0
    %v3048 = vsel %vm240, %v3045, 0
    %3050 = vmatprep.subr.mxu0 0.0
    %3051 = vmatpush1.xpose.msra.mxu0 %v3048
    %3052 = vmatprep.subr.mxu0 0.0
    %3053 = vmatpush1.xpose.msra.mxu0 0.0
    %3054 = vmatprep.subr.mxu0 0.0
    %3055 = vmatpush1.xpose.msra.mxu0 0.0
    %3056 = vmatprep.subr.mxu0 0.0
    %3057 = vmatpush1.xpose.msra.mxu0 0.0
    %3058 = vmatprep.subr.mxu0 0.0
    %3059 = vmatpush1.xpose.msra.mxu0 0.0
    %3060 = vmatprep.subr.mxu0 0.0
    %3061 = vmatpush1.xpose.msra.mxu0 0.0
    %3062 = vmatprep.subr.mxu0 0.0
    %3063 = vmatpush1.xpose.msra.mxu0 0.0
    %3064 = vmatprep.subr.mxu0 0.0
    %3065 = vmatpush1.xpose.msra.mxu0 0.0
    %3066 = vmatprep.subr.mxu0 0.0
    %3067 = vmatpush1.xpose.msra.mxu0 0.0
    %3068 = vmatprep.subr.mxu0 0.0
    %3069 = vmatpush1.xpose.msra.mxu0 0.0
    %3070 = vmatprep.subr.mxu0 0.0
    %3071 = vmatpush1.xpose.msra.mxu0 0.0
    %3072 = vmatprep.subr.mxu0 0.0
    %3073 = vmatpush1.xpose.msra.mxu0 0.0
    %3074 = vmatprep.subr.mxu0 0.0
    %3075 = vmatpush1.xpose.msra.mxu0 0.0
    %3076 = vmatprep.subr.mxu0 0.0
    %3077 = vmatpush1.xpose.msra.mxu0 0.0
    %3078 = vmatprep.subr.mxu0 0.0
    %3079 = vmatpush1.xpose.msra.mxu0 0.0
    %3080 = vmatprep.subr.mxu0 0.0
    %3081 = vmatpush1.xpose.msra.mxu0 0.0
    %3082 = vmatprep.subr.mxu0 0.0
    %3083 = vmatpush1.xpose.msra.mxu0 0.0
    %3084 = vmatprep.subr.mxu0 0.0
    %3085 = vmatpush1.xpose.msra.mxu0 0.0
    %3086 = vmatprep.subr.mxu0 0.0
    %3087 = vmatpush1.xpose.msra.mxu0 0.0
    %3088 = vmatprep.subr.mxu0 0.0
    %3089 = vmatpush1.xpose.msra.mxu0 0.0
    %3090 = vmatprep.subr.mxu0 0.0
    %3091 = vmatpush1.xpose.msra.mxu0 0.0
    %3092 = vmatprep.subr.mxu0 0.0
    %3093 = vmatpush1.xpose.msra.mxu0 0.0
    %3094 = vmatprep.subr.mxu0 0.0
    %3095 = vmatpush1.xpose.msra.mxu0 0.0
    %3096 = vmatprep.subr.mxu0 0.0
    %3097 = vmatpush1.xpose.msra.mxu0 0.0
    %3098 = vmatprep.subr.mxu0 0.0
    %3099 = vmatpush1.xpose.msra.mxu0 0.0
    %3100 = vmatprep.subr.mxu0 0.0
    %3101 = vmatpush1.xpose.msra.mxu0 0.0
    %3102 = vmatprep.subr.mxu0 0.0
    %3103 = vmatpush1.xpose.msra.mxu0 0.0
    %3104 = vmatprep.subr.mxu0 0.0
    %3105 = vmatpush1.xpose.msra.mxu0 0.0
    %3106 = vmatprep.subr.mxu0 0.0
    %3107 = vmatpush1.xpose.msra.mxu0 0.0
    %3108 = vmatprep.subr.mxu0 0.0
    %3109 = vmatpush1.xpose.msra.mxu0 0.0
    %3110 = vmatprep.subr.mxu0 0.0
    %3111 = vmatpush1.xpose.msra.mxu0 0.0
    %3112 = vmatprep.subr.mxu0 0.0
    %3113 = vmatpush1.xpose.msra.mxu0 0.0
    %3114 = vmatprep.mubr.f32.mxu0 0.0
    %3115 = vmatmul.mubr.f32.gmra.mrb[0].mxu0 %v3046
    %v3116 = vpop.f32.mrb[0].mxu0
    %v3117 = vadd.f32 0.0, %v3116
    %v3118 = vpop.f32.mrb[0].mxu0
    %3119 = vdwg.mxu0
    %v3120 = vsel %vm240, %v3117, -inf
    %3121 = vmax.xlane.f32.xlu0 %v3120
    %v3122 = vpop.xlane.xlu0 %3121
    %v3123 = vsub.f32 %v3117, %v3122
    %v3124 = vmul.f32 %v3123, 1.442695
    %v3125 = vpow.pop %v3124
    %v3126 = vsel %vm240, %v3125, 0.0
    %3127 = vadd.xlane.f32.xlu0 %v3126
    %v3128 = vpop.xlane.xlu0 %3127
    %v3129 = vrcp.pop %v3128
    %v3130 = vmul.f32 %v3125, %v3129
    %3131 = vrot.lane.b32.xlu0 %v2036, 48
    %v3132 = vpop.permute.xlu0 %3131
    %v3135 = vsel %vm240, %v3130, 0
    %3137 = vmatprep.subr.mxu0 0.0
    %3138 = vmatpush1.msra.mxu0 %v3132
    %3139 = vmatprep.subr.mxu0 0.0
    %3140 = vmatpush1.msra.mxu0 0.0
    %3141 = vmatprep.subr.mxu0 0.0
    %3142 = vmatpush1.msra.mxu0 0.0
    %3143 = vmatprep.subr.mxu0 0.0
    %3144 = vmatpush1.msra.mxu0 0.0
    %3145 = vmatprep.subr.mxu0 0.0
    %3146 = vmatpush1.msra.mxu0 0.0
    %3147 = vmatprep.subr.mxu0 0.0
    %3148 = vmatpush1.msra.mxu0 0.0
    %3149 = vmatprep.subr.mxu0 0.0
    %3150 = vmatpush1.msra.mxu0 0.0
    %3151 = vmatprep.subr.mxu0 0.0
    %3152 = vmatpush1.msra.mxu0 0.0
    %3153 = vmatprep.subr.mxu0 0.0
    %3154 = vmatpush1.msra.mxu0 0.0
    %3155 = vmatprep.subr.mxu0 0.0
    %3156 = vmatpush1.msra.mxu0 0.0
    %3157 = vmatprep.subr.mxu0 0.0
    %3158 = vmatpush1.msra.mxu0 0.0
    %3159 = vmatprep.subr.mxu0 0.0
    %3160 = vmatpush1.msra.mxu0 0.0
    %3161 = vmatprep.subr.mxu0 0.0
    %3162 = vmatpush1.msra.mxu0 0.0
    %3163 = vmatprep.subr.mxu0 0.0
    %3164 = vmatpush1.msra.mxu0 0.0
    %3165 = vmatprep.subr.mxu0 0.0
    %3166 = vmatpush1.msra.mxu0 0.0
    %3167 = vmatprep.subr.mxu0 0.0
    %3168 = vmatpush1.msra.mxu0 0.0
    %3169 = vmatprep.subr.mxu0 0.0
    %3170 = vmatpush1.msra.mxu0 0.0
    %3171 = vmatprep.subr.mxu0 0.0
    %3172 = vmatpush1.msra.mxu0 0.0
    %3173 = vmatprep.subr.mxu0 0.0
    %3174 = vmatpush1.msra.mxu0 0.0
    %3175 = vmatprep.subr.mxu0 0.0
    %3176 = vmatpush1.msra.mxu0 0.0
    %3177 = vmatprep.subr.mxu0 0.0
    %3178 = vmatpush1.msra.mxu0 0.0
    %3179 = vmatprep.subr.mxu0 0.0
    %3180 = vmatpush1.msra.mxu0 0.0
    %3181 = vmatprep.subr.mxu0 0.0
    %3182 = vmatpush1.msra.mxu0 0.0
    %3183 = vmatprep.subr.mxu0 0.0
    %3184 = vmatpush1.msra.mxu0 0.0
    %3185 = vmatprep.subr.mxu0 0.0
    %3186 = vmatpush1.msra.mxu0 0.0
    %3187 = vmatprep.subr.mxu0 0.0
    %3188 = vmatpush1.msra.mxu0 0.0
    %3189 = vmatprep.subr.mxu0 0.0
    %3190 = vmatpush1.msra.mxu0 0.0
    %3191 = vmatprep.subr.mxu0 0.0
    %3192 = vmatpush1.msra.mxu0 0.0
    %3193 = vmatprep.subr.mxu0 0.0
    %3194 = vmatpush1.msra.mxu0 0.0
    %3195 = vmatprep.subr.mxu0 0.0
    %3196 = vmatpush1.msra.mxu0 0.0
    %3197 = vmatprep.subr.mxu0 0.0
    %3198 = vmatpush1.msra.mxu0 0.0
    %3199 = vmatprep.subr.mxu0 0.0
    %3200 = vmatpush1.msra.mxu0 0.0
    %3201 = vmatprep.mubr.f32.mxu0 0.0
    %3202 = vmatmul.mubr.f32.gmra.mrb[0].mxu0 %v3135
    %v3203 = vpop.f32.mrb[0].mxu0
    %v3204 = vadd.f32 0.0, %v3203
    %v3205 = vpop.f32.mrb[0].mxu0
    %3206 = vdwg.mxu0
    %3207 = vrot.lane.b32.xlu0 %v2036, 104
    %v3208 = vpop.permute.xlu0 %3207
    %3209 = vrot.lane.b32.xlu0 %v2036, 72
    %v3210 = vpop.permute.xlu0 %3209
    %v3211 = vsel %vm240, %v3208, 0
    %v3213 = vsel %vm240, %v3210, 0
    %3215 = vmatprep.subr.mxu0 0.0
    %3216 = vmatpush1.xpose.msra.mxu0 %v3213
    %3217 = vmatprep.subr.mxu0 0.0
    %3218 = vmatpush1.xpose.msra.mxu0 0.0
    %3219 = vmatprep.subr.mxu0 0.0
    %3220 = vmatpush1.xpose.msra.mxu0 0.0
    %3221 = vmatprep.subr.mxu0 0.0
    %3222 = vmatpush1.xpose.msra.mxu0 0.0
    %3223 = vmatprep.subr.mxu0 0.0
    %3224 = vmatpush1.xpose.msra.mxu0 0.0
    %3225 = vmatprep.subr.mxu0 0.0
    %3226 = vmatpush1.xpose.msra.mxu0 0.0
    %3227 = vmatprep.subr.mxu0 0.0
    %3228 = vmatpush1.xpose.msra.mxu0 0.0
    %3229 = vmatprep.subr.mxu0 0.0
    %3230 = vmatpush1.xpose.msra.mxu0 0.0
    %3231 = vmatprep.subr.mxu0 0.0
    %3232 = vmatpush1.xpose.msra.mxu0 0.0
    %3233 = vmatprep.subr.mxu0 0.0
    %3234 = vmatpush1.xpose.msra.mxu0 0.0
    %3235 = vmatprep.subr.mxu0 0.0
    %3236 = vmatpush1.xpose.msra.mxu0 0.0
    %3237 = vmatprep.subr.mxu0 0.0
    %3238 = vmatpush1.xpose.msra.mxu0 0.0
    %3239 = vmatprep.subr.mxu0 0.0
    %3240 = vmatpush1.xpose.msra.mxu0 0.0
    %3241 = vmatprep.subr.mxu0 0.0
    %3242 = vmatpush1.xpose.msra.mxu0 0.0
    %3243 = vmatprep.subr.mxu0 0.0
    %3244 = vmatpush1.xpose.msra.mxu0 0.0
    %3245 = vmatprep.subr.mxu0 0.0
    %3246 = vmatpush1.xpose.msra.mxu0 0.0
    %3247 = vmatprep.subr.mxu0 0.0
    %3248 = vmatpush1.xpose.msra.mxu0 0.0
    %3249 = vmatprep.subr.mxu0 0.0
    %3250 = vmatpush1.xpose.msra.mxu0 0.0
    %3251 = vmatprep.subr.mxu0 0.0
    %3252 = vmatpush1.xpose.msra.mxu0 0.0
    %3253 = vmatprep.subr.mxu0 0.0
    %3254 = vmatpush1.xpose.msra.mxu0 0.0
    %3255 = vmatprep.subr.mxu0 0.0
    %3256 = vmatpush1.xpose.msra.mxu0 0.0
    %3257 = vmatprep.subr.mxu0 0.0
    %3258 = vmatpush1.xpose.msra.mxu0 0.0
    %3259 = vmatprep.subr.mxu0 0.0
    %3260 = vmatpush1.xpose.msra.mxu0 0.0
    %3261 = vmatprep.subr.mxu0 0.0
    %3262 = vmatpush1.xpose.msra.mxu0 0.0
    %3263 = vmatprep.subr.mxu0 0.0
    %3264 = vmatpush1.xpose.msra.mxu0 0.0
    %3265 = vmatprep.subr.mxu0 0.0
    %3266 = vmatpush1.xpose.msra.mxu0 0.0
    %3267 = vmatprep.subr.mxu0 0.0
    %3268 = vmatpush1.xpose.msra.mxu0 0.0
    %3269 = vmatprep.subr.mxu0 0.0
    %3270 = vmatpush1.xpose.msra.mxu0 0.0
    %3271 = vmatprep.subr.mxu0 0.0
    %3272 = vmatpush1.xpose.msra.mxu0 0.0
    %3273 = vmatprep.subr.mxu0 0.0
    %3274 = vmatpush1.xpose.msra.mxu0 0.0
    %3275 = vmatprep.subr.mxu0 0.0
    %3276 = vmatpush1.xpose.msra.mxu0 0.0
    %3277 = vmatprep.subr.mxu0 0.0
    %3278 = vmatpush1.xpose.msra.mxu0 0.0
    %3279 = vmatprep.mubr.f32.mxu0 0.0
    %3280 = vmatmul.mubr.f32.gmra.mrb[0].mxu0 %v3211
    %v3281 = vpop.f32.mrb[0].mxu0
    %v3282 = vadd.f32 0.0, %v3281
    %v3283 = vpop.f32.mrb[0].mxu0
    %3284 = vdwg.mxu0
    %v3285 = vsel %vm240, %v3282, -inf
    %3286 = vmax.xlane.f32.xlu0 %v3285
    %v3287 = vpop.xlane.xlu0 %3286
    %v3288 = vsub.f32 %v3282, %v3287
    %v3289 = vmul.f32 %v3288, 1.442695
    %v3290 = vpow.pop %v3289
    %v3291 = vsel %vm240, %v3290, 0.0
    %3292 = vadd.xlane.f32.xlu0 %v3291
    %v3293 = vpop.xlane.xlu0 %3292
    %v3294 = vrcp.pop %v3293
    %v3295 = vmul.f32 %v3290, %v3294
    %3296 = vrot.lane.b32.xlu0 %v2036, 40
    %v3297 = vpop.permute.xlu0 %3296
    %v3300 = vsel %vm240, %v3295, 0
    %3302 = vmatprep.subr.mxu0 0.0
    %3303 = vmatpush1.msra.mxu0 %v3297
    %3304 = vmatprep.subr.mxu0 0.0
    %3305 = vmatpush1.msra.mxu0 0.0
    %3306 = vmatprep.subr.mxu0 0.0
    %3307 = vmatpush1.msra.mxu0 0.0
    %3308 = vmatprep.subr.mxu0 0.0
    %3309 = vmatpush1.msra.mxu0 0.0
    %3310 = vmatprep.subr.mxu0 0.0
    %3311 = vmatpush1.msra.mxu0 0.0
    %3312 = vmatprep.subr.mxu0 0.0
    %3313 = vmatpush1.msra.mxu0 0.0
    %3314 = vmatprep.subr.mxu0 0.0
    %3315 = vmatpush1.msra.mxu0 0.0
    %3316 = vmatprep.subr.mxu0 0.0
    %3317 = vmatpush1.msra.mxu0 0.0
    %3318 = vmatprep.subr.mxu0 0.0
    %3319 = vmatpush1.msra.mxu0 0.0
    %3320 = vmatprep.subr.mxu0 0.0
    %3321 = vmatpush1.msra.mxu0 0.0
    %3322 = vmatprep.subr.mxu0 0.0
    %3323 = vmatpush1.msra.mxu0 0.0
    %3324 = vmatprep.subr.mxu0 0.0
    %3325 = vmatpush1.msra.mxu0 0.0
    %3326 = vmatprep.subr.mxu0 0.0
    %3327 = vmatpush1.msra.mxu0 0.0
    %3328 = vmatprep.subr.mxu0 0.0
    %3329 = vmatpush1.msra.mxu0 0.0
    %3330 = vmatprep.subr.mxu0 0.0
    %3331 = vmatpush1.msra.mxu0 0.0
    %3332 = vmatprep.subr.mxu0 0.0
    %3333 = vmatpush1.msra.mxu0 0.0
    %3334 = vmatprep.subr.mxu0 0.0
    %3335 = vmatpush1.msra.mxu0 0.0
    %3336 = vmatprep.subr.mxu0 0.0
    %3337 = vmatpush1.msra.mxu0 0.0
    %3338 = vmatprep.subr.mxu0 0.0
    %3339 = vmatpush1.msra.mxu0 0.0
    %3340 = vmatprep.subr.mxu0 0.0
    %3341 = vmatpush1.msra.mxu0 0.0
    %3342 = vmatprep.subr.mxu0 0.0
    %3343 = vmatpush1.msra.mxu0 0.0
    %3344 = vmatprep.subr.mxu0 0.0
    %3345 = vmatpush1.msra.mxu0 0.0
    %3346 = vmatprep.subr.mxu0 0.0
    %3347 = vmatpush1.msra.mxu0 0.0
    %3348 = vmatprep.subr.mxu0 0.0
    %3349 = vmatpush1.msra.mxu0 0.0
    %3350 = vmatprep.subr.mxu0 0.0
    %3351 = vmatpush1.msra.mxu0 0.0
    %3352 = vmatprep.subr.mxu0 0.0
    %3353 = vmatpush1.msra.mxu0 0.0
    %3354 = vmatprep.subr.mxu0 0.0
    %3355 = vmatpush1.msra.mxu0 0.0
    %3356 = vmatprep.subr.mxu0 0.0
    %3357 = vmatpush1.msra.mxu0 0.0
    %3358 = vmatprep.subr.mxu0 0.0
    %3359 = vmatpush1.msra.mxu0 0.0
    %3360 = vmatprep.subr.mxu0 0.0
    %3361 = vmatpush1.msra.mxu0 0.0
    %3362 = vmatprep.subr.mxu0 0.0
    %3363 = vmatpush1.msra.mxu0 0.0
    %3364 = vmatprep.subr.mxu0 0.0
    %3365 = vmatpush1.msra.mxu0 0.0
    %3366 = vmatprep.mubr.f32.mxu0 0.0
    %3367 = vmatmul.mubr.f32.gmra.mrb[0].mxu0 %v3300
    %v3368 = vpop.f32.mrb[0].mxu0
    %v3369 = vadd.f32 0.0, %v3368
    %v3370 = vpop.f32.mrb[0].mxu0
    %3371 = vdwg.mxu0
    %3373 = vrot.lane.b32.xlu0 %v3039, 8
    %v3374 = vpop.permute.xlu0 %3373
    %3377 = vrot.lane.b32.xlu0 %v3204, 16
    %v3378 = vpop.permute.xlu0 %3377
    %3381 = vrot.lane.b32.xlu0 %v3369, 24
    %v3382 = vpop.permute.xlu0 %3381
    %v3384 = vsel %vm240, %v2874, %v3374
    %v3385 = vsel %vm910, %v3384, %v3378
    %v3386 = vsel %vm912, %v3385, %v3382
    %v3387 = vlaneseq
    %v3388 = vshrl.u32 %v3387, 7
    %v3389 = vsub.s32 0, %v3388
    %v3390 = vrot.slane %v1947, %v3389
    %v3392 = vsel %vm84, %v2712, 0
    %v3395 = vsel %vm84, %v3386, 0
    %3397 = vmatprep.subr.mxu0 0.0
    %3398 = vmatpush1.msra.mxu0 %v1930
    %3399 = vmatprep.subr.mxu0 0.0
    %3400 = vmatpush1.msra.mxu0 %v1931
    %3401 = vmatprep.subr.mxu0 0.0
    %3402 = vmatpush1.msra.mxu0 %v1932
    %3403 = vmatprep.subr.mxu0 0.0
    %3404 = vmatpush1.msra.mxu0 %v1933
    %3405 = vmatprep.subr.mxu0 0.0
    %3406 = vmatpush1.msra.mxu0 0.0
    %3407 = vmatprep.subr.mxu0 0.0
    %3408 = vmatpush1.msra.mxu0 0.0
    %3409 = vmatprep.subr.mxu0 0.0
    %3410 = vmatpush1.msra.mxu0 0.0
    %3411 = vmatprep.subr.mxu0 0.0
    %3412 = vmatpush1.msra.mxu0 0.0
    %3413 = vmatprep.subr.mxu0 0.0
    %3414 = vmatpush1.msra.mxu0 0.0
    %3415 = vmatprep.subr.mxu0 0.0
    %3416 = vmatpush1.msra.mxu0 0.0
    %3417 = vmatprep.subr.mxu0 0.0
    %3418 = vmatpush1.msra.mxu0 0.0
    %3419 = vmatprep.subr.mxu0 0.0
    %3420 = vmatpush1.msra.mxu0 0.0
    %3421 = vmatprep.subr.mxu0 0.0
    %3422 = vmatpush1.msra.mxu0 0.0
    %3423 = vmatprep.subr.mxu0 0.0
    %3424 = vmatpush1.msra.mxu0 0.0
    %3425 = vmatprep.subr.mxu0 0.0
    %3426 = vmatpush1.msra.mxu0 0.0
    %3427 = vmatprep.subr.mxu0 0.0
    %3428 = vmatpush1.msra.mxu0 0.0
    %3429 = vmatprep.subr.mxu0 0.0
    %3430 = vmatpush1.msra.mxu0 0.0
    %3431 = vmatprep.subr.mxu0 0.0
    %3432 = vmatpush1.msra.mxu0 0.0
    %3433 = vmatprep.subr.mxu0 0.0
    %3434 = vmatpush1.msra.mxu0 0.0
    %3435 = vmatprep.subr.mxu0 0.0
    %3436 = vmatpush1.msra.mxu0 0.0
    %3437 = vmatprep.subr.mxu0 0.0
    %3438 = vmatpush1.msra.mxu0 0.0
    %3439 = vmatprep.subr.mxu0 0.0
    %3440 = vmatpush1.msra.mxu0 0.0
    %3441 = vmatprep.subr.mxu0 0.0
    %3442 = vmatpush1.msra.mxu0 0.0
    %3443 = vmatprep.subr.mxu0 0.0
    %3444 = vmatpush1.msra.mxu0 0.0
    %3445 = vmatprep.subr.mxu0 0.0
    %3446 = vmatpush1.msra.mxu0 0.0
    %3447 = vmatprep.subr.mxu0 0.0
    %3448 = vmatpush1.msra.mxu0 0.0
    %3449 = vmatprep.subr.mxu0 0.0
    %3450 = vmatpush1.msra.mxu0 0.0
    %3451 = vmatprep.subr.mxu0 0.0
    %3452 = vmatpush1.msra.mxu0 0.0
    %3453 = vmatprep.subr.mxu0 0.0
    %3454 = vmatpush1.msra.mxu0 0.0
    %3455 = vmatprep.subr.mxu0 0.0
    %3456 = vmatpush1.msra.mxu0 0.0
    %3457 = vmatprep.subr.mxu0 0.0
    %3458 = vmatpush1.msra.mxu0 0.0
    %3459 = vmatprep.subr.mxu0 0.0
    %3460 = vmatpush1.msra.mxu0 0.0
    %3461 = vmatprep.mubr.f32.mxu0 0.0
    %3462 = vmatmul.mubr.f32.gmra.mrb[0].mxu0 %v3392
    %v3463 = vpop.f32.mrb[0].mxu0
    %v3464 = vadd.f32 %v3390, %v3463
    %v3465 = vpop.f32.mrb[0].mxu0
    %3466 = vmatprep.mubr.f32.mxu0 0.0
    %3467 = vmatmul.mubr.f32.gmra.mrb[0].mxu0 %v3395
    %v3468 = vpop.f32.mrb[0].mxu0
    %v3469 = vadd.f32 %v3390, %v3468
    %v3470 = vpop.f32.mrb[0].mxu0
    %3471 = vdwg.mxu0
    %v3472 = vadd.f32 %v1924, %v3464
    %v3473 = vadd.f32 %v1925, %v3469
    %v3474 = vsel %vm84, %v3472, 0.0
    %3475 = vadd.xlane.f32.xlu0 %v3474
    %v3476 = vpop.xlane.xlu0 %3475
    %v3477 = vsel %vm84, %v3473, 0.0
    %3478 = vadd.xlane.f32.xlu0 %v3477
    %v3479 = vpop.xlane.xlu0 %3478
    %v3480 = vmul.f32 %v3476, %v91
    %v3481 = vmul.f32 %v3479, %v91
    %v3482 = vsub.f32 %v3472, %v3480
    %v3483 = vsub.f32 %v3473, %v3481
    %v3484 = vmul.f32 %v3482, %v3482
    %v3485 = vmul.f32 %v3483, %v3483
    %v3486 = vsel %vm84, %v3484, 0.0
    %3487 = vadd.xlane.f32.xlu0 %v3486
    %v3488 = vpop.xlane.xlu0 %3487
    %v3489 = vsel %vm84, %v3485, 0.0
    %3490 = vadd.xlane.f32.xlu0 %v3489
    %v3491 = vpop.xlane.xlu0 %3490
    %v3492 = vmul.f32 %v3488, %v91
    %v3493 = vmul.f32 %v3491, %v91
    %v3494 = vadd.f32 %v3492, 1e-05
    %v3495 = vadd.f32 %v3493, 1e-05
    %v3496 = vrsqrt.pop %v3494
    %v3497 = vrsqrt.pop %v3495
    %v3498 = vmul.f32 %v3482, %v3496
    %v3499 = vmul.f32 %v3483, %v3497
    %v3500 = vlaneseq
    %v3501 = vshrl.u32 %v3500, 7
    %v3502 = vsub.s32 0, %v3501
    %v3503 = vrot.slane %v1948, %v3502
    %v3504 = vmul.f32 %v3498, %v3503
    %v3505 = vmul.f32 %v3499, %v3503
    %v3506 = vlaneseq
    %v3507 = vshrl.u32 %v3506, 7
    %v3508 = vsub.s32 0, %v3507
    %v3509 = vrot.slane %v1949, %v3508
    %v3510 = vadd.f32 %v3504, %v3509
    %v3511 = vadd.f32 %v3505, %v3509
    %v3512 = vlaneseq
    %v3513 = vshrl.u32 %v3512, 7
    %v3514 = vsub.s32 0, %v3513
    %v3515 = vrot.slane %v1950, %v3514
    %v3517 = vsel %vm84, %v3510, 0
    %v3520 = vsel %vm84, %v3511, 0
    %3522 = vmatprep.subr.mxu0 0.0
    %3523 = vmatpush1.msra.mxu0 %v1934
    %3524 = vmatprep.subr.mxu0 0.0
    %3525 = vmatpush1.msra.mxu0 %v1935
    %3526 = vmatprep.subr.mxu0 0.0
    %3527 = vmatpush1.msra.mxu0 %v1936
    %3528 = vmatprep.subr.mxu0 0.0
    %3529 = vmatpush1.msra.mxu0 %v1937
    %3530 = vmatprep.subr.mxu0 0.0
    %3531 = vmatpush1.msra.mxu0 0.0
    %3532 = vmatprep.subr.mxu0 0.0
    %3533 = vmatpush1.msra.mxu0 0.0
    %3534 = vmatprep.subr.mxu0 0.0
    %3535 = vmatpush1.msra.mxu0 0.0
    %3536 = vmatprep.subr.mxu0 0.0
    %3537 = vmatpush1.msra.mxu0 0.0
    %3538 = vmatprep.subr.mxu0 0.0
    %3539 = vmatpush1.msra.mxu0 0.0
    %3540 = vmatprep.subr.mxu0 0.0
    %3541 = vmatpush1.msra.mxu0 0.0
    %3542 = vmatprep.subr.mxu0 0.0
    %3543 = vmatpush1.msra.mxu0 0.0
    %3544 = vmatprep.subr.mxu0 0.0
    %3545 = vmatpush1.msra.mxu0 0.0
    %3546 = vmatprep.subr.mxu0 0.0
    %3547 = vmatpush1.msra.mxu0 0.0
    %3548 = vmatprep.subr.mxu0 0.0
    %3549 = vmatpush1.msra.mxu0 0.0
    %3550 = vmatprep.subr.mxu0 0.0
    %3551 = vmatpush1.msra.mxu0 0.0
    %3552 = vmatprep.subr.mxu0 0.0
    %3553 = vmatpush1.msra.mxu0 0.0
    %3554 = vmatprep.subr.mxu0 0.0
    %3555 = vmatpush1.msra.mxu0 0.0
    %3556 = vmatprep.subr.mxu0 0.0
    %3557 = vmatpush1.msra.mxu0 0.0
    %3558 = vmatprep.subr.mxu0 0.0
    %3559 = vmatpush1.msra.mxu0 0.0
    %3560 = vmatprep.subr.mxu0 0.0
    %3561 = vmatpush1.msra.mxu0 0.0
    %3562 = vmatprep.subr.mxu0 0.0
    %3563 = vmatpush1.msra.mxu0 0.0
    %3564 = vmatprep.subr.mxu0 0.0
    %3565 = vmatpush1.msra.mxu0 0.0
    %3566 = vmatprep.subr.mxu0 0.0
    %3567 = vmatpush1.msra.mxu0 0.0
    %3568 = vmatprep.subr.mxu0 0.0
    %3569 = vmatpush1.msra.mxu0 0.0
    %3570 = vmatprep.subr.mxu0 0.0
    %3571 = vmatpush1.msra.mxu0 0.0
    %3572 = vmatprep.subr.mxu0 0.0
    %3573 = vmatpush1.msra.mxu0 0.0
    %3574 = vmatprep.subr.mxu0 0.0
    %3575 = vmatpush1.msra.mxu0 0.0
    %3576 = vmatprep.subr.mxu0 0.0
    %3577 = vmatpush1.msra.mxu0 0.0
    %3578 = vmatprep.subr.mxu0 0.0
    %3579 = vmatpush1.msra.mxu0 0.0
    %3580 = vmatprep.subr.mxu0 0.0
    %3581 = vmatpush1.msra.mxu0 0.0
    %3582 = vmatprep.subr.mxu0 0.0
    %3583 = vmatpush1.msra.mxu0 0.0
    %3584 = vmatprep.subr.mxu0 0.0
    %3585 = vmatpush1.msra.mxu0 0.0
    %3586 = vmatprep.mubr.f32.mxu0 0.0
    %3587 = vmatmul.mubr.f32.gmra.mrb[0].mxu0 %v3517
    %v3588 = vpop.f32.mrb[0].mxu0
    %v3589 = vadd.f32 %v3515, %v3588
    %v3590 = vpop.f32.mrb[0].mxu0
    %3591 = vmatprep.mubr.f32.mxu0 0.0
    %3592 = vmatmul.mubr.f32.gmra.mrb[0].mxu0 %v3520
    %v3593 = vpop.f32.mrb[0].mxu0
    %v3594 = vadd.f32 %v3515, %v3593
    %v3595 = vpop.f32.mrb[0].mxu0
    %3596 = vdwg.mxu0
    %v3597 = vmax.f32 %v3589, 0.0
    %v3598 = vmax.f32 %v3594, 0.0
    %v3599 = vlaneseq
    %v3600 = vshrl.u32 %v3599, 7
    %v3601 = vsub.s32 0, %v3600
    %v3602 = vrot.slane %v1951, %v3601
    %v3604 = vsel %vm1804, %v3597, 0
    %v3607 = vsel %vm1804, %v3598, 0
    %3609 = vmatprep.subr.mxu0 0.0
    %3610 = vmatpush1.msra.mxu0 %v1938
    %3611 = vmatprep.subr.mxu0 0.0
    %3612 = vmatpush1.msra.mxu0 %v1939
    %3613 = vmatprep.subr.mxu0 0.0
    %3614 = vmatpush1.msra.mxu0 %v1940
    %3615 = vmatprep.subr.mxu0 0.0
    %3616 = vmatpush1.msra.mxu0 %v1941
    %3617 = vmatprep.subr.mxu0 0.0
    %3618 = vmatpush1.msra.mxu0 %v1942
    %3619 = vmatprep.subr.mxu0 0.0
    %3620 = vmatpush1.msra.mxu0 %v1943
    %3621 = vmatprep.subr.mxu0 0.0
    %3622 = vmatpush1.msra.mxu0 %v1944
    %3623 = vmatprep.subr.mxu0 0.0
    %3624 = vmatpush1.msra.mxu0 %v1945
    %3625 = vmatprep.subr.mxu0 0.0
    %3626 = vmatpush1.msra.mxu0 0.0
    %3627 = vmatprep.subr.mxu0 0.0
    %3628 = vmatpush1.msra.mxu0 0.0
    %3629 = vmatprep.subr.mxu0 0.0
    %3630 = vmatpush1.msra.mxu0 0.0
    %3631 = vmatprep.subr.mxu0 0.0
    %3632 = vmatpush1.msra.mxu0 0.0
    %3633 = vmatprep.subr.mxu0 0.0
    %3634 = vmatpush1.msra.mxu0 0.0
    %3635 = vmatprep.subr.mxu0 0.0
    %3636 = vmatpush1.msra.mxu0 0.0
    %3637 = vmatprep.subr.mxu0 0.0
    %3638 = vmatpush1.msra.mxu0 0.0
    %3639 = vmatprep.subr.mxu0 0.0
    %3640 = vmatpush1.msra.mxu0 0.0
    %3641 = vmatprep.subr.mxu0 0.0
    %3642 = vmatpush1.msra.mxu0 0.0
    %3643 = vmatprep.subr.mxu0 0.0
    %3644 = vmatpush1.msra.mxu0 0.0
    %3645 = vmatprep.subr.mxu0 0.0
    %3646 = vmatpush1.msra.mxu0 0.0
    %3647 = vmatprep.subr.mxu0 0.0
    %3648 = vmatpush1.msra.mxu0 0.0
    %3649 = vmatprep.subr.mxu0 0.0
    %3650 = vmatpush1.msra.mxu0 0.0
    %3651 = vmatprep.subr.mxu0 0.0
    %3652 = vmatpush1.msra.mxu0 0.0
    %3653 = vmatprep.subr.mxu0 0.0
    %3654 = vmatpush1.msra.mxu0 0.0
    %3655 = vmatprep.subr.mxu0 0.0
    %3656 = vmatpush1.msra.mxu0 0.0
    %3657 = vmatprep.subr.mxu0 0.0
    %3658 = vmatpush1.msra.mxu0 0.0
    %3659 = vmatprep.subr.mxu0 0.0
    %3660 = vmatpush1.msra.mxu0 0.0
    %3661 = vmatprep.subr.mxu0 0.0
    %3662 = vmatpush1.msra.mxu0 0.0
    %3663 = vmatprep.subr.mxu0 0.0
    %3664 = vmatpush1.msra.mxu0 0.0
    %3665 = vmatprep.subr.mxu0 0.0
    %3666 = vmatpush1.msra.mxu0 0.0
    %3667 = vmatprep.subr.mxu0 0.0
    %3668 = vmatpush1.msra.mxu0 0.0
    %3669 = vmatprep.subr.mxu0 0.0
    %3670 = vmatpush1.msra.mxu0 0.0
    %3671 = vmatprep.subr.mxu0 0.0
    %3672 = vmatpush1.msra.mxu0 0.0
    %3673 = vmatprep.mubr.f32.mxu0 0.0
    %3674 = vmatmul.mubr.f32.gmra.mrb[0].mxu0 %v3604
    %v3675 = vpop.f32.mrb[0].mxu0
    %v3676 = vadd.f32 %v3602, %v3675
    %v3677 = vpop.f32.mrb[0].mxu0
    %3678 = vmatprep.mubr.f32.mxu0 0.0
    %3679 = vmatmul.mubr.f32.gmra.mrb[0].mxu0 %v3607
    %v3680 = vpop.f32.mrb[0].mxu0
    %v3681 = vadd.f32 %v3602, %v3680
    %v3682 = vpop.f32.mrb[0].mxu0
    %3683 = vdwg.mxu0
    %v3684 = vadd.f32 %v3510, %v3676
    %v3685 = vadd.f32 %v3511, %v3681
    %v3686 = vsel %vm84, %v3684, 0.0
    %3687 = vadd.xlane.f32.xlu0 %v3686
    %v3688 = vpop.xlane.xlu0 %3687
    %v3689 = vsel %vm84, %v3685, 0.0
    %3690 = vadd.xlane.f32.xlu0 %v3689
    %v3691 = vpop.xlane.xlu0 %3690
    %v3692 = vmul.f32 %v3688, %v91
    %v3693 = vmul.f32 %v3691, %v91
    %v3694 = vsub.f32 %v3684, %v3692
    %v3695 = vsub.f32 %v3685, %v3693
    %v3696 = vmul.f32 %v3694, %v3694
    %v3697 = vmul.f32 %v3695, %v3695
    %v3698 = vsel %vm84, %v3696, 0.0
    %3699 = vadd.xlane.f32.xlu0 %v3698
    %v3700 = vpop.xlane.xlu0 %3699
    %v3701 = vsel %vm84, %v3697, 0.0
    %3702 = vadd.xlane.f32.xlu0 %v3701
    %v3703 = vpop.xlane.xlu0 %3702
    %v3704 = vmul.f32 %v3700, %v91
    %v3705 = vmul.f32 %v3703, %v91
    %v3706 = vadd.f32 %v3704, 1e-05
    %v3707 = vadd.f32 %v3705, 1e-05
    %v3708 = vrsqrt.pop %v3706
    %v3709 = vrsqrt.pop %v3707
    %v3710 = vmul.f32 %v3694, %v3708
    %v3711 = vmul.f32 %v3695, %v3709
    %v3712 = vlaneseq
    %v3713 = vshrl.u32 %v3712, 7
    %v3714 = vsub.s32 0, %v3713
    %v3715 = vrot.slane %v1952, %v3714
    %v3716 = vmul.f32 %v3710, %v3715
    %v3717 = vmul.f32 %v3711, %v3715
    %v3718 = vlaneseq
    %v3719 = vshrl.u32 %v3718, 7
    %v3720 = vsub.s32 0, %v3719
    %v3721 = vrot.slane %v1953, %v3720
    %v3722 = vadd.f32 %v3716, %v3721
    %v3723 = vadd.f32 %v3717, %v3721
    %v3724 = vld [vmem:[%s2] sm:$0xff]
    %v3725 = vld [vmem:[%s2 + $0x8] sm:$0xff]
    %v3726 = vld [vmem:[%s2 + $0x10] sm:$0xff]
    %v3727 = vld [vmem:[%s2 + $0x18] sm:$0xff]
    %v3728 = vld [vmem:[#allocation5 + $0x2] sm:$0x1]
    %v3729 = vlaneseq
    %v3730 = vshrl.u32 %v3729, 7
    %v3731 = vsub.s32 0, %v3730
    %v3732 = vrot.slane %v3728, %v3731
    %v3734 = vsel %vm84, %v3722, 0
    %v3737 = vsel %vm84, %v3723, 0
    %3739 = vmatprep.subr.mxu0 0.0
    %3740 = vmatpush1.msra.mxu0 %v3724
    %3741 = vmatprep.subr.mxu0 0.0
    %3742 = vmatpush1.msra.mxu0 %v3725
    %3743 = vmatprep.subr.mxu0 0.0
    %3744 = vmatpush1.msra.mxu0 %v3726
    %3745 = vmatprep.subr.mxu0 0.0
    %3746 = vmatpush1.msra.mxu0 %v3727
    %3747 = vmatprep.subr.mxu0 0.0
    %3748 = vmatpush1.msra.mxu0 0.0
    %3749 = vmatprep.subr.mxu0 0.0
    %3750 = vmatpush1.msra.mxu0 0.0
    %3751 = vmatprep.subr.mxu0 0.0
    %3752 = vmatpush1.msra.mxu0 0.0
    %3753 = vmatprep.subr.mxu0 0.0
    %3754 = vmatpush1.msra.mxu0 0.0
    %3755 = vmatprep.subr.mxu0 0.0
    %3756 = vmatpush1.msra.mxu0 0.0
    %3757 = vmatprep.subr.mxu0 0.0
    %3758 = vmatpush1.msra.mxu0 0.0
    %3759 = vmatprep.subr.mxu0 0.0
    %3760 = vmatpush1.msra.mxu0 0.0
    %3761 = vmatprep.subr.mxu0 0.0
    %3762 = vmatpush1.msra.mxu0 0.0
    %3763 = vmatprep.subr.mxu0 0.0
    %3764 = vmatpush1.msra.mxu0 0.0
    %3765 = vmatprep.subr.mxu0 0.0
    %3766 = vmatpush1.msra.mxu0 0.0
    %3767 = vmatprep.subr.mxu0 0.0
    %3768 = vmatpush1.msra.mxu0 0.0
    %3769 = vmatprep.subr.mxu0 0.0
    %3770 = vmatpush1.msra.mxu0 0.0
    %3771 = vmatprep.subr.mxu0 0.0
    %3772 = vmatpush1.msra.mxu0 0.0
    %3773 = vmatprep.subr.mxu0 0.0
    %3774 = vmatpush1.msra.mxu0 0.0
    %3775 = vmatprep.subr.mxu0 0.0
    %3776 = vmatpush1.msra.mxu0 0.0
    %3777 = vmatprep.subr.mxu0 0.0
    %3778 = vmatpush1.msra.mxu0 0.0
    %3779 = vmatprep.subr.mxu0 0.0
    %3780 = vmatpush1.msra.mxu0 0.0
    %3781 = vmatprep.subr.mxu0 0.0
    %3782 = vmatpush1.msra.mxu0 0.0
    %3783 = vmatprep.subr.mxu0 0.0
    %3784 = vmatpush1.msra.mxu0 0.0
    %3785 = vmatprep.subr.mxu0 0.0
    %3786 = vmatpush1.msra.mxu0 0.0
    %3787 = vmatprep.subr.mxu0 0.0
    %3788 = vmatpush1.msra.mxu0 0.0
    %3789 = vmatprep.subr.mxu0 0.0
    %3790 = vmatpush1.msra.mxu0 0.0
    %3791 = vmatprep.subr.mxu0 0.0
    %3792 = vmatpush1.msra.mxu0 0.0
    %3793 = vmatprep.subr.mxu0 0.0
    %3794 = vmatpush1.msra.mxu0 0.0
    %3795 = vmatprep.subr.mxu0 0.0
    %3796 = vmatpush1.msra.mxu0 0.0
    %3797 = vmatprep.subr.mxu0 0.0
    %3798 = vmatpush1.msra.mxu0 0.0
    %3799 = vmatprep.subr.mxu0 0.0
    %3800 = vmatpush1.msra.mxu0 0.0
    %3801 = vmatprep.subr.mxu0 0.0
    %3802 = vmatpush1.msra.mxu0 0.0
    %3803 = vmatprep.mubr.f32.mxu0 0.0
    %3804 = vmatmul.mubr.f32.gmra.mrb[0].mxu0 %v3734
    %v3805 = vpop.f32.mrb[0].mxu0
    %v3806 = vadd.f32 %v3732, %v3805
    %v3807 = vpop.f32.mrb[0].mxu0
    %3808 = vmatprep.mubr.f32.mxu0 0.0
    %3809 = vmatmul.mubr.f32.gmra.mrb[0].mxu0 %v3737
    %v3810 = vpop.f32.mrb[0].mxu0
    %v3811 = vadd.f32 %v3732, %v3810
    %v3812 = vpop.f32.mrb[0].mxu0
    %3813 = vdwg.mxu0
    %3814 = vst.msk [vmem:[#allocation8] sm:$0xff] %vm84, %v3806
    %3815 = vst.msk [vmem:[#allocation8 + $0x8] sm:$0xff] %vm84, %v3811
    // Predicated region
    $region58: #{tpu_custom_call.1} parent=1 // pred_check
      _
    $region59: #{tpu_custom_call.1} parent=1 // pred_check_branch
      %3817 = sbr.rel (0) target = $region61
    $region60: #{tpu_custom_call.1} parent=1 // pred_region
      %s3819 = ssub.s32 256, 256
      %3820 = vsyncadd [#allocation4], %s3819
      %s3821 = sshll.u32 [#allocation8], 4
      %s3822 = int_to_ptr.vmem [resolvable:$true] %s3821
      %3827 = dma.vmem_to_hbm [thread:$0]  %s3822, 256, %s11, [#allocation4], 128, 128, 8
    $region61: #{tpu_custom_call.1} parent=1 // pred_fallthru
      _
    // Predicated region
    $region62: #{tpu_custom_call.1} parent=1 // pred_check
      _
    $region63: #{tpu_custom_call.1} parent=1 // pred_check_branch
      %3829 = sbr.rel (0) target = $region65
    $region64: #{tpu_custom_call.1} parent=1 // pred_region
      %3830 = dma.done [#allocation4], 256
    $region65: #{tpu_custom_call.1} parent=1 // pred_fallthru
      _
    %3831 = vsyncpa [#allocation3], 1
    %3832 = vsyncpa [#allocation6], 1
    %3833 = vsyncpa [#allocation4], 1

</llo_original>
